<compile_context>
chip_gen: v7x
topology: tpu7x:2x2x1
jax: 0.10.0
libtpu: 0.0.40
codegen_flags: <defaults>
</compile_context>

<pallas_src>
import jax
import jax.numpy as jnp
from jax.experimental import pallas as pl
from jax.experimental.pallas import tpu as pltpu


def _full_spec(shape):
    """Whole-array VMEM block (no grid -> single kernel invocation)."""
    return pl.BlockSpec(shape, lambda: (0,) * len(shape))


def _conv_out_len(L_in, kernel_size, stride, padding, dilation):
    return (L_in + 2 * padding - dilation * (kernel_size - 1) - 1) // stride + 1


def _make_fused_kernel(*, B, L_in, channel_ls, kernel_size, stride,
                       padding_ls, dilation_ls, tower_width):
    """Builds the fused forward kernel (closure over all static shape config)."""
    n_conv = len(channel_ls) - 1
    K = kernel_size
    W = tower_width

    L_ls = [L_in]
    for i in range(n_conv):
        L_ls.append(_conv_out_len(L_ls[-1], K, stride[i], padding_ls[i],
                                  dilation_ls[i]))
    T = L_ls[-1]  # GRU sequence length

    def kernel(*refs):
        it = iter(refs)
        x_ref = next(it)                               # (L0*B, C0) time-major rows
        conv_w = [next(it) for _ in range(n_conv)]     # (K, Cin, Cout), BN scale folded
        conv_s = [next(it) for _ in range(n_conv)]     # (1, Cout) = bias * BN scale
        wih0, whh0, bih0, bhh0 = [next(it) for _ in range(4)]   # (3, C, W)/(3, W, W)/(3,1,W)
        wih1, whh1, bih1, bhh1 = [next(it) for _ in range(4)]
        wlin1_ref = next(it)                           # (1, W)  (already * w2[0])
        w2cov_ref = next(it)                           # (1, n_covar)
        xcov_ref = next(it)                            # (B, n_covar)
        head_ref = next(it)                            # SMEM (1,): blin1*w2[0] + blin2
        o_ref = next(it)                               # (B, 1)
        conv_y = [next(it) for _ in range(n_conv)]     # scratch (K, Lin*B, Cout)
        conv_z = [next(it) for _ in range(n_conv)]     # scratch (Lout*B, Cout)
        gi0_scr = next(it)                             # scratch (3, T*B, W)
        h0seq_scr = next(it)                           # scratch (T*B, W)
        gi1_scr = next(it)                             # scratch (3, T*B, W)

        # ---- Conv1d -> BatchNorm1d(eval @ init) -> ReLU stack ----------------
        def conv_layer(li, in_ref):
            L_src, L_dst = L_ls[li], L_ls[li + 1]
            Cout = channel_ls[li + 1]
            s, p, d = stride[li], padding_ls[li], dilation_ls[li]
            x2d = in_ref[...]                                     # (L_src*B, Cin)
            # One matmul per kernel tap (M = L_src*B) — no im2col in HBM.
            for k in range(K):
                conv_y[li][k] = jnp.dot(x2d, conv_w[li][k],
                                        preferred_element_type=jnp.float32)
            shift = jnp.broadcast_to(conv_s[li][...], (B, Cout))  # hoisted broadcast
            for t in range(L_dst):                                # static unroll
                acc = shift
                for k in range(K):
                    src = t * s + k * d - p                       # zero-padding -> skip
                    if 0 <= src < L_src:
                        acc = acc + conv_y[li][k, src * B:(src + 1) * B, :]
                conv_z[li][t * B:(t + 1) * B, :] = jnp.maximum(acc, 0.0)

        conv_layer(0, x_ref)
        for li in range(1, n_conv):
            conv_layer(li, conv_z[li - 1])

        # ---- 2-layer GRU (PyTorch gate order r, z, n), h_0 = 0 ---------------
        def gru_layer(in_ref, wih, whh, bih, bhh, gi_scr, hseq_scr):
            xin = in_ref[...]                                     # (T*B, Cin)
            # Hoisted input-to-hidden projection: one matmul per gate, M = T*B.
            for g in range(3):
                gi_scr[g] = (jnp.dot(xin, wih[g],
                                     preferred_element_type=jnp.float32) + bih[g])
            whh_r, whh_z, whh_n = whh[0], whh[1], whh[2]          # hoisted loads
            bhh_r = jnp.broadcast_to(bhh[0], (B, W))              # hoisted broadcasts
            bhh_z = jnp.broadcast_to(bhh[1], (B, W))
            bhh_n = jnp.broadcast_to(bhh[2], (B, W))
            h = jnp.zeros((B, W), jnp.float32)    # carried in vregs across the loop
            for t in range(T):                    # static, fully unrolled time loop
                gi_r = gi_scr[0, t * B:(t + 1) * B, :]
                gi_z = gi_scr[1, t * B:(t + 1) * B, :]
                gi_n = gi_scr[2, t * B:(t + 1) * B, :]
                gh_r = jnp.dot(h, whh_r, preferred_element_type=jnp.float32) + bhh_r
                gh_z = jnp.dot(h, whh_z, preferred_element_type=jnp.float32) + bhh_z
                gh_n = jnp.dot(h, whh_n, preferred_element_type=jnp.float32) + bhh_n
                r = jax.nn.sigmoid(gi_r + gh_r)
                zg = jax.nn.sigmoid(gi_z + gh_z)
                n = jnp.tanh(gi_n + r * gh_n)
                h = (1.0 - zg) * n + zg * h
                if hseq_scr is not None:
                    hseq_scr[t * B:(t + 1) * B, :] = h
            return h

        gru_layer(conv_z[n_conv - 1], wih0, whh0, bih0, bhh0, gi0_scr, h0seq_scr)
        c2 = gru_layer(h0seq_scr, wih1, whh1, bih1, bhh1, gi1_scr, None)

        # ---- heads: Linear(W,1) -> cat covariates -> Linear(1+n_covar,1) -----
        # out = (c2 @ wlin1^T + blin1) * w2[0] + X_cov @ w2[1:]^T + blin2
        #     = c2 @ (wlin1*w2[0])^T + X_cov @ w2[1:]^T + (blin1*w2[0] + blin2)
        o_ref[...] = (jnp.sum(c2 * wlin1_ref[...], axis=-1, keepdims=True)
                      + jnp.sum(xcov_ref[...] * w2cov_ref[...], axis=-1,
                                keepdims=True)
                      + head_ref[0])

    return kernel, L_ls


class RLCovarIntersectPallas:
    """Forward-only RL_covar_intersect (task='human') with synthetic parameters."""

    def __init__(self, key, channel_ls, kernel_size, stride, padding_ls,
                 dilation_ls, tower_width, n_covar, bn_eps=1e-5):
        self.channel_ls = list(channel_ls)
        self.kernel_size = kernel_size
        self.stride = list(stride)
        self.padding_ls = list(padding_ls)
        self.dilation_ls = list(dilation_ls)
        self.tower_width = tower_width
        self.n_covar = n_covar
        self._fwd_cache = {}

        def rnd(k, shape, scale=0.2):
            return scale * jax.random.normal(k, shape, dtype=jnp.float32)

        keys = iter(jax.random.split(key, 32))
        bn_scale = (1.0 + bn_eps) ** -0.5           # BatchNorm1d eval @ init

        n_conv = len(channel_ls) - 1
        K = kernel_size
        # Conv1d weights in PyTorch layout (Cout, Cin, K), pre-arranged as
        # per-tap matrices (K, Cin, Cout) with the BN scale folded in.
        self.conv_w, self.conv_s = [], []
        for i in range(n_conv):
            cin, cout = channel_ls[i], channel_ls[i + 1]
            w = rnd(next(keys), (cout, cin, K))
            b = rnd(next(keys), (cout,), 0.05)
            self.conv_w.append(jnp.transpose(w, (2, 1, 0)) * bn_scale)
            self.conv_s.append((b * bn_scale).reshape(1, cout))

        C = channel_ls[-1]
        Wd = tower_width
        # GRU weights stored per-gate (order r, z, n), pre-transposed to
        # (in_features, W).  A PyTorch weight_ih_l0 of shape (3W, in) maps as
        # wih[g] = weight_ih_l0[g*W:(g+1)*W, :].T (same for hh / biases).
        self.wih0 = rnd(next(keys), (3, C, Wd))
        self.whh0 = rnd(next(keys), (3, Wd, Wd))
        self.bih0 = rnd(next(keys), (3, 1, Wd), 0.05)
        self.bhh0 = rnd(next(keys), (3, 1, Wd), 0.05)
        self.wih1 = rnd(next(keys), (3, Wd, Wd))
        self.whh1 = rnd(next(keys), (3, Wd, Wd))
        self.bih1 = rnd(next(keys), (3, 1, Wd), 0.05)
        self.bhh1 = rnd(next(keys), (3, 1, Wd), 0.05)

        # Heads: Linear(W,1) ("intersect") then Linear(1+n_covar,1); the 1x1
        # path of the second Linear is folded into the first (exact algebra).
        wlin1 = rnd(next(keys), (1, Wd))
        blin1 = rnd(next(keys), (1,), 0.05)
        wlin2 = rnd(next(keys), (1 + n_covar,))
        blin2 = rnd(next(keys), (1,), 0.05)
        self.wlin1_eff = wlin1 * wlin2[0]                   # (1, W)
        self.w2cov = wlin2[1:].reshape(1, n_covar)          # (1, n_covar)
        self.head_bias = blin1 * wlin2[0] + blin2           # (1,) -> SMEM scalar

    def _get_forward(self, B, L):
        cache_key = (B, L)
        if cache_key in self._fwd_cache:
            return self._fwd_cache[cache_key]

        kernel, L_ls = _make_fused_kernel(
            B=B, L_in=L, channel_ls=self.channel_ls,
            kernel_size=self.kernel_size, stride=self.stride,
            padding_ls=self.padding_ls, dilation_ls=self.dilation_ls,
            tower_width=self.tower_width)

        n_conv = len(self.channel_ls) - 1
        K, Wd, T = self.kernel_size, self.tower_width, L_ls[-1]
        cin0 = self.channel_ls[0]

        const_args = (list(self.conv_w) + list(self.conv_s)
                      + [self.wih0, self.whh0, self.bih0, self.bhh0,
                         self.wih1, self.whh1, self.bih1, self.bhh1,
                         self.wlin1_eff, self.w2cov])

        scratch_shapes = (
            [pltpu.VMEM((K, L_ls[i] * B, self.channel_ls[i + 1]), jnp.float32)
             for i in range(n_conv)]
            + [pltpu.VMEM((L_ls[i + 1] * B, self.channel_ls[i + 1]), jnp.float32)
               for i in range(n_conv)]
            + [pltpu.VMEM((3, T * B, Wd), jnp.float32),
               pltpu.VMEM((T * B, Wd), jnp.float32),
               pltpu.VMEM((3, T * B, Wd), jnp.float32)])

        @jax.jit
        def forward(x_seq, x_covar):
            # (B, L, Cin) -> time-major rows (L*B, Cin): row = t*B + b.
            x2d = jnp.transpose(x_seq.astype(jnp.float32), (1, 0, 2)).reshape(
                L * B, cin0)
            args = ([x2d] + const_args
                    + [x_covar.astype(jnp.float32), self.head_bias])
            in_specs = ([_full_spec(a.shape) for a in args[:-1]]
                        + [pl.BlockSpec(memory_space=pltpu.MemorySpace.SMEM)])
            return pl.pallas_call(
                kernel,
                out_shape=jax.ShapeDtypeStruct((B, 1), jnp.float32),
                in_specs=in_specs,
                out_specs=_full_spec((B, 1)),
                scratch_shapes=scratch_shapes,
            )(*args)

        self._fwd_cache[cache_key] = forward
        return forward

    def __call__(self, x_seq, x_covar):
        # x_seq: (B, L, 4) channels-last (the PyTorch Conv1d_block transposes an
        # NL4 input itself); x_covar: (B, n_covar).
        B, L, cin = x_seq.shape
        assert cin == self.channel_ls[0]
        assert x_covar.shape == (B, self.n_covar), \
            'the # of covariates is not consistent with the model params'
        return self._get_forward(B, L)(x_seq, x_covar)


if __name__ == "__main__":
    key = jax.random.PRNGKey(0)
    k_model, k_seq, k_cov = jax.random.split(key, 3)

    # small config consistent with the module
    channel_ls = [4, 16, 32]
    kernel_size = 3
    stride = [2, 2]
    padding_ls = [1, 1]
    dilation_ls = [1, 1]
    tower_width = 32
    n_covar = 1

    B, L = 2, 16
    x_seq = jax.random.uniform(k_seq, (B, L, 4), dtype=jnp.float32)
    x_covar = jax.random.normal(k_cov, (B, n_covar), dtype=jnp.float32)

    model = RLCovarIntersectPallas(k_model, channel_ls, kernel_size, stride,
                                   padding_ls, dilation_ls, tower_width, n_covar)

    out = jax.block_until_ready(model(x_seq, x_covar))
    assert out.shape == (B, 1), out.shape
    assert bool(jnp.all(jnp.isfinite(out)))
    print("KERNEL_OK")
</pallas_src>

<mosaic_0001>
module attributes {stable_mosaic.version = 11 : i64} {
  func.func @kernel(%arg0: memref<32x4xf32, #tpu.memory_space<vmem>>, %arg1: memref<3x4x16xf32, #tpu.memory_space<vmem>>, %arg2: memref<3x16x32xf32, #tpu.memory_space<vmem>>, %arg3: memref<1x16xf32, #tpu.memory_space<vmem>>, %arg4: memref<1x32xf32, #tpu.memory_space<vmem>>, %arg5: memref<3x32x32xf32, #tpu.memory_space<vmem>>, %arg6: memref<3x32x32xf32, #tpu.memory_space<vmem>>, %arg7: memref<3x1x32xf32, #tpu.memory_space<vmem>>, %arg8: memref<3x1x32xf32, #tpu.memory_space<vmem>>, %arg9: memref<3x32x32xf32, #tpu.memory_space<vmem>>, %arg10: memref<3x32x32xf32, #tpu.memory_space<vmem>>, %arg11: memref<3x1x32xf32, #tpu.memory_space<vmem>>, %arg12: memref<3x1x32xf32, #tpu.memory_space<vmem>>, %arg13: memref<1x32xf32, #tpu.memory_space<vmem>>, %arg14: memref<1x1xf32, #tpu.memory_space<vmem>>, %arg15: memref<2x1xf32, #tpu.memory_space<vmem>>, %arg16: memref<1xf32, #tpu.memory_space<smem>>, %arg17: memref<2x1xf32, #tpu.memory_space<vmem>>, %arg18: memref<3x32x16xf32, #tpu.memory_space<vmem>>, %arg19: memref<3x16x32xf32, #tpu.memory_space<vmem>>, %arg20: memref<16x16xf32, #tpu.memory_space<vmem>>, %arg21: memref<8x32xf32, #tpu.memory_space<vmem>>, %arg22: memref<3x8x32xf32, #tpu.memory_space<vmem>>, %arg23: memref<8x32xf32, #tpu.memory_space<vmem>>, %arg24: memref<3x8x32xf32, #tpu.memory_space<vmem>>) attributes {dimension_semantics = [], scalar_prefetch = 0 : i64, scratch_operands = 7 : i64, tpu.core_type = #tpu.core_type<tc>} {
    %c0 = arith.constant 0 : index
    %c0_0 = arith.constant 0 : index
    %0 = vector.load %arg0[%c0, %c0_0] : memref<32x4xf32, #tpu.memory_space<vmem>>, vector<32x4xf32>
    %c0_1 = arith.constant 0 : index
    %c0_2 = arith.constant 0 : index
    %c0_3 = arith.constant 0 : index
    %1 = vector.load %arg1[%c0_1, %c0_2, %c0_3] : memref<3x4x16xf32, #tpu.memory_space<vmem>>, vector<1x4x16xf32>
    %2 = vector.shape_cast %1 : vector<1x4x16xf32> to vector<4x16xf32>
    %cst = arith.constant dense<0.000000e+00> : vector<32x16xf32>
    %3 = tpu.matmul %0, %2, %cst {dimension_numbers = #tpu.dot_dimension_numbers<[1], [0], [0], [1], [0, 0, 1, 1], [], []>} : vector<32x4xf32>, vector<4x16xf32>, vector<32x16xf32> -> vector<32x16xf32>
    %c0_4 = arith.constant 0 : index
    %c0_5 = arith.constant 0 : index
    %c0_6 = arith.constant 0 : index
    %4 = vector.load %arg18[%c0_4, %c0_5, %c0_6] : memref<3x32x16xf32, #tpu.memory_space<vmem>>, vector<1x32x16xf32>
    %5 = vector.shape_cast %4 : vector<1x32x16xf32> to vector<32x16xf32>
    %6 = vector.shape_cast %3 : vector<32x16xf32> to vector<1x32x16xf32>
    tpu.vector_store %arg18[%c0_4, %c0_5, %c0_6], %6 {strides = array<i32>} : memref<3x32x16xf32, #tpu.memory_space<vmem>>, vector<1x32x16xf32>,
    %c1 = arith.constant 1 : index
    %c0_7 = arith.constant 0 : index
    %c0_8 = arith.constant 0 : index
    %7 = vector.load %arg1[%c1, %c0_7, %c0_8] : memref<3x4x16xf32, #tpu.memory_space<vmem>>, vector<1x4x16xf32>
    %8 = vector.shape_cast %7 : vector<1x4x16xf32> to vector<4x16xf32>
    %cst_9 = arith.constant dense<0.000000e+00> : vector<32x16xf32>
    %9 = tpu.matmul %0, %8, %cst_9 {dimension_numbers = #tpu.dot_dimension_numbers<[1], [0], [0], [1], [0, 0, 1, 1], [], []>} : vector<32x4xf32>, vector<4x16xf32>, vector<32x16xf32> -> vector<32x16xf32>
    %c1_10 = arith.constant 1 : index
    %c0_11 = arith.constant 0 : index
    %c0_12 = arith.constant 0 : index
    %10 = vector.load %arg18[%c1_10, %c0_11, %c0_12] : memref<3x32x16xf32, #tpu.memory_space<vmem>>, vector<1x32x16xf32>
    %11 = vector.shape_cast %10 : vector<1x32x16xf32> to vector<32x16xf32>
    %12 = vector.shape_cast %9 : vector<32x16xf32> to vector<1x32x16xf32>
    tpu.vector_store %arg18[%c1_10, %c0_11, %c0_12], %12 {strides = array<i32>} : memref<3x32x16xf32, #tpu.memory_space<vmem>>, vector<1x32x16xf32>,
    %c2 = arith.constant 2 : index
    %c0_13 = arith.constant 0 : index
    %c0_14 = arith.constant 0 : index
    %13 = vector.load %arg1[%c2, %c0_13, %c0_14] : memref<3x4x16xf32, #tpu.memory_space<vmem>>, vector<1x4x16xf32>
    %14 = vector.shape_cast %13 : vector<1x4x16xf32> to vector<4x16xf32>
    %cst_15 = arith.constant dense<0.000000e+00> : vector<32x16xf32>
    %15 = tpu.matmul %0, %14, %cst_15 {dimension_numbers = #tpu.dot_dimension_numbers<[1], [0], [0], [1], [0, 0, 1, 1], [], []>} : vector<32x4xf32>, vector<4x16xf32>, vector<32x16xf32> -> vector<32x16xf32>
    %c2_16 = arith.constant 2 : index
    %c0_17 = arith.constant 0 : index
    %c0_18 = arith.constant 0 : index
    %16 = vector.load %arg18[%c2_16, %c0_17, %c0_18] : memref<3x32x16xf32, #tpu.memory_space<vmem>>, vector<1x32x16xf32>
    %17 = vector.shape_cast %16 : vector<1x32x16xf32> to vector<32x16xf32>
    %18 = vector.shape_cast %15 : vector<32x16xf32> to vector<1x32x16xf32>
    tpu.vector_store %arg18[%c2_16, %c0_17, %c0_18], %18 {strides = array<i32>} : memref<3x32x16xf32, #tpu.memory_space<vmem>>, vector<1x32x16xf32>,
    %c0_19 = arith.constant 0 : index
    %c0_20 = arith.constant 0 : index
    %19 = vector.load %arg3[%c0_19, %c0_20] : memref<1x16xf32, #tpu.memory_space<vmem>>, vector<1x16xf32>
    %20 = vector.shape_cast %19 : vector<1x16xf32> to vector<1x16xf32>
    %21 = vector.broadcast %20 : vector<1x16xf32> to vector<2x16xf32>
    %c1_21 = arith.constant 1 : index
    %c0_22 = arith.constant 0 : index
    %c0_23 = arith.constant 0 : index
    %22 = vector.load %arg18[%c1_21, %c0_22, %c0_23] : memref<3x32x16xf32, #tpu.memory_space<vmem>>, vector<1x2x16xf32>
    %23 = vector.shape_cast %22 : vector<1x2x16xf32> to vector<2x16xf32>
    %24 = arith.addf %21, %23 : vector<2x16xf32>
    %c2_24 = arith.constant 2 : index
    %c2_25 = arith.constant 2 : index
    %c0_26 = arith.constant 0 : index
    %25 = vector.load %arg18[%c2_24, %c2_25, %c0_26] : memref<3x32x16xf32, #tpu.memory_space<vmem>>, vector<1x2x16xf32>
    %26 = vector.shape_cast %25 : vector<1x2x16xf32> to vector<2x16xf32>
    %27 = arith.addf %24, %26 : vector<2x16xf32>
    %cst_27 = arith.constant 0.000000e+00 : f32
    %28 = vector.broadcast %cst_27 : f32 to vector<2x16xf32>
    %29 = arith.maximumf %27, %28 : vector<2x16xf32>
    %c0_28 = arith.constant 0 : index
    %c0_29 = arith.constant 0 : index
    %30 = vector.load %arg20[%c0_28, %c0_29] : memref<16x16xf32, #tpu.memory_space<vmem>>, vector<2x16xf32>
    tpu.vector_store %arg20[%c0_28, %c0_29], %29 {strides = array<i32>} : memref<16x16xf32, #tpu.memory_space<vmem>>, vector<2x16xf32>,
    %c0_30 = arith.constant 0 : index
    %c2_31 = arith.constant 2 : index
    %c0_32 = arith.constant 0 : index
    %31 = vector.load %arg18[%c0_30, %c2_31, %c0_32] : memref<3x32x16xf32, #tpu.memory_space<vmem>>, vector<1x2x16xf32>
    %32 = vector.shape_cast %31 : vector<1x2x16xf32> to vector<2x16xf32>
    %33 = arith.addf %21, %32 : vector<2x16xf32>
    %c1_33 = arith.constant 1 : index
    %c4 = arith.constant 4 : index
    %c0_34 = arith.constant 0 : index
    %34 = vector.load %arg18[%c1_33, %c4, %c0_34] : memref<3x32x16xf32, #tpu.memory_space<vmem>>, vector<1x2x16xf32>
    %35 = vector.shape_cast %34 : vector<1x2x16xf32> to vector<2x16xf32>
    %36 = arith.addf %33, %35 : vector<2x16xf32>
    %c2_35 = arith.constant 2 : index
    %c6 = arith.constant 6 : index
    %c0_36 = arith.constant 0 : index
    %37 = vector.load %arg18[%c2_35, %c6, %c0_36] : memref<3x32x16xf32, #tpu.memory_space<vmem>>, vector<1x2x16xf32>
    %38 = vector.shape_cast %37 : vector<1x2x16xf32> to vector<2x16xf32>
    %39 = arith.addf %36, %38 : vector<2x16xf32>
    %cst_37 = arith.constant 0.000000e+00 : f32
    %40 = vector.broadcast %cst_37 : f32 to vector<2x16xf32>
    %41 = arith.maximumf %39, %40 : vector<2x16xf32>
    %c2_38 = arith.constant 2 : index
    %c0_39 = arith.constant 0 : index
    %42 = vector.load %arg20[%c2_38, %c0_39] : memref<16x16xf32, #tpu.memory_space<vmem>>, vector<2x16xf32>
    tpu.vector_store %arg20[%c2_38, %c0_39], %41 {strides = array<i32>} : memref<16x16xf32, #tpu.memory_space<vmem>>, vector<2x16xf32>,
    %c0_40 = arith.constant 0 : index
    %c6_41 = arith.constant 6 : index
    %c0_42 = arith.constant 0 : index
    %43 = vector.load %arg18[%c0_40, %c6_41, %c0_42] : memref<3x32x16xf32, #tpu.memory_space<vmem>>, vector<1x2x16xf32>
    %44 = vector.shape_cast %43 : vector<1x2x16xf32> to vector<2x16xf32>
    %45 = arith.addf %21, %44 : vector<2x16xf32>
    %c1_43 = arith.constant 1 : index
    %c8 = arith.constant 8 : index
    %c0_44 = arith.constant 0 : index
    %46 = vector.load %arg18[%c1_43, %c8, %c0_44] : memref<3x32x16xf32, #tpu.memory_space<vmem>>, vector<1x2x16xf32>
    %47 = vector.shape_cast %46 : vector<1x2x16xf32> to vector<2x16xf32>
    %48 = arith.addf %45, %47 : vector<2x16xf32>
    %c2_45 = arith.constant 2 : index
    %c10 = arith.constant 10 : index
    %c0_46 = arith.constant 0 : index
    %49 = vector.load %arg18[%c2_45, %c10, %c0_46] : memref<3x32x16xf32, #tpu.memory_space<vmem>>, vector<1x2x16xf32>
    %50 = vector.shape_cast %49 : vector<1x2x16xf32> to vector<2x16xf32>
    %51 = arith.addf %48, %50 : vector<2x16xf32>
    %cst_47 = arith.constant 0.000000e+00 : f32
    %52 = vector.broadcast %cst_47 : f32 to vector<2x16xf32>
    %53 = arith.maximumf %51, %52 : vector<2x16xf32>
    %c4_48 = arith.constant 4 : index
    %c0_49 = arith.constant 0 : index
    %54 = vector.load %arg20[%c4_48, %c0_49] : memref<16x16xf32, #tpu.memory_space<vmem>>, vector<2x16xf32>
    tpu.vector_store %arg20[%c4_48, %c0_49], %53 {strides = array<i32>} : memref<16x16xf32, #tpu.memory_space<vmem>>, vector<2x16xf32>,
    %c0_50 = arith.constant 0 : index
    %c10_51 = arith.constant 10 : index
    %c0_52 = arith.constant 0 : index
    %55 = vector.load %arg18[%c0_50, %c10_51, %c0_52] : memref<3x32x16xf32, #tpu.memory_space<vmem>>, vector<1x2x16xf32>
    %56 = vector.shape_cast %55 : vector<1x2x16xf32> to vector<2x16xf32>
    %57 = arith.addf %21, %56 : vector<2x16xf32>
    %c1_53 = arith.constant 1 : index
    %c12 = arith.constant 12 : index
    %c0_54 = arith.constant 0 : index
    %58 = vector.load %arg18[%c1_53, %c12, %c0_54] : memref<3x32x16xf32, #tpu.memory_space<vmem>>, vector<1x2x16xf32>
    %59 = vector.shape_cast %58 : vector<1x2x16xf32> to vector<2x16xf32>
    %60 = arith.addf %57, %59 : vector<2x16xf32>
    %c2_55 = arith.constant 2 : index
    %c14 = arith.constant 14 : index
    %c0_56 = arith.constant 0 : index
    %61 = vector.load %arg18[%c2_55, %c14, %c0_56] : memref<3x32x16xf32, #tpu.memory_space<vmem>>, vector<1x2x16xf32>
    %62 = vector.shape_cast %61 : vector<1x2x16xf32> to vector<2x16xf32>
    %63 = arith.addf %60, %62 : vector<2x16xf32>
    %cst_57 = arith.constant 0.000000e+00 : f32
    %64 = vector.broadcast %cst_57 : f32 to vector<2x16xf32>
    %65 = arith.maximumf %63, %64 : vector<2x16xf32>
    %c6_58 = arith.constant 6 : index
    %c0_59 = arith.constant 0 : index
    %66 = vector.load %arg20[%c6_58, %c0_59] : memref<16x16xf32, #tpu.memory_space<vmem>>, vector<2x16xf32>
    tpu.vector_store %arg20[%c6_58, %c0_59], %65 {strides = array<i32>} : memref<16x16xf32, #tpu.memory_space<vmem>>, vector<2x16xf32>,
    %c0_60 = arith.constant 0 : index
    %c14_61 = arith.constant 14 : index
    %c0_62 = arith.constant 0 : index
    %67 = vector.load %arg18[%c0_60, %c14_61, %c0_62] : memref<3x32x16xf32, #tpu.memory_space<vmem>>, vector<1x2x16xf32>
    %68 = vector.shape_cast %67 : vector<1x2x16xf32> to vector<2x16xf32>
    %69 = arith.addf %21, %68 : vector<2x16xf32>
    %c1_63 = arith.constant 1 : index
    %c16 = arith.constant 16 : index
    %c0_64 = arith.constant 0 : index
    %70 = vector.load %arg18[%c1_63, %c16, %c0_64] : memref<3x32x16xf32, #tpu.memory_space<vmem>>, vector<1x2x16xf32>
    %71 = vector.shape_cast %70 : vector<1x2x16xf32> to vector<2x16xf32>
    %72 = arith.addf %69, %71 : vector<2x16xf32>
    %c2_65 = arith.constant 2 : index
    %c18 = arith.constant 18 : index
    %c0_66 = arith.constant 0 : index
    %73 = vector.load %arg18[%c2_65, %c18, %c0_66] : memref<3x32x16xf32, #tpu.memory_space<vmem>>, vector<1x2x16xf32>
    %74 = vector.shape_cast %73 : vector<1x2x16xf32> to vector<2x16xf32>
    %75 = arith.addf %72, %74 : vector<2x16xf32>
    %cst_67 = arith.constant 0.000000e+00 : f32
    %76 = vector.broadcast %cst_67 : f32 to vector<2x16xf32>
    %77 = arith.maximumf %75, %76 : vector<2x16xf32>
    %c8_68 = arith.constant 8 : index
    %c0_69 = arith.constant 0 : index
    %78 = vector.load %arg20[%c8_68, %c0_69] : memref<16x16xf32, #tpu.memory_space<vmem>>, vector<2x16xf32>
    tpu.vector_store %arg20[%c8_68, %c0_69], %77 {strides = array<i32>} : memref<16x16xf32, #tpu.memory_space<vmem>>, vector<2x16xf32>,
    %c0_70 = arith.constant 0 : index
    %c18_71 = arith.constant 18 : index
    %c0_72 = arith.constant 0 : index
    %79 = vector.load %arg18[%c0_70, %c18_71, %c0_72] : memref<3x32x16xf32, #tpu.memory_space<vmem>>, vector<1x2x16xf32>
    %80 = vector.shape_cast %79 : vector<1x2x16xf32> to vector<2x16xf32>
    %81 = arith.addf %21, %80 : vector<2x16xf32>
    %c1_73 = arith.constant 1 : index
    %c20 = arith.constant 20 : index
    %c0_74 = arith.constant 0 : index
    %82 = vector.load %arg18[%c1_73, %c20, %c0_74] : memref<3x32x16xf32, #tpu.memory_space<vmem>>, vector<1x2x16xf32>
    %83 = vector.shape_cast %82 : vector<1x2x16xf32> to vector<2x16xf32>
    %84 = arith.addf %81, %83 : vector<2x16xf32>
    %c2_75 = arith.constant 2 : index
    %c22 = arith.constant 22 : index
    %c0_76 = arith.constant 0 : index
    %85 = vector.load %arg18[%c2_75, %c22, %c0_76] : memref<3x32x16xf32, #tpu.memory_space<vmem>>, vector<1x2x16xf32>
    %86 = vector.shape_cast %85 : vector<1x2x16xf32> to vector<2x16xf32>
    %87 = arith.addf %84, %86 : vector<2x16xf32>
    %cst_77 = arith.constant 0.000000e+00 : f32
    %88 = vector.broadcast %cst_77 : f32 to vector<2x16xf32>
    %89 = arith.maximumf %87, %88 : vector<2x16xf32>
    %c10_78 = arith.constant 10 : index
    %c0_79 = arith.constant 0 : index
    %90 = vector.load %arg20[%c10_78, %c0_79] : memref<16x16xf32, #tpu.memory_space<vmem>>, vector<2x16xf32>
    tpu.vector_store %arg20[%c10_78, %c0_79], %89 {strides = array<i32>} : memref<16x16xf32, #tpu.memory_space<vmem>>, vector<2x16xf32>,
    %c0_80 = arith.constant 0 : index
    %c22_81 = arith.constant 22 : index
    %c0_82 = arith.constant 0 : index
    %91 = vector.load %arg18[%c0_80, %c22_81, %c0_82] : memref<3x32x16xf32, #tpu.memory_space<vmem>>, vector<1x2x16xf32>
    %92 = vector.shape_cast %91 : vector<1x2x16xf32> to vector<2x16xf32>
    %93 = arith.addf %21, %92 : vector<2x16xf32>
    %c1_83 = arith.constant 1 : index
    %c24 = arith.constant 24 : index
    %c0_84 = arith.constant 0 : index
    %94 = vector.load %arg18[%c1_83, %c24, %c0_84] : memref<3x32x16xf32, #tpu.memory_space<vmem>>, vector<1x2x16xf32>
    %95 = vector.shape_cast %94 : vector<1x2x16xf32> to vector<2x16xf32>
    %96 = arith.addf %93, %95 : vector<2x16xf32>
    %c2_85 = arith.constant 2 : index
    %c26 = arith.constant 26 : index
    %c0_86 = arith.constant 0 : index
    %97 = vector.load %arg18[%c2_85, %c26, %c0_86] : memref<3x32x16xf32, #tpu.memory_space<vmem>>, vector<1x2x16xf32>
    %98 = vector.shape_cast %97 : vector<1x2x16xf32> to vector<2x16xf32>
    %99 = arith.addf %96, %98 : vector<2x16xf32>
    %cst_87 = arith.constant 0.000000e+00 : f32
    %100 = vector.broadcast %cst_87 : f32 to vector<2x16xf32>
    %101 = arith.maximumf %99, %100 : vector<2x16xf32>
    %c12_88 = arith.constant 12 : index
    %c0_89 = arith.constant 0 : index
    %102 = vector.load %arg20[%c12_88, %c0_89] : memref<16x16xf32, #tpu.memory_space<vmem>>, vector<2x16xf32>
    tpu.vector_store %arg20[%c12_88, %c0_89], %101 {strides = array<i32>} : memref<16x16xf32, #tpu.memory_space<vmem>>, vector<2x16xf32>,
    %c0_90 = arith.constant 0 : index
    %c26_91 = arith.constant 26 : index
    %c0_92 = arith.constant 0 : index
    %103 = vector.load %arg18[%c0_90, %c26_91, %c0_92] : memref<3x32x16xf32, #tpu.memory_space<vmem>>, vector<1x2x16xf32>
    %104 = vector.shape_cast %103 : vector<1x2x16xf32> to vector<2x16xf32>
    %105 = arith.addf %21, %104 : vector<2x16xf32>
    %c1_93 = arith.constant 1 : index
    %c28 = arith.constant 28 : index
    %c0_94 = arith.constant 0 : index
    %106 = vector.load %arg18[%c1_93, %c28, %c0_94] : memref<3x32x16xf32, #tpu.memory_space<vmem>>, vector<1x2x16xf32>
    %107 = vector.shape_cast %106 : vector<1x2x16xf32> to vector<2x16xf32>
    %108 = arith.addf %105, %107 : vector<2x16xf32>
    %c2_95 = arith.constant 2 : index
    %c30 = arith.constant 30 : index
    %c0_96 = arith.constant 0 : index
    %109 = vector.load %arg18[%c2_95, %c30, %c0_96] : memref<3x32x16xf32, #tpu.memory_space<vmem>>, vector<1x2x16xf32>
    %110 = vector.shape_cast %109 : vector<1x2x16xf32> to vector<2x16xf32>
    %111 = arith.addf %108, %110 : vector<2x16xf32>
    %cst_97 = arith.constant 0.000000e+00 : f32
    %112 = vector.broadcast %cst_97 : f32 to vector<2x16xf32>
    %113 = arith.maximumf %111, %112 : vector<2x16xf32>
    %c14_98 = arith.constant 14 : index
    %c0_99 = arith.constant 0 : index
    %114 = vector.load %arg20[%c14_98, %c0_99] : memref<16x16xf32, #tpu.memory_space<vmem>>, vector<2x16xf32>
    tpu.vector_store %arg20[%c14_98, %c0_99], %113 {strides = array<i32>} : memref<16x16xf32, #tpu.memory_space<vmem>>, vector<2x16xf32>,
    %c0_100 = arith.constant 0 : index
    %c0_101 = arith.constant 0 : index
    %115 = vector.load %arg20[%c0_100, %c0_101] : memref<16x16xf32, #tpu.memory_space<vmem>>, vector<16x16xf32>
    %c0_102 = arith.constant 0 : index
    %c0_103 = arith.constant 0 : index
    %c0_104 = arith.constant 0 : index
    %116 = vector.load %arg2[%c0_102, %c0_103, %c0_104] : memref<3x16x32xf32, #tpu.memory_space<vmem>>, vector<1x16x32xf32>
    %117 = vector.shape_cast %116 : vector<1x16x32xf32> to vector<16x32xf32>
    %cst_105 = arith.constant dense<0.000000e+00> : vector<16x32xf32>
    %118 = tpu.matmul %115, %117, %cst_105 {dimension_numbers = #tpu.dot_dimension_numbers<[1], [0], [0], [1], [0, 0, 1, 1], [], []>} : vector<16x16xf32>, vector<16x32xf32>, vector<16x32xf32> -> vector<16x32xf32>
    %c0_106 = arith.constant 0 : index
    %c0_107 = arith.constant 0 : index
    %c0_108 = arith.constant 0 : index
    %119 = vector.load %arg19[%c0_106, %c0_107, %c0_108] : memref<3x16x32xf32, #tpu.memory_space<vmem>>, vector<1x16x32xf32>
    %120 = vector.shape_cast %119 : vector<1x16x32xf32> to vector<16x32xf32>
    %121 = vector.shape_cast %118 : vector<16x32xf32> to vector<1x16x32xf32>
    tpu.vector_store %arg19[%c0_106, %c0_107, %c0_108], %121 {strides = array<i32>} : memref<3x16x32xf32, #tpu.memory_space<vmem>>, vector<1x16x32xf32>,
    %c1_109 = arith.constant 1 : index
    %c0_110 = arith.constant 0 : index
    %c0_111 = arith.constant 0 : index
    %122 = vector.load %arg2[%c1_109, %c0_110, %c0_111] : memref<3x16x32xf32, #tpu.memory_space<vmem>>, vector<1x16x32xf32>
    %123 = vector.shape_cast %122 : vector<1x16x32xf32> to vector<16x32xf32>
    %cst_112 = arith.constant dense<0.000000e+00> : vector<16x32xf32>
    %124 = tpu.matmul %115, %123, %cst_112 {dimension_numbers = #tpu.dot_dimension_numbers<[1], [0], [0], [1], [0, 0, 1, 1], [], []>} : vector<16x16xf32>, vector<16x32xf32>, vector<16x32xf32> -> vector<16x32xf32>
    %c1_113 = arith.constant 1 : index
    %c0_114 = arith.constant 0 : index
    %c0_115 = arith.constant 0 : index
    %125 = vector.load %arg19[%c1_113, %c0_114, %c0_115] : memref<3x16x32xf32, #tpu.memory_space<vmem>>, vector<1x16x32xf32>
    %126 = vector.shape_cast %125 : vector<1x16x32xf32> to vector<16x32xf32>
    %127 = vector.shape_cast %124 : vector<16x32xf32> to vector<1x16x32xf32>
    tpu.vector_store %arg19[%c1_113, %c0_114, %c0_115], %127 {strides = array<i32>} : memref<3x16x32xf32, #tpu.memory_space<vmem>>, vector<1x16x32xf32>,
    %c2_116 = arith.constant 2 : index
    %c0_117 = arith.constant 0 : index
    %c0_118 = arith.constant 0 : index
    %128 = vector.load %arg2[%c2_116, %c0_117, %c0_118] : memref<3x16x32xf32, #tpu.memory_space<vmem>>, vector<1x16x32xf32>
    %129 = vector.shape_cast %128 : vector<1x16x32xf32> to vector<16x32xf32>
    %cst_119 = arith.constant dense<0.000000e+00> : vector<16x32xf32>
    %130 = tpu.matmul %115, %129, %cst_119 {dimension_numbers = #tpu.dot_dimension_numbers<[1], [0], [0], [1], [0, 0, 1, 1], [], []>} : vector<16x16xf32>, vector<16x32xf32>, vector<16x32xf32> -> vector<16x32xf32>
    %c2_120 = arith.constant 2 : index
    %c0_121 = arith.constant 0 : index
    %c0_122 = arith.constant 0 : index
    %131 = vector.load %arg19[%c2_120, %c0_121, %c0_122] : memref<3x16x32xf32, #tpu.memory_space<vmem>>, vector<1x16x32xf32>
    %132 = vector.shape_cast %131 : vector<1x16x32xf32> to vector<16x32xf32>
    %133 = vector.shape_cast %130 : vector<16x32xf32> to vector<1x16x32xf32>
    tpu.vector_store %arg19[%c2_120, %c0_121, %c0_122], %133 {strides = array<i32>} : memref<3x16x32xf32, #tpu.memory_space<vmem>>, vector<1x16x32xf32>,
    %c0_123 = arith.constant 0 : index
    %c0_124 = arith.constant 0 : index
    %134 = vector.load %arg4[%c0_123, %c0_124] : memref<1x32xf32, #tpu.memory_space<vmem>>, vector<1x32xf32>
    %135 = vector.shape_cast %134 : vector<1x32xf32> to vector<1x32xf32>
    %136 = vector.broadcast %135 : vector<1x32xf32> to vector<2x32xf32>
    %c1_125 = arith.constant 1 : index
    %c0_126 = arith.constant 0 : index
    %c0_127 = arith.constant 0 : index
    %137 = vector.load %arg19[%c1_125, %c0_126, %c0_127] : memref<3x16x32xf32, #tpu.memory_space<vmem>>, vector<1x2x32xf32>
    %138 = vector.shape_cast %137 : vector<1x2x32xf32> to vector<2x32xf32>
    %139 = arith.addf %136, %138 : vector<2x32xf32>
    %c2_128 = arith.constant 2 : index
    %c2_129 = arith.constant 2 : index
    %c0_130 = arith.constant 0 : index
    %140 = vector.load %arg19[%c2_128, %c2_129, %c0_130] : memref<3x16x32xf32, #tpu.memory_space<vmem>>, vector<1x2x32xf32>
    %141 = vector.shape_cast %140 : vector<1x2x32xf32> to vector<2x32xf32>
    %142 = arith.addf %139, %141 : vector<2x32xf32>
    %cst_131 = arith.constant 0.000000e+00 : f32
    %143 = vector.broadcast %cst_131 : f32 to vector<2x32xf32>
    %144 = arith.maximumf %142, %143 : vector<2x32xf32>
    %c0_132 = arith.constant 0 : index
    %c0_133 = arith.constant 0 : index
    %145 = vector.load %arg21[%c0_132, %c0_133] : memref<8x32xf32, #tpu.memory_space<vmem>>, vector<2x32xf32>
    tpu.vector_store %arg21[%c0_132, %c0_133], %144 {strides = array<i32>} : memref<8x32xf32, #tpu.memory_space<vmem>>, vector<2x32xf32>,
    %c0_134 = arith.constant 0 : index
    %c2_135 = arith.constant 2 : index
    %c0_136 = arith.constant 0 : index
    %146 = vector.load %arg19[%c0_134, %c2_135, %c0_136] : memref<3x16x32xf32, #tpu.memory_space<vmem>>, vector<1x2x32xf32>
    %147 = vector.shape_cast %146 : vector<1x2x32xf32> to vector<2x32xf32>
    %148 = arith.addf %136, %147 : vector<2x32xf32>
    %c1_137 = arith.constant 1 : index
    %c4_138 = arith.constant 4 : index
    %c0_139 = arith.constant 0 : index
    %149 = vector.load %arg19[%c1_137, %c4_138, %c0_139] : memref<3x16x32xf32, #tpu.memory_space<vmem>>, vector<1x2x32xf32>
    %150 = vector.shape_cast %149 : vector<1x2x32xf32> to vector<2x32xf32>
    %151 = arith.addf %148, %150 : vector<2x32xf32>
    %c2_140 = arith.constant 2 : index
    %c6_141 = arith.constant 6 : index
    %c0_142 = arith.constant 0 : index
    %152 = vector.load %arg19[%c2_140, %c6_141, %c0_142] : memref<3x16x32xf32, #tpu.memory_space<vmem>>, vector<1x2x32xf32>
    %153 = vector.shape_cast %152 : vector<1x2x32xf32> to vector<2x32xf32>
    %154 = arith.addf %151, %153 : vector<2x32xf32>
    %cst_143 = arith.constant 0.000000e+00 : f32
    %155 = vector.broadcast %cst_143 : f32 to vector<2x32xf32>
    %156 = arith.maximumf %154, %155 : vector<2x32xf32>
    %c2_144 = arith.constant 2 : index
    %c0_145 = arith.constant 0 : index
    %157 = vector.load %arg21[%c2_144, %c0_145] : memref<8x32xf32, #tpu.memory_space<vmem>>, vector<2x32xf32>
    tpu.vector_store %arg21[%c2_144, %c0_145], %156 {strides = array<i32>} : memref<8x32xf32, #tpu.memory_space<vmem>>, vector<2x32xf32>,
    %c0_146 = arith.constant 0 : index
    %c6_147 = arith.constant 6 : index
    %c0_148 = arith.constant 0 : index
    %158 = vector.load %arg19[%c0_146, %c6_147, %c0_148] : memref<3x16x32xf32, #tpu.memory_space<vmem>>, vector<1x2x32xf32>
    %159 = vector.shape_cast %158 : vector<1x2x32xf32> to vector<2x32xf32>
    %160 = arith.addf %136, %159 : vector<2x32xf32>
    %c1_149 = arith.constant 1 : index
    %c8_150 = arith.constant 8 : index
    %c0_151 = arith.constant 0 : index
    %161 = vector.load %arg19[%c1_149, %c8_150, %c0_151] : memref<3x16x32xf32, #tpu.memory_space<vmem>>, vector<1x2x32xf32>
    %162 = vector.shape_cast %161 : vector<1x2x32xf32> to vector<2x32xf32>
    %163 = arith.addf %160, %162 : vector<2x32xf32>
    %c2_152 = arith.constant 2 : index
    %c10_153 = arith.constant 10 : index
    %c0_154 = arith.constant 0 : index
    %164 = vector.load %arg19[%c2_152, %c10_153, %c0_154] : memref<3x16x32xf32, #tpu.memory_space<vmem>>, vector<1x2x32xf32>
    %165 = vector.shape_cast %164 : vector<1x2x32xf32> to vector<2x32xf32>
    %166 = arith.addf %163, %165 : vector<2x32xf32>
    %cst_155 = arith.constant 0.000000e+00 : f32
    %167 = vector.broadcast %cst_155 : f32 to vector<2x32xf32>
    %168 = arith.maximumf %166, %167 : vector<2x32xf32>
    %c4_156 = arith.constant 4 : index
    %c0_157 = arith.constant 0 : index
    %169 = vector.load %arg21[%c4_156, %c0_157] : memref<8x32xf32, #tpu.memory_space<vmem>>, vector<2x32xf32>
    tpu.vector_store %arg21[%c4_156, %c0_157], %168 {strides = array<i32>} : memref<8x32xf32, #tpu.memory_space<vmem>>, vector<2x32xf32>,
    %c0_158 = arith.constant 0 : index
    %c10_159 = arith.constant 10 : index
    %c0_160 = arith.constant 0 : index
    %170 = vector.load %arg19[%c0_158, %c10_159, %c0_160] : memref<3x16x32xf32, #tpu.memory_space<vmem>>, vector<1x2x32xf32>
    %171 = vector.shape_cast %170 : vector<1x2x32xf32> to vector<2x32xf32>
    %172 = arith.addf %136, %171 : vector<2x32xf32>
    %c1_161 = arith.constant 1 : index
    %c12_162 = arith.constant 12 : index
    %c0_163 = arith.constant 0 : index
    %173 = vector.load %arg19[%c1_161, %c12_162, %c0_163] : memref<3x16x32xf32, #tpu.memory_space<vmem>>, vector<1x2x32xf32>
    %174 = vector.shape_cast %173 : vector<1x2x32xf32> to vector<2x32xf32>
    %175 = arith.addf %172, %174 : vector<2x32xf32>
    %c2_164 = arith.constant 2 : index
    %c14_165 = arith.constant 14 : index
    %c0_166 = arith.constant 0 : index
    %176 = vector.load %arg19[%c2_164, %c14_165, %c0_166] : memref<3x16x32xf32, #tpu.memory_space<vmem>>, vector<1x2x32xf32>
    %177 = vector.shape_cast %176 : vector<1x2x32xf32> to vector<2x32xf32>
    %178 = arith.addf %175, %177 : vector<2x32xf32>
    %cst_167 = arith.constant 0.000000e+00 : f32
    %179 = vector.broadcast %cst_167 : f32 to vector<2x32xf32>
    %180 = arith.maximumf %178, %179 : vector<2x32xf32>
    %c6_168 = arith.constant 6 : index
    %c0_169 = arith.constant 0 : index
    %181 = vector.load %arg21[%c6_168, %c0_169] : memref<8x32xf32, #tpu.memory_space<vmem>>, vector<2x32xf32>
    tpu.vector_store %arg21[%c6_168, %c0_169], %180 {strides = array<i32>} : memref<8x32xf32, #tpu.memory_space<vmem>>, vector<2x32xf32>,
    %c0_170 = arith.constant 0 : index
    %c0_171 = arith.constant 0 : index
    %182 = vector.load %arg21[%c0_170, %c0_171] : memref<8x32xf32, #tpu.memory_space<vmem>>, vector<8x32xf32>
    %c0_172 = arith.constant 0 : index
    %c0_173 = arith.constant 0 : index
    %c0_174 = arith.constant 0 : index
    %183 = vector.load %arg5[%c0_172, %c0_173, %c0_174] : memref<3x32x32xf32, #tpu.memory_space<vmem>>, vector<1x32x32xf32>
    %184 = vector.shape_cast %183 : vector<1x32x32xf32> to vector<32x32xf32>
    %cst_175 = arith.constant dense<0.000000e+00> : vector<8x32xf32>
    %185 = tpu.matmul %182, %184, %cst_175 {dimension_numbers = #tpu.dot_dimension_numbers<[1], [0], [0], [1], [0, 0, 1, 1], [], []>} : vector<8x32xf32>, vector<32x32xf32>, vector<8x32xf32> -> vector<8x32xf32>
    %c0_176 = arith.constant 0 : index
    %c0_177 = arith.constant 0 : index
    %c0_178 = arith.constant 0 : index
    %186 = vector.load %arg7[%c0_176, %c0_177, %c0_178] : memref<3x1x32xf32, #tpu.memory_space<vmem>>, vector<1x1x32xf32>
    %187 = vector.shape_cast %186 : vector<1x1x32xf32> to vector<1x32xf32>
    %188 = vector.broadcast %187 : vector<1x32xf32> to vector<8x32xf32>
    %189 = arith.addf %185, %188 : vector<8x32xf32>
    %c0_179 = arith.constant 0 : index
    %c0_180 = arith.constant 0 : index
    %c0_181 = arith.constant 0 : index
    %190 = vector.load %arg22[%c0_179, %c0_180, %c0_181] : memref<3x8x32xf32, #tpu.memory_space<vmem>>, vector<1x8x32xf32>
    %191 = vector.shape_cast %190 : vector<1x8x32xf32> to vector<8x32xf32>
    %192 = vector.shape_cast %189 : vector<8x32xf32> to vector<1x8x32xf32>
    tpu.vector_store %arg22[%c0_179, %c0_180, %c0_181], %192 {strides = array<i32>} : memref<3x8x32xf32, #tpu.memory_space<vmem>>, vector<1x8x32xf32>,
    %c1_182 = arith.constant 1 : index
    %c0_183 = arith.constant 0 : index
    %c0_184 = arith.constant 0 : index
    %193 = vector.load %arg5[%c1_182, %c0_183, %c0_184] : memref<3x32x32xf32, #tpu.memory_space<vmem>>, vector<1x32x32xf32>
    %194 = vector.shape_cast %193 : vector<1x32x32xf32> to vector<32x32xf32>
    %cst_185 = arith.constant dense<0.000000e+00> : vector<8x32xf32>
    %195 = tpu.matmul %182, %194, %cst_185 {dimension_numbers = #tpu.dot_dimension_numbers<[1], [0], [0], [1], [0, 0, 1, 1], [], []>} : vector<8x32xf32>, vector<32x32xf32>, vector<8x32xf32> -> vector<8x32xf32>
    %c1_186 = arith.constant 1 : index
    %c0_187 = arith.constant 0 : index
    %c0_188 = arith.constant 0 : index
    %196 = vector.load %arg7[%c1_186, %c0_187, %c0_188] : memref<3x1x32xf32, #tpu.memory_space<vmem>>, vector<1x1x32xf32>
    %197 = vector.shape_cast %196 : vector<1x1x32xf32> to vector<1x32xf32>
    %198 = vector.broadcast %197 : vector<1x32xf32> to vector<8x32xf32>
    %199 = arith.addf %195, %198 : vector<8x32xf32>
    %c1_189 = arith.constant 1 : index
    %c0_190 = arith.constant 0 : index
    %c0_191 = arith.constant 0 : index
    %200 = vector.load %arg22[%c1_189, %c0_190, %c0_191] : memref<3x8x32xf32, #tpu.memory_space<vmem>>, vector<1x8x32xf32>
    %201 = vector.shape_cast %200 : vector<1x8x32xf32> to vector<8x32xf32>
    %202 = vector.shape_cast %199 : vector<8x32xf32> to vector<1x8x32xf32>
    tpu.vector_store %arg22[%c1_189, %c0_190, %c0_191], %202 {strides = array<i32>} : memref<3x8x32xf32, #tpu.memory_space<vmem>>, vector<1x8x32xf32>,
    %c2_192 = arith.constant 2 : index
    %c0_193 = arith.constant 0 : index
    %c0_194 = arith.constant 0 : index
    %203 = vector.load %arg5[%c2_192, %c0_193, %c0_194] : memref<3x32x32xf32, #tpu.memory_space<vmem>>, vector<1x32x32xf32>
    %204 = vector.shape_cast %203 : vector<1x32x32xf32> to vector<32x32xf32>
    %cst_195 = arith.constant dense<0.000000e+00> : vector<8x32xf32>
    %205 = tpu.matmul %182, %204, %cst_195 {dimension_numbers = #tpu.dot_dimension_numbers<[1], [0], [0], [1], [0, 0, 1, 1], [], []>} : vector<8x32xf32>, vector<32x32xf32>, vector<8x32xf32> -> vector<8x32xf32>
    %c2_196 = arith.constant 2 : index
    %c0_197 = arith.constant 0 : index
    %c0_198 = arith.constant 0 : index
    %206 = vector.load %arg7[%c2_196, %c0_197, %c0_198] : memref<3x1x32xf32, #tpu.memory_space<vmem>>, vector<1x1x32xf32>
    %207 = vector.shape_cast %206 : vector<1x1x32xf32> to vector<1x32xf32>
    %208 = vector.broadcast %207 : vector<1x32xf32> to vector<8x32xf32>
    %209 = arith.addf %205, %208 : vector<8x32xf32>
    %c2_199 = arith.constant 2 : index
    %c0_200 = arith.constant 0 : index
    %c0_201 = arith.constant 0 : index
    %210 = vector.load %arg22[%c2_199, %c0_200, %c0_201] : memref<3x8x32xf32, #tpu.memory_space<vmem>>, vector<1x8x32xf32>
    %211 = vector.shape_cast %210 : vector<1x8x32xf32> to vector<8x32xf32>
    %212 = vector.shape_cast %209 : vector<8x32xf32> to vector<1x8x32xf32>
    tpu.vector_store %arg22[%c2_199, %c0_200, %c0_201], %212 {strides = array<i32>} : memref<3x8x32xf32, #tpu.memory_space<vmem>>, vector<1x8x32xf32>,
    %c0_202 = arith.constant 0 : index
    %c0_203 = arith.constant 0 : index
    %c0_204 = arith.constant 0 : index
    %213 = vector.load %arg6[%c0_202, %c0_203, %c0_204] : memref<3x32x32xf32, #tpu.memory_space<vmem>>, vector<1x32x32xf32>
    %214 = vector.shape_cast %213 : vector<1x32x32xf32> to vector<32x32xf32>
    %c1_205 = arith.constant 1 : index
    %c0_206 = arith.constant 0 : index
    %c0_207 = arith.constant 0 : index
    %215 = vector.load %arg6[%c1_205, %c0_206, %c0_207] : memref<3x32x32xf32, #tpu.memory_space<vmem>>, vector<1x32x32xf32>
    %216 = vector.shape_cast %215 : vector<1x32x32xf32> to vector<32x32xf32>
    %c2_208 = arith.constant 2 : index
    %c0_209 = arith.constant 0 : index
    %c0_210 = arith.constant 0 : index
    %217 = vector.load %arg6[%c2_208, %c0_209, %c0_210] : memref<3x32x32xf32, #tpu.memory_space<vmem>>, vector<1x32x32xf32>
    %218 = vector.shape_cast %217 : vector<1x32x32xf32> to vector<32x32xf32>
    %c0_211 = arith.constant 0 : index
    %c0_212 = arith.constant 0 : index
    %c0_213 = arith.constant 0 : index
    %219 = vector.load %arg8[%c0_211, %c0_212, %c0_213] : memref<3x1x32xf32, #tpu.memory_space<vmem>>, vector<1x1x32xf32>
    %220 = vector.shape_cast %219 : vector<1x1x32xf32> to vector<1x32xf32>
    %221 = vector.shape_cast %220 : vector<1x32xf32> to vector<1x32xf32>
    %222 = vector.broadcast %221 : vector<1x32xf32> to vector<2x32xf32>
    %c1_214 = arith.constant 1 : index
    %c0_215 = arith.constant 0 : index
    %c0_216 = arith.constant 0 : index
    %223 = vector.load %arg8[%c1_214, %c0_215, %c0_216] : memref<3x1x32xf32, #tpu.memory_space<vmem>>, vector<1x1x32xf32>
    %224 = vector.shape_cast %223 : vector<1x1x32xf32> to vector<1x32xf32>
    %225 = vector.shape_cast %224 : vector<1x32xf32> to vector<1x32xf32>
    %226 = vector.broadcast %225 : vector<1x32xf32> to vector<2x32xf32>
    %c2_217 = arith.constant 2 : index
    %c0_218 = arith.constant 0 : index
    %c0_219 = arith.constant 0 : index
    %227 = vector.load %arg8[%c2_217, %c0_218, %c0_219] : memref<3x1x32xf32, #tpu.memory_space<vmem>>, vector<1x1x32xf32>
    %228 = vector.shape_cast %227 : vector<1x1x32xf32> to vector<1x32xf32>
    %229 = vector.shape_cast %228 : vector<1x32xf32> to vector<1x32xf32>
    %230 = vector.broadcast %229 : vector<1x32xf32> to vector<2x32xf32>
    %cst_220 = arith.constant 0.000000e+00 : f32
    %231 = vector.broadcast %cst_220 : f32 to vector<2x32xf32>
    %c0_221 = arith.constant 0 : index
    %c0_222 = arith.constant 0 : index
    %c0_223 = arith.constant 0 : index
    %232 = vector.load %arg22[%c0_221, %c0_222, %c0_223] : memref<3x8x32xf32, #tpu.memory_space<vmem>>, vector<1x2x32xf32>
    %233 = vector.shape_cast %232 : vector<1x2x32xf32> to vector<2x32xf32>
    %c1_224 = arith.constant 1 : index
    %c0_225 = arith.constant 0 : index
    %c0_226 = arith.constant 0 : index
    %234 = vector.load %arg22[%c1_224, %c0_225, %c0_226] : memref<3x8x32xf32, #tpu.memory_space<vmem>>, vector<1x2x32xf32>
    %235 = vector.shape_cast %234 : vector<1x2x32xf32> to vector<2x32xf32>
    %c2_227 = arith.constant 2 : index
    %c0_228 = arith.constant 0 : index
    %c0_229 = arith.constant 0 : index
    %236 = vector.load %arg22[%c2_227, %c0_228, %c0_229] : memref<3x8x32xf32, #tpu.memory_space<vmem>>, vector<1x2x32xf32>
    %237 = vector.shape_cast %236 : vector<1x2x32xf32> to vector<2x32xf32>
    %cst_230 = arith.constant dense<0.000000e+00> : vector<2x32xf32>
    %238 = tpu.matmul %231, %214, %cst_230 {dimension_numbers = #tpu.dot_dimension_numbers<[1], [0], [0], [1], [0, 0, 1, 1], [], []>} : vector<2x32xf32>, vector<32x32xf32>, vector<2x32xf32> -> vector<2x32xf32>
    %239 = arith.addf %238, %222 : vector<2x32xf32>
    %cst_231 = arith.constant dense<0.000000e+00> : vector<2x32xf32>
    %240 = tpu.matmul %231, %216, %cst_231 {dimension_numbers = #tpu.dot_dimension_numbers<[1], [0], [0], [1], [0, 0, 1, 1], [], []>} : vector<2x32xf32>, vector<32x32xf32>, vector<2x32xf32> -> vector<2x32xf32>
    %241 = arith.addf %240, %226 : vector<2x32xf32>
    %cst_232 = arith.constant dense<0.000000e+00> : vector<2x32xf32>
    %242 = tpu.matmul %231, %218, %cst_232 {dimension_numbers = #tpu.dot_dimension_numbers<[1], [0], [0], [1], [0, 0, 1, 1], [], []>} : vector<2x32xf32>, vector<32x32xf32>, vector<2x32xf32> -> vector<2x32xf32>
    %243 = arith.addf %242, %230 : vector<2x32xf32>
    %244 = arith.addf %233, %239 : vector<2x32xf32>
    %245 = arith.negf %244 : vector<2x32xf32>
    %246 = math.exp %245 : vector<2x32xf32>
    %cst_233 = arith.constant 1.000000e+00 : f32
    %247 = vector.broadcast %cst_233 : f32 to vector<2x32xf32>
    %248 = arith.addf %247, %246 : vector<2x32xf32>
    %249 = arith.divf %247, %248 : vector<2x32xf32>
    %250 = arith.addf %235, %241 : vector<2x32xf32>
    %251 = arith.negf %250 : vector<2x32xf32>
    %252 = math.exp %251 : vector<2x32xf32>
    %cst_234 = arith.constant 1.000000e+00 : f32
    %253 = vector.broadcast %cst_234 : f32 to vector<2x32xf32>
    %254 = arith.addf %253, %252 : vector<2x32xf32>
    %255 = arith.divf %253, %254 : vector<2x32xf32>
    %256 = arith.mulf %249, %243 : vector<2x32xf32>
    %257 = arith.addf %237, %256 : vector<2x32xf32>
    %258 = math.tanh %257 : vector<2x32xf32>
    %cst_235 = arith.constant 1.000000e+00 : f32
    %259 = vector.broadcast %cst_235 : f32 to vector<2x32xf32>
    %260 = arith.subf %259, %255 : vector<2x32xf32>
    %261 = arith.mulf %260, %258 : vector<2x32xf32>
    %262 = arith.mulf %255, %231 : vector<2x32xf32>
    %263 = arith.addf %261, %262 : vector<2x32xf32>
    %c0_236 = arith.constant 0 : index
    %c0_237 = arith.constant 0 : index
    %264 = vector.load %arg23[%c0_236, %c0_237] : memref<8x32xf32, #tpu.memory_space<vmem>>, vector<2x32xf32>
    tpu.vector_store %arg23[%c0_236, %c0_237], %263 {strides = array<i32>} : memref<8x32xf32, #tpu.memory_space<vmem>>, vector<2x32xf32>,
    %c0_238 = arith.constant 0 : index
    %c2_239 = arith.constant 2 : index
    %c0_240 = arith.constant 0 : index
    %265 = vector.load %arg22[%c0_238, %c2_239, %c0_240] : memref<3x8x32xf32, #tpu.memory_space<vmem>>, vector<1x2x32xf32>
    %266 = vector.shape_cast %265 : vector<1x2x32xf32> to vector<2x32xf32>
    %c1_241 = arith.constant 1 : index
    %c2_242 = arith.constant 2 : index
    %c0_243 = arith.constant 0 : index
    %267 = vector.load %arg22[%c1_241, %c2_242, %c0_243] : memref<3x8x32xf32, #tpu.memory_space<vmem>>, vector<1x2x32xf32>
    %268 = vector.shape_cast %267 : vector<1x2x32xf32> to vector<2x32xf32>
    %c2_244 = arith.constant 2 : index
    %c2_245 = arith.constant 2 : index
    %c0_246 = arith.constant 0 : index
    %269 = vector.load %arg22[%c2_244, %c2_245, %c0_246] : memref<3x8x32xf32, #tpu.memory_space<vmem>>, vector<1x2x32xf32>
    %270 = vector.shape_cast %269 : vector<1x2x32xf32> to vector<2x32xf32>
    %cst_247 = arith.constant dense<0.000000e+00> : vector<2x32xf32>
    %271 = tpu.matmul %263, %214, %cst_247 {dimension_numbers = #tpu.dot_dimension_numbers<[1], [0], [0], [1], [0, 0, 1, 1], [], []>} : vector<2x32xf32>, vector<32x32xf32>, vector<2x32xf32> -> vector<2x32xf32>
    %272 = arith.addf %271, %222 : vector<2x32xf32>
    %cst_248 = arith.constant dense<0.000000e+00> : vector<2x32xf32>
    %273 = tpu.matmul %263, %216, %cst_248 {dimension_numbers = #tpu.dot_dimension_numbers<[1], [0], [0], [1], [0, 0, 1, 1], [], []>} : vector<2x32xf32>, vector<32x32xf32>, vector<2x32xf32> -> vector<2x32xf32>
    %274 = arith.addf %273, %226 : vector<2x32xf32>
    %cst_249 = arith.constant dense<0.000000e+00> : vector<2x32xf32>
    %275 = tpu.matmul %263, %218, %cst_249 {dimension_numbers = #tpu.dot_dimension_numbers<[1], [0], [0], [1], [0, 0, 1, 1], [], []>} : vector<2x32xf32>, vector<32x32xf32>, vector<2x32xf32> -> vector<2x32xf32>
    %276 = arith.addf %275, %230 : vector<2x32xf32>
    %277 = arith.addf %266, %272 : vector<2x32xf32>
    %278 = arith.negf %277 : vector<2x32xf32>
    %279 = math.exp %278 : vector<2x32xf32>
    %cst_250 = arith.constant 1.000000e+00 : f32
    %280 = vector.broadcast %cst_250 : f32 to vector<2x32xf32>
    %281 = arith.addf %280, %279 : vector<2x32xf32>
    %282 = arith.divf %280, %281 : vector<2x32xf32>
    %283 = arith.addf %268, %274 : vector<2x32xf32>
    %284 = arith.negf %283 : vector<2x32xf32>
    %285 = math.exp %284 : vector<2x32xf32>
    %cst_251 = arith.constant 1.000000e+00 : f32
    %286 = vector.broadcast %cst_251 : f32 to vector<2x32xf32>
    %287 = arith.addf %286, %285 : vector<2x32xf32>
    %288 = arith.divf %286, %287 : vector<2x32xf32>
    %289 = arith.mulf %282, %276 : vector<2x32xf32>
    %290 = arith.addf %270, %289 : vector<2x32xf32>
    %291 = math.tanh %290 : vector<2x32xf32>
    %cst_252 = arith.constant 1.000000e+00 : f32
    %292 = vector.broadcast %cst_252 : f32 to vector<2x32xf32>
    %293 = arith.subf %292, %288 : vector<2x32xf32>
    %294 = arith.mulf %293, %291 : vector<2x32xf32>
    %295 = arith.mulf %288, %263 : vector<2x32xf32>
    %296 = arith.addf %294, %295 : vector<2x32xf32>
    %c2_253 = arith.constant 2 : index
    %c0_254 = arith.constant 0 : index
    %297 = vector.load %arg23[%c2_253, %c0_254] : memref<8x32xf32, #tpu.memory_space<vmem>>, vector<2x32xf32>
    tpu.vector_store %arg23[%c2_253, %c0_254], %296 {strides = array<i32>} : memref<8x32xf32, #tpu.memory_space<vmem>>, vector<2x32xf32>,
    %c0_255 = arith.constant 0 : index
    %c4_256 = arith.constant 4 : index
    %c0_257 = arith.constant 0 : index
    %298 = vector.load %arg22[%c0_255, %c4_256, %c0_257] : memref<3x8x32xf32, #tpu.memory_space<vmem>>, vector<1x2x32xf32>
    %299 = vector.shape_cast %298 : vector<1x2x32xf32> to vector<2x32xf32>
    %c1_258 = arith.constant 1 : index
    %c4_259 = arith.constant 4 : index
    %c0_260 = arith.constant 0 : index
    %300 = vector.load %arg22[%c1_258, %c4_259, %c0_260] : memref<3x8x32xf32, #tpu.memory_space<vmem>>, vector<1x2x32xf32>
    %301 = vector.shape_cast %300 : vector<1x2x32xf32> to vector<2x32xf32>
    %c2_261 = arith.constant 2 : index
    %c4_262 = arith.constant 4 : index
    %c0_263 = arith.constant 0 : index
    %302 = vector.load %arg22[%c2_261, %c4_262, %c0_263] : memref<3x8x32xf32, #tpu.memory_space<vmem>>, vector<1x2x32xf32>
    %303 = vector.shape_cast %302 : vector<1x2x32xf32> to vector<2x32xf32>
    %cst_264 = arith.constant dense<0.000000e+00> : vector<2x32xf32>
    %304 = tpu.matmul %296, %214, %cst_264 {dimension_numbers = #tpu.dot_dimension_numbers<[1], [0], [0], [1], [0, 0, 1, 1], [], []>} : vector<2x32xf32>, vector<32x32xf32>, vector<2x32xf32> -> vector<2x32xf32>
    %305 = arith.addf %304, %222 : vector<2x32xf32>
    %cst_265 = arith.constant dense<0.000000e+00> : vector<2x32xf32>
    %306 = tpu.matmul %296, %216, %cst_265 {dimension_numbers = #tpu.dot_dimension_numbers<[1], [0], [0], [1], [0, 0, 1, 1], [], []>} : vector<2x32xf32>, vector<32x32xf32>, vector<2x32xf32> -> vector<2x32xf32>
    %307 = arith.addf %306, %226 : vector<2x32xf32>
    %cst_266 = arith.constant dense<0.000000e+00> : vector<2x32xf32>
    %308 = tpu.matmul %296, %218, %cst_266 {dimension_numbers = #tpu.dot_dimension_numbers<[1], [0], [0], [1], [0, 0, 1, 1], [], []>} : vector<2x32xf32>, vector<32x32xf32>, vector<2x32xf32> -> vector<2x32xf32>
    %309 = arith.addf %308, %230 : vector<2x32xf32>
    %310 = arith.addf %299, %305 : vector<2x32xf32>
    %311 = arith.negf %310 : vector<2x32xf32>
    %312 = math.exp %311 : vector<2x32xf32>
    %cst_267 = arith.constant 1.000000e+00 : f32
    %313 = vector.broadcast %cst_267 : f32 to vector<2x32xf32>
    %314 = arith.addf %313, %312 : vector<2x32xf32>
    %315 = arith.divf %313, %314 : vector<2x32xf32>
    %316 = arith.addf %301, %307 : vector<2x32xf32>
    %317 = arith.negf %316 : vector<2x32xf32>
    %318 = math.exp %317 : vector<2x32xf32>
    %cst_268 = arith.constant 1.000000e+00 : f32
    %319 = vector.broadcast %cst_268 : f32 to vector<2x32xf32>
    %320 = arith.addf %319, %318 : vector<2x32xf32>
    %321 = arith.divf %319, %320 : vector<2x32xf32>
    %322 = arith.mulf %315, %309 : vector<2x32xf32>
    %323 = arith.addf %303, %322 : vector<2x32xf32>
    %324 = math.tanh %323 : vector<2x32xf32>
    %cst_269 = arith.constant 1.000000e+00 : f32
    %325 = vector.broadcast %cst_269 : f32 to vector<2x32xf32>
    %326 = arith.subf %325, %321 : vector<2x32xf32>
    %327 = arith.mulf %326, %324 : vector<2x32xf32>
    %328 = arith.mulf %321, %296 : vector<2x32xf32>
    %329 = arith.addf %327, %328 : vector<2x32xf32>
    %c4_270 = arith.constant 4 : index
    %c0_271 = arith.constant 0 : index
    %330 = vector.load %arg23[%c4_270, %c0_271] : memref<8x32xf32, #tpu.memory_space<vmem>>, vector<2x32xf32>
    tpu.vector_store %arg23[%c4_270, %c0_271], %329 {strides = array<i32>} : memref<8x32xf32, #tpu.memory_space<vmem>>, vector<2x32xf32>,
    %c0_272 = arith.constant 0 : index
    %c6_273 = arith.constant 6 : index
    %c0_274 = arith.constant 0 : index
    %331 = vector.load %arg22[%c0_272, %c6_273, %c0_274] : memref<3x8x32xf32, #tpu.memory_space<vmem>>, vector<1x2x32xf32>
    %332 = vector.shape_cast %331 : vector<1x2x32xf32> to vector<2x32xf32>
    %c1_275 = arith.constant 1 : index
    %c6_276 = arith.constant 6 : index
    %c0_277 = arith.constant 0 : index
    %333 = vector.load %arg22[%c1_275, %c6_276, %c0_277] : memref<3x8x32xf32, #tpu.memory_space<vmem>>, vector<1x2x32xf32>
    %334 = vector.shape_cast %333 : vector<1x2x32xf32> to vector<2x32xf32>
    %c2_278 = arith.constant 2 : index
    %c6_279 = arith.constant 6 : index
    %c0_280 = arith.constant 0 : index
    %335 = vector.load %arg22[%c2_278, %c6_279, %c0_280] : memref<3x8x32xf32, #tpu.memory_space<vmem>>, vector<1x2x32xf32>
    %336 = vector.shape_cast %335 : vector<1x2x32xf32> to vector<2x32xf32>
    %cst_281 = arith.constant dense<0.000000e+00> : vector<2x32xf32>
    %337 = tpu.matmul %329, %214, %cst_281 {dimension_numbers = #tpu.dot_dimension_numbers<[1], [0], [0], [1], [0, 0, 1, 1], [], []>} : vector<2x32xf32>, vector<32x32xf32>, vector<2x32xf32> -> vector<2x32xf32>
    %338 = arith.addf %337, %222 : vector<2x32xf32>
    %cst_282 = arith.constant dense<0.000000e+00> : vector<2x32xf32>
    %339 = tpu.matmul %329, %216, %cst_282 {dimension_numbers = #tpu.dot_dimension_numbers<[1], [0], [0], [1], [0, 0, 1, 1], [], []>} : vector<2x32xf32>, vector<32x32xf32>, vector<2x32xf32> -> vector<2x32xf32>
    %340 = arith.addf %339, %226 : vector<2x32xf32>
    %cst_283 = arith.constant dense<0.000000e+00> : vector<2x32xf32>
    %341 = tpu.matmul %329, %218, %cst_283 {dimension_numbers = #tpu.dot_dimension_numbers<[1], [0], [0], [1], [0, 0, 1, 1], [], []>} : vector<2x32xf32>, vector<32x32xf32>, vector<2x32xf32> -> vector<2x32xf32>
    %342 = arith.addf %341, %230 : vector<2x32xf32>
    %343 = arith.addf %332, %338 : vector<2x32xf32>
    %344 = arith.negf %343 : vector<2x32xf32>
    %345 = math.exp %344 : vector<2x32xf32>
    %cst_284 = arith.constant 1.000000e+00 : f32
    %346 = vector.broadcast %cst_284 : f32 to vector<2x32xf32>
    %347 = arith.addf %346, %345 : vector<2x32xf32>
    %348 = arith.divf %346, %347 : vector<2x32xf32>
    %349 = arith.addf %334, %340 : vector<2x32xf32>
    %350 = arith.negf %349 : vector<2x32xf32>
    %351 = math.exp %350 : vector<2x32xf32>
    %cst_285 = arith.constant 1.000000e+00 : f32
    %352 = vector.broadcast %cst_285 : f32 to vector<2x32xf32>
    %353 = arith.addf %352, %351 : vector<2x32xf32>
    %354 = arith.divf %352, %353 : vector<2x32xf32>
    %355 = arith.mulf %348, %342 : vector<2x32xf32>
    %356 = arith.addf %336, %355 : vector<2x32xf32>
    %357 = math.tanh %356 : vector<2x32xf32>
    %cst_286 = arith.constant 1.000000e+00 : f32
    %358 = vector.broadcast %cst_286 : f32 to vector<2x32xf32>
    %359 = arith.subf %358, %354 : vector<2x32xf32>
    %360 = arith.mulf %359, %357 : vector<2x32xf32>
    %361 = arith.mulf %354, %329 : vector<2x32xf32>
    %362 = arith.addf %360, %361 : vector<2x32xf32>
    %c6_287 = arith.constant 6 : index
    %c0_288 = arith.constant 0 : index
    %363 = vector.load %arg23[%c6_287, %c0_288] : memref<8x32xf32, #tpu.memory_space<vmem>>, vector<2x32xf32>
    tpu.vector_store %arg23[%c6_287, %c0_288], %362 {strides = array<i32>} : memref<8x32xf32, #tpu.memory_space<vmem>>, vector<2x32xf32>,
    %c0_289 = arith.constant 0 : index
    %c0_290 = arith.constant 0 : index
    %364 = vector.load %arg23[%c0_289, %c0_290] : memref<8x32xf32, #tpu.memory_space<vmem>>, vector<8x32xf32>
    %c0_291 = arith.constant 0 : index
    %c0_292 = arith.constant 0 : index
    %c0_293 = arith.constant 0 : index
    %365 = vector.load %arg9[%c0_291, %c0_292, %c0_293] : memref<3x32x32xf32, #tpu.memory_space<vmem>>, vector<1x32x32xf32>
    %366 = vector.shape_cast %365 : vector<1x32x32xf32> to vector<32x32xf32>
    %cst_294 = arith.constant dense<0.000000e+00> : vector<8x32xf32>
    %367 = tpu.matmul %364, %366, %cst_294 {dimension_numbers = #tpu.dot_dimension_numbers<[1], [0], [0], [1], [0, 0, 1, 1], [], []>} : vector<8x32xf32>, vector<32x32xf32>, vector<8x32xf32> -> vector<8x32xf32>
    %c0_295 = arith.constant 0 : index
    %c0_296 = arith.constant 0 : index
    %c0_297 = arith.constant 0 : index
    %368 = vector.load %arg11[%c0_295, %c0_296, %c0_297] : memref<3x1x32xf32, #tpu.memory_space<vmem>>, vector<1x1x32xf32>
    %369 = vector.shape_cast %368 : vector<1x1x32xf32> to vector<1x32xf32>
    %370 = vector.broadcast %369 : vector<1x32xf32> to vector<8x32xf32>
    %371 = arith.addf %367, %370 : vector<8x32xf32>
    %c0_298 = arith.constant 0 : index
    %c0_299 = arith.constant 0 : index
    %c0_300 = arith.constant 0 : index
    %372 = vector.load %arg24[%c0_298, %c0_299, %c0_300] : memref<3x8x32xf32, #tpu.memory_space<vmem>>, vector<1x8x32xf32>
    %373 = vector.shape_cast %372 : vector<1x8x32xf32> to vector<8x32xf32>
    %374 = vector.shape_cast %371 : vector<8x32xf32> to vector<1x8x32xf32>
    tpu.vector_store %arg24[%c0_298, %c0_299, %c0_300], %374 {strides = array<i32>} : memref<3x8x32xf32, #tpu.memory_space<vmem>>, vector<1x8x32xf32>,
    %c1_301 = arith.constant 1 : index
    %c0_302 = arith.constant 0 : index
    %c0_303 = arith.constant 0 : index
    %375 = vector.load %arg9[%c1_301, %c0_302, %c0_303] : memref<3x32x32xf32, #tpu.memory_space<vmem>>, vector<1x32x32xf32>
    %376 = vector.shape_cast %375 : vector<1x32x32xf32> to vector<32x32xf32>
    %cst_304 = arith.constant dense<0.000000e+00> : vector<8x32xf32>
    %377 = tpu.matmul %364, %376, %cst_304 {dimension_numbers = #tpu.dot_dimension_numbers<[1], [0], [0], [1], [0, 0, 1, 1], [], []>} : vector<8x32xf32>, vector<32x32xf32>, vector<8x32xf32> -> vector<8x32xf32>
    %c1_305 = arith.constant 1 : index
    %c0_306 = arith.constant 0 : index
    %c0_307 = arith.constant 0 : index
    %378 = vector.load %arg11[%c1_305, %c0_306, %c0_307] : memref<3x1x32xf32, #tpu.memory_space<vmem>>, vector<1x1x32xf32>
    %379 = vector.shape_cast %378 : vector<1x1x32xf32> to vector<1x32xf32>
    %380 = vector.broadcast %379 : vector<1x32xf32> to vector<8x32xf32>
    %381 = arith.addf %377, %380 : vector<8x32xf32>
    %c1_308 = arith.constant 1 : index
    %c0_309 = arith.constant 0 : index
    %c0_310 = arith.constant 0 : index
    %382 = vector.load %arg24[%c1_308, %c0_309, %c0_310] : memref<3x8x32xf32, #tpu.memory_space<vmem>>, vector<1x8x32xf32>
    %383 = vector.shape_cast %382 : vector<1x8x32xf32> to vector<8x32xf32>
    %384 = vector.shape_cast %381 : vector<8x32xf32> to vector<1x8x32xf32>
    tpu.vector_store %arg24[%c1_308, %c0_309, %c0_310], %384 {strides = array<i32>} : memref<3x8x32xf32, #tpu.memory_space<vmem>>, vector<1x8x32xf32>,
    %c2_311 = arith.constant 2 : index
    %c0_312 = arith.constant 0 : index
    %c0_313 = arith.constant 0 : index
    %385 = vector.load %arg9[%c2_311, %c0_312, %c0_313] : memref<3x32x32xf32, #tpu.memory_space<vmem>>, vector<1x32x32xf32>
    %386 = vector.shape_cast %385 : vector<1x32x32xf32> to vector<32x32xf32>
    %cst_314 = arith.constant dense<0.000000e+00> : vector<8x32xf32>
    %387 = tpu.matmul %364, %386, %cst_314 {dimension_numbers = #tpu.dot_dimension_numbers<[1], [0], [0], [1], [0, 0, 1, 1], [], []>} : vector<8x32xf32>, vector<32x32xf32>, vector<8x32xf32> -> vector<8x32xf32>
    %c2_315 = arith.constant 2 : index
    %c0_316 = arith.constant 0 : index
    %c0_317 = arith.constant 0 : index
    %388 = vector.load %arg11[%c2_315, %c0_316, %c0_317] : memref<3x1x32xf32, #tpu.memory_space<vmem>>, vector<1x1x32xf32>
    %389 = vector.shape_cast %388 : vector<1x1x32xf32> to vector<1x32xf32>
    %390 = vector.broadcast %389 : vector<1x32xf32> to vector<8x32xf32>
    %391 = arith.addf %387, %390 : vector<8x32xf32>
    %c2_318 = arith.constant 2 : index
    %c0_319 = arith.constant 0 : index
    %c0_320 = arith.constant 0 : index
    %392 = vector.load %arg24[%c2_318, %c0_319, %c0_320] : memref<3x8x32xf32, #tpu.memory_space<vmem>>, vector<1x8x32xf32>
    %393 = vector.shape_cast %392 : vector<1x8x32xf32> to vector<8x32xf32>
    %394 = vector.shape_cast %391 : vector<8x32xf32> to vector<1x8x32xf32>
    tpu.vector_store %arg24[%c2_318, %c0_319, %c0_320], %394 {strides = array<i32>} : memref<3x8x32xf32, #tpu.memory_space<vmem>>, vector<1x8x32xf32>,
    %c0_321 = arith.constant 0 : index
    %c0_322 = arith.constant 0 : index
    %c0_323 = arith.constant 0 : index
    %395 = vector.load %arg10[%c0_321, %c0_322, %c0_323] : memref<3x32x32xf32, #tpu.memory_space<vmem>>, vector<1x32x32xf32>
    %396 = vector.shape_cast %395 : vector<1x32x32xf32> to vector<32x32xf32>
    %c1_324 = arith.constant 1 : index
    %c0_325 = arith.constant 0 : index
    %c0_326 = arith.constant 0 : index
    %397 = vector.load %arg10[%c1_324, %c0_325, %c0_326] : memref<3x32x32xf32, #tpu.memory_space<vmem>>, vector<1x32x32xf32>
    %398 = vector.shape_cast %397 : vector<1x32x32xf32> to vector<32x32xf32>
    %c2_327 = arith.constant 2 : index
    %c0_328 = arith.constant 0 : index
    %c0_329 = arith.constant 0 : index
    %399 = vector.load %arg10[%c2_327, %c0_328, %c0_329] : memref<3x32x32xf32, #tpu.memory_space<vmem>>, vector<1x32x32xf32>
    %400 = vector.shape_cast %399 : vector<1x32x32xf32> to vector<32x32xf32>
    %c0_330 = arith.constant 0 : index
    %c0_331 = arith.constant 0 : index
    %c0_332 = arith.constant 0 : index
    %401 = vector.load %arg12[%c0_330, %c0_331, %c0_332] : memref<3x1x32xf32, #tpu.memory_space<vmem>>, vector<1x1x32xf32>
    %402 = vector.shape_cast %401 : vector<1x1x32xf32> to vector<1x32xf32>
    %403 = vector.shape_cast %402 : vector<1x32xf32> to vector<1x32xf32>
    %404 = vector.broadcast %403 : vector<1x32xf32> to vector<2x32xf32>
    %c1_333 = arith.constant 1 : index
    %c0_334 = arith.constant 0 : index
    %c0_335 = arith.constant 0 : index
    %405 = vector.load %arg12[%c1_333, %c0_334, %c0_335] : memref<3x1x32xf32, #tpu.memory_space<vmem>>, vector<1x1x32xf32>
    %406 = vector.shape_cast %405 : vector<1x1x32xf32> to vector<1x32xf32>
    %407 = vector.shape_cast %406 : vector<1x32xf32> to vector<1x32xf32>
    %408 = vector.broadcast %407 : vector<1x32xf32> to vector<2x32xf32>
    %c2_336 = arith.constant 2 : index
    %c0_337 = arith.constant 0 : index
    %c0_338 = arith.constant 0 : index
    %409 = vector.load %arg12[%c2_336, %c0_337, %c0_338] : memref<3x1x32xf32, #tpu.memory_space<vmem>>, vector<1x1x32xf32>
    %410 = vector.shape_cast %409 : vector<1x1x32xf32> to vector<1x32xf32>
    %411 = vector.shape_cast %410 : vector<1x32xf32> to vector<1x32xf32>
    %412 = vector.broadcast %411 : vector<1x32xf32> to vector<2x32xf32>
    %cst_339 = arith.constant 0.000000e+00 : f32
    %413 = vector.broadcast %cst_339 : f32 to vector<2x32xf32>
    %c0_340 = arith.constant 0 : index
    %c0_341 = arith.constant 0 : index
    %c0_342 = arith.constant 0 : index
    %414 = vector.load %arg24[%c0_340, %c0_341, %c0_342] : memref<3x8x32xf32, #tpu.memory_space<vmem>>, vector<1x2x32xf32>
    %415 = vector.shape_cast %414 : vector<1x2x32xf32> to vector<2x32xf32>
    %c1_343 = arith.constant 1 : index
    %c0_344 = arith.constant 0 : index
    %c0_345 = arith.constant 0 : index
    %416 = vector.load %arg24[%c1_343, %c0_344, %c0_345] : memref<3x8x32xf32, #tpu.memory_space<vmem>>, vector<1x2x32xf32>
    %417 = vector.shape_cast %416 : vector<1x2x32xf32> to vector<2x32xf32>
    %c2_346 = arith.constant 2 : index
    %c0_347 = arith.constant 0 : index
    %c0_348 = arith.constant 0 : index
    %418 = vector.load %arg24[%c2_346, %c0_347, %c0_348] : memref<3x8x32xf32, #tpu.memory_space<vmem>>, vector<1x2x32xf32>
    %419 = vector.shape_cast %418 : vector<1x2x32xf32> to vector<2x32xf32>
    %cst_349 = arith.constant dense<0.000000e+00> : vector<2x32xf32>
    %420 = tpu.matmul %413, %396, %cst_349 {dimension_numbers = #tpu.dot_dimension_numbers<[1], [0], [0], [1], [0, 0, 1, 1], [], []>} : vector<2x32xf32>, vector<32x32xf32>, vector<2x32xf32> -> vector<2x32xf32>
    %421 = arith.addf %420, %404 : vector<2x32xf32>
    %cst_350 = arith.constant dense<0.000000e+00> : vector<2x32xf32>
    %422 = tpu.matmul %413, %398, %cst_350 {dimension_numbers = #tpu.dot_dimension_numbers<[1], [0], [0], [1], [0, 0, 1, 1], [], []>} : vector<2x32xf32>, vector<32x32xf32>, vector<2x32xf32> -> vector<2x32xf32>
    %423 = arith.addf %422, %408 : vector<2x32xf32>
    %cst_351 = arith.constant dense<0.000000e+00> : vector<2x32xf32>
    %424 = tpu.matmul %413, %400, %cst_351 {dimension_numbers = #tpu.dot_dimension_numbers<[1], [0], [0], [1], [0, 0, 1, 1], [], []>} : vector<2x32xf32>, vector<32x32xf32>, vector<2x32xf32> -> vector<2x32xf32>
    %425 = arith.addf %424, %412 : vector<2x32xf32>
    %426 = arith.addf %415, %421 : vector<2x32xf32>
    %427 = arith.negf %426 : vector<2x32xf32>
    %428 = math.exp %427 : vector<2x32xf32>
    %cst_352 = arith.constant 1.000000e+00 : f32
    %429 = vector.broadcast %cst_352 : f32 to vector<2x32xf32>
    %430 = arith.addf %429, %428 : vector<2x32xf32>
    %431 = arith.divf %429, %430 : vector<2x32xf32>
    %432 = arith.addf %417, %423 : vector<2x32xf32>
    %433 = arith.negf %432 : vector<2x32xf32>
    %434 = math.exp %433 : vector<2x32xf32>
    %cst_353 = arith.constant 1.000000e+00 : f32
    %435 = vector.broadcast %cst_353 : f32 to vector<2x32xf32>
    %436 = arith.addf %435, %434 : vector<2x32xf32>
    %437 = arith.divf %435, %436 : vector<2x32xf32>
    %438 = arith.mulf %431, %425 : vector<2x32xf32>
    %439 = arith.addf %419, %438 : vector<2x32xf32>
    %440 = math.tanh %439 : vector<2x32xf32>
    %cst_354 = arith.constant 1.000000e+00 : f32
    %441 = vector.broadcast %cst_354 : f32 to vector<2x32xf32>
    %442 = arith.subf %441, %437 : vector<2x32xf32>
    %443 = arith.mulf %442, %440 : vector<2x32xf32>
    %444 = arith.mulf %437, %413 : vector<2x32xf32>
    %445 = arith.addf %443, %444 : vector<2x32xf32>
    %c0_355 = arith.constant 0 : index
    %c2_356 = arith.constant 2 : index
    %c0_357 = arith.constant 0 : index
    %446 = vector.load %arg24[%c0_355, %c2_356, %c0_357] : memref<3x8x32xf32, #tpu.memory_space<vmem>>, vector<1x2x32xf32>
    %447 = vector.shape_cast %446 : vector<1x2x32xf32> to vector<2x32xf32>
    %c1_358 = arith.constant 1 : index
    %c2_359 = arith.constant 2 : index
    %c0_360 = arith.constant 0 : index
    %448 = vector.load %arg24[%c1_358, %c2_359, %c0_360] : memref<3x8x32xf32, #tpu.memory_space<vmem>>, vector<1x2x32xf32>
    %449 = vector.shape_cast %448 : vector<1x2x32xf32> to vector<2x32xf32>
    %c2_361 = arith.constant 2 : index
    %c2_362 = arith.constant 2 : index
    %c0_363 = arith.constant 0 : index
    %450 = vector.load %arg24[%c2_361, %c2_362, %c0_363] : memref<3x8x32xf32, #tpu.memory_space<vmem>>, vector<1x2x32xf32>
    %451 = vector.shape_cast %450 : vector<1x2x32xf32> to vector<2x32xf32>
    %cst_364 = arith.constant dense<0.000000e+00> : vector<2x32xf32>
    %452 = tpu.matmul %445, %396, %cst_364 {dimension_numbers = #tpu.dot_dimension_numbers<[1], [0], [0], [1], [0, 0, 1, 1], [], []>} : vector<2x32xf32>, vector<32x32xf32>, vector<2x32xf32> -> vector<2x32xf32>
    %453 = arith.addf %452, %404 : vector<2x32xf32>
    %cst_365 = arith.constant dense<0.000000e+00> : vector<2x32xf32>
    %454 = tpu.matmul %445, %398, %cst_365 {dimension_numbers = #tpu.dot_dimension_numbers<[1], [0], [0], [1], [0, 0, 1, 1], [], []>} : vector<2x32xf32>, vector<32x32xf32>, vector<2x32xf32> -> vector<2x32xf32>
    %455 = arith.addf %454, %408 : vector<2x32xf32>
    %cst_366 = arith.constant dense<0.000000e+00> : vector<2x32xf32>
    %456 = tpu.matmul %445, %400, %cst_366 {dimension_numbers = #tpu.dot_dimension_numbers<[1], [0], [0], [1], [0, 0, 1, 1], [], []>} : vector<2x32xf32>, vector<32x32xf32>, vector<2x32xf32> -> vector<2x32xf32>
    %457 = arith.addf %456, %412 : vector<2x32xf32>
    %458 = arith.addf %447, %453 : vector<2x32xf32>
    %459 = arith.negf %458 : vector<2x32xf32>
    %460 = math.exp %459 : vector<2x32xf32>
    %cst_367 = arith.constant 1.000000e+00 : f32
    %461 = vector.broadcast %cst_367 : f32 to vector<2x32xf32>
    %462 = arith.addf %461, %460 : vector<2x32xf32>
    %463 = arith.divf %461, %462 : vector<2x32xf32>
    %464 = arith.addf %449, %455 : vector<2x32xf32>
    %465 = arith.negf %464 : vector<2x32xf32>
    %466 = math.exp %465 : vector<2x32xf32>
    %cst_368 = arith.constant 1.000000e+00 : f32
    %467 = vector.broadcast %cst_368 : f32 to vector<2x32xf32>
    %468 = arith.addf %467, %466 : vector<2x32xf32>
    %469 = arith.divf %467, %468 : vector<2x32xf32>
    %470 = arith.mulf %463, %457 : vector<2x32xf32>
    %471 = arith.addf %451, %470 : vector<2x32xf32>
    %472 = math.tanh %471 : vector<2x32xf32>
    %cst_369 = arith.constant 1.000000e+00 : f32
    %473 = vector.broadcast %cst_369 : f32 to vector<2x32xf32>
    %474 = arith.subf %473, %469 : vector<2x32xf32>
    %475 = arith.mulf %474, %472 : vector<2x32xf32>
    %476 = arith.mulf %469, %445 : vector<2x32xf32>
    %477 = arith.addf %475, %476 : vector<2x32xf32>
    %c0_370 = arith.constant 0 : index
    %c4_371 = arith.constant 4 : index
    %c0_372 = arith.constant 0 : index
    %478 = vector.load %arg24[%c0_370, %c4_371, %c0_372] : memref<3x8x32xf32, #tpu.memory_space<vmem>>, vector<1x2x32xf32>
    %479 = vector.shape_cast %478 : vector<1x2x32xf32> to vector<2x32xf32>
    %c1_373 = arith.constant 1 : index
    %c4_374 = arith.constant 4 : index
    %c0_375 = arith.constant 0 : index
    %480 = vector.load %arg24[%c1_373, %c4_374, %c0_375] : memref<3x8x32xf32, #tpu.memory_space<vmem>>, vector<1x2x32xf32>
    %481 = vector.shape_cast %480 : vector<1x2x32xf32> to vector<2x32xf32>
    %c2_376 = arith.constant 2 : index
    %c4_377 = arith.constant 4 : index
    %c0_378 = arith.constant 0 : index
    %482 = vector.load %arg24[%c2_376, %c4_377, %c0_378] : memref<3x8x32xf32, #tpu.memory_space<vmem>>, vector<1x2x32xf32>
    %483 = vector.shape_cast %482 : vector<1x2x32xf32> to vector<2x32xf32>
    %cst_379 = arith.constant dense<0.000000e+00> : vector<2x32xf32>
    %484 = tpu.matmul %477, %396, %cst_379 {dimension_numbers = #tpu.dot_dimension_numbers<[1], [0], [0], [1], [0, 0, 1, 1], [], []>} : vector<2x32xf32>, vector<32x32xf32>, vector<2x32xf32> -> vector<2x32xf32>
    %485 = arith.addf %484, %404 : vector<2x32xf32>
    %cst_380 = arith.constant dense<0.000000e+00> : vector<2x32xf32>
    %486 = tpu.matmul %477, %398, %cst_380 {dimension_numbers = #tpu.dot_dimension_numbers<[1], [0], [0], [1], [0, 0, 1, 1], [], []>} : vector<2x32xf32>, vector<32x32xf32>, vector<2x32xf32> -> vector<2x32xf32>
    %487 = arith.addf %486, %408 : vector<2x32xf32>
    %cst_381 = arith.constant dense<0.000000e+00> : vector<2x32xf32>
    %488 = tpu.matmul %477, %400, %cst_381 {dimension_numbers = #tpu.dot_dimension_numbers<[1], [0], [0], [1], [0, 0, 1, 1], [], []>} : vector<2x32xf32>, vector<32x32xf32>, vector<2x32xf32> -> vector<2x32xf32>
    %489 = arith.addf %488, %412 : vector<2x32xf32>
    %490 = arith.addf %479, %485 : vector<2x32xf32>
    %491 = arith.negf %490 : vector<2x32xf32>
    %492 = math.exp %491 : vector<2x32xf32>
    %cst_382 = arith.constant 1.000000e+00 : f32
    %493 = vector.broadcast %cst_382 : f32 to vector<2x32xf32>
    %494 = arith.addf %493, %492 : vector<2x32xf32>
    %495 = arith.divf %493, %494 : vector<2x32xf32>
    %496 = arith.addf %481, %487 : vector<2x32xf32>
    %497 = arith.negf %496 : vector<2x32xf32>
    %498 = math.exp %497 : vector<2x32xf32>
    %cst_383 = arith.constant 1.000000e+00 : f32
    %499 = vector.broadcast %cst_383 : f32 to vector<2x32xf32>
    %500 = arith.addf %499, %498 : vector<2x32xf32>
    %501 = arith.divf %499, %500 : vector<2x32xf32>
    %502 = arith.mulf %495, %489 : vector<2x32xf32>
    %503 = arith.addf %483, %502 : vector<2x32xf32>
    %504 = math.tanh %503 : vector<2x32xf32>
    %cst_384 = arith.constant 1.000000e+00 : f32
    %505 = vector.broadcast %cst_384 : f32 to vector<2x32xf32>
    %506 = arith.subf %505, %501 : vector<2x32xf32>
    %507 = arith.mulf %506, %504 : vector<2x32xf32>
    %508 = arith.mulf %501, %477 : vector<2x32xf32>
    %509 = arith.addf %507, %508 : vector<2x32xf32>
    %c0_385 = arith.constant 0 : index
    %c6_386 = arith.constant 6 : index
    %c0_387 = arith.constant 0 : index
    %510 = vector.load %arg24[%c0_385, %c6_386, %c0_387] : memref<3x8x32xf32, #tpu.memory_space<vmem>>, vector<1x2x32xf32>
    %511 = vector.shape_cast %510 : vector<1x2x32xf32> to vector<2x32xf32>
    %c1_388 = arith.constant 1 : index
    %c6_389 = arith.constant 6 : index
    %c0_390 = arith.constant 0 : index
    %512 = vector.load %arg24[%c1_388, %c6_389, %c0_390] : memref<3x8x32xf32, #tpu.memory_space<vmem>>, vector<1x2x32xf32>
    %513 = vector.shape_cast %512 : vector<1x2x32xf32> to vector<2x32xf32>
    %c2_391 = arith.constant 2 : index
    %c6_392 = arith.constant 6 : index
    %c0_393 = arith.constant 0 : index
    %514 = vector.load %arg24[%c2_391, %c6_392, %c0_393] : memref<3x8x32xf32, #tpu.memory_space<vmem>>, vector<1x2x32xf32>
    %515 = vector.shape_cast %514 : vector<1x2x32xf32> to vector<2x32xf32>
    %cst_394 = arith.constant dense<0.000000e+00> : vector<2x32xf32>
    %516 = tpu.matmul %509, %396, %cst_394 {dimension_numbers = #tpu.dot_dimension_numbers<[1], [0], [0], [1], [0, 0, 1, 1], [], []>} : vector<2x32xf32>, vector<32x32xf32>, vector<2x32xf32> -> vector<2x32xf32>
    %517 = arith.addf %516, %404 : vector<2x32xf32>
    %cst_395 = arith.constant dense<0.000000e+00> : vector<2x32xf32>
    %518 = tpu.matmul %509, %398, %cst_395 {dimension_numbers = #tpu.dot_dimension_numbers<[1], [0], [0], [1], [0, 0, 1, 1], [], []>} : vector<2x32xf32>, vector<32x32xf32>, vector<2x32xf32> -> vector<2x32xf32>
    %519 = arith.addf %518, %408 : vector<2x32xf32>
    %cst_396 = arith.constant dense<0.000000e+00> : vector<2x32xf32>
    %520 = tpu.matmul %509, %400, %cst_396 {dimension_numbers = #tpu.dot_dimension_numbers<[1], [0], [0], [1], [0, 0, 1, 1], [], []>} : vector<2x32xf32>, vector<32x32xf32>, vector<2x32xf32> -> vector<2x32xf32>
    %521 = arith.addf %520, %412 : vector<2x32xf32>
    %522 = arith.addf %511, %517 : vector<2x32xf32>
    %523 = arith.negf %522 : vector<2x32xf32>
    %524 = math.exp %523 : vector<2x32xf32>
    %cst_397 = arith.constant 1.000000e+00 : f32
    %525 = vector.broadcast %cst_397 : f32 to vector<2x32xf32>
    %526 = arith.addf %525, %524 : vector<2x32xf32>
    %527 = arith.divf %525, %526 : vector<2x32xf32>
    %528 = arith.addf %513, %519 : vector<2x32xf32>
    %529 = arith.negf %528 : vector<2x32xf32>
    %530 = math.exp %529 : vector<2x32xf32>
    %cst_398 = arith.constant 1.000000e+00 : f32
    %531 = vector.broadcast %cst_398 : f32 to vector<2x32xf32>
    %532 = arith.addf %531, %530 : vector<2x32xf32>
    %533 = arith.divf %531, %532 : vector<2x32xf32>
    %534 = arith.mulf %527, %521 : vector<2x32xf32>
    %535 = arith.addf %515, %534 : vector<2x32xf32>
    %536 = math.tanh %535 : vector<2x32xf32>
    %cst_399 = arith.constant 1.000000e+00 : f32
    %537 = vector.broadcast %cst_399 : f32 to vector<2x32xf32>
    %538 = arith.subf %537, %533 : vector<2x32xf32>
    %539 = arith.mulf %538, %536 : vector<2x32xf32>
    %540 = arith.mulf %533, %509 : vector<2x32xf32>
    %541 = arith.addf %539, %540 : vector<2x32xf32>
    %c0_400 = arith.constant 0 : index
    %c0_401 = arith.constant 0 : index
    %542 = vector.load %arg13[%c0_400, %c0_401] : memref<1x32xf32, #tpu.memory_space<vmem>>, vector<1x32xf32>
    %543 = vector.broadcast %542 : vector<1x32xf32> to vector<2x32xf32>
    %544 = arith.mulf %541, %543 : vector<2x32xf32>
    %cst_402 = arith.constant dense<0.000000e+00> : vector<2xf32>
    %545 = vector.multi_reduction <add>, %544, %cst_402 [1] : vector<2x32xf32> to vector<2xf32>
    %546 = vector.shape_cast %545 : vector<2xf32> to vector<2x1xf32>
    %c0_403 = arith.constant 0 : index
    %c0_404 = arith.constant 0 : index
    %547 = vector.load %arg15[%c0_403, %c0_404] : memref<2x1xf32, #tpu.memory_space<vmem>>, vector<2x1xf32>
    %c0_405 = arith.constant 0 : index
    %c0_406 = arith.constant 0 : index
    %548 = vector.load %arg14[%c0_405, %c0_406] : memref<1x1xf32, #tpu.memory_space<vmem>>, vector<1x1xf32>
    %549 = vector.broadcast %548 : vector<1x1xf32> to vector<2x1xf32>
    %550 = arith.mulf %547, %549 : vector<2x1xf32>
    %cst_407 = arith.constant dense<0.000000e+00> : vector<2xf32>
    %551 = vector.multi_reduction <add>, %550, %cst_407 [1] : vector<2x1xf32> to vector<2xf32>
    %552 = vector.shape_cast %551 : vector<2xf32> to vector<2x1xf32>
    %553 = arith.addf %546, %552 : vector<2x1xf32>
    %c0_408 = arith.constant 0 : index
    %554 = memref.load %arg16[%c0_408] : memref<1xf32, #tpu.memory_space<smem>>
    %555 = vector.broadcast %554 : f32 to vector<2x1xf32>
    %556 = arith.addf %553, %555 : vector<2x1xf32>
    %c0_409 = arith.constant 0 : index
    %c0_410 = arith.constant 0 : index
    %557 = vector.load %arg17[%c0_409, %c0_410] : memref<2x1xf32, #tpu.memory_space<vmem>>, vector<2x1xf32>
    tpu.vector_store %arg17[%c0_409, %c0_410], %556 {strides = array<i32>} : memref<2x1xf32, #tpu.memory_space<vmem>>, vector<2x1xf32>,
    return
  }
}

</mosaic_0001>

<llo_original>
// kernel: forward.1
$region0: #{forward.1}
  #allocation0 [shape = 'u32[]', space=smem, size = 0x4, offset = 0x4, fixed_abs, tag = 'smem constant byte address 0x4 - core index']
  #allocation1 [shape = 'u32[144,128]{1,0:T(1,128)}', space=vmem, size = 0x12000, scoped, tag = 'internal scratch']
  #allocation2 [shape = 'f32[3,32,16]{2,1,0:T(8,128)}', space=vmem, size = 0xc000, scoped, tag = 'scratch operand']
  #allocation3 [shape = 'f32[3,16,32]{2,1,0:T(8,128)}', space=vmem, size = 0x6000, scoped, tag = 'scratch operand']
  #allocation4 [shape = 'f32[16,16]{1,0:T(8,128)}', space=vmem, size = 0x2000, scoped, tag = 'scratch operand']
  #allocation5 [shape = 'f32[8,32]{1,0:T(8,128)}', space=vmem, size = 0x1000, scoped, tag = 'scratch operand']
  #allocation6 [shape = 'f32[3,8,32]{2,1,0:T(8,128)}', space=vmem, size = 0x3000, scoped, tag = 'scratch operand']
  #allocation7 [shape = 'f32[8,32]{1,0:T(8,128)}', space=vmem, size = 0x1000, scoped, tag = 'scratch operand']
  #allocation8 [shape = 'f32[3,8,32]{2,1,0:T(8,128)}', space=vmem, size = 0x3000, scoped, tag = 'scratch operand']
  #allocation9 [shape = 'f32[1,1]{1,0:T(1,128)S(1)}', space=vmem, size = 0x200, scoped, tag = 'scoped memory for forward.1']
  #allocation10 [shape = 'f32[1]{0:T(128)S(6)}', space=smem, size = 0x200, scoped, tag = 'scoped memory for forward.1']
  %s0 = inlined_call_operand.vmem [shape: f32[32,4], index: 0, kind: input, shape index: {}]
  %s1 = inlined_call_operand.vmem [shape: f32[3,4,16], index: 1, kind: input, shape index: {}]
  %s2 = inlined_call_operand.vmem [shape: f32[3,16,32], index: 2, kind: input, shape index: {}]
  %s3 = inlined_call_operand.hbm [shape: f32[1,16], index: 3, kind: input, shape index: {}]
  %s4 = inlined_call_operand.hbm [shape: f32[1,32], index: 4, kind: input, shape index: {}]
  %s5 = inlined_call_operand.hbm [shape: f32[3,32,32], index: 5, kind: input, shape index: {}]
  %s6 = inlined_call_operand.hbm [shape: f32[3,32,32], index: 6, kind: input, shape index: {}]
  %s7 = inlined_call_operand.vmem [shape: f32[3,1,32], index: 7, kind: input, shape index: {}]
  %s8 = inlined_call_operand.vmem [shape: f32[3,1,32], index: 8, kind: input, shape index: {}]
  %s9 = inlined_call_operand.hbm [shape: f32[3,32,32], index: 9, kind: input, shape index: {}]
  %s10 = inlined_call_operand.hbm [shape: f32[3,32,32], index: 10, kind: input, shape index: {}]
  %s11 = inlined_call_operand.vmem [shape: f32[3,1,32], index: 11, kind: input, shape index: {}]
  %s12 = inlined_call_operand.vmem [shape: f32[3,1,32], index: 12, kind: input, shape index: {}]
  %s13 = inlined_call_operand.vmem [shape: f32[1,32], index: 13, kind: input, shape index: {}]
  %s14 = inlined_call_operand.<no memory space> [shape: f32[1,1], index: 14, kind: input, shape index: {}]
  %s15 = inlined_call_operand.vmem [shape: f32[2,1], index: 15, kind: input, shape index: {}]
  %s16 = inlined_call_operand.<no memory space> [shape: f32[1], index: 16, kind: input, shape index: {}]
  %s17 = inlined_call_operand.vmem [shape: f32[2,1], index: 17, kind: output, shape index: {}]
  %s18 = sld [smem:[#allocation0]]
  $region102: #{forward.1} parent=0
    _
  %s20 = ssub.s32 1, %s18
  %s21 = scalar_select 0, %s20, %s18
  %v22 = vstv %s14
  %23 = vst [vmem:[#allocation9] sm:$0x1] %v22
  %24 = sst [smem:[#allocation10]] %s16
  $region1: #{forward.1} parent=0
    #allocation11 [shape = 'u8[512]{0}', space=vmem, size = 0x400, scoped, tag = 'input window, operand 3, single buffered']
    #allocation12 [shape = 's32[1]{0}', space=sflag, size = 0x4, scoped, tag = 'scoped memory for forward.1']
    #allocation13 [shape = 'u8[512]{0}', space=vmem, size = 0x400, scoped, tag = 'input window, operand 4, single buffered']
    #allocation14 [shape = 's32[1]{0}', space=sflag, size = 0x4, scoped, tag = 'scoped memory for forward.1']
    #allocation15 [shape = 'u8[49152]{0}', space=vmem, size = 0xc000, scoped, tag = 'input window, operand 5, single buffered']
    #allocation16 [shape = 'u8[49152]{0}', space=vmem, size = 0xc000, scoped, tag = 'input window, operand 6, single buffered']
    #allocation17 [shape = 's32[1]{0}', space=sflag, size = 0x4, scoped, tag = 'scoped memory for forward.1']
    #allocation18 [shape = 'u8[49152]{0}', space=vmem, size = 0xc000, scoped, tag = 'input window, operand 9, single buffered']
    #allocation19 [shape = 'u8[49152]{0}', space=vmem, size = 0xc000, scoped, tag = 'input window, operand 10, single buffered']
    #allocation20 [shape = 's32[1]{0}', space=sflag, size = 0x4, scoped, tag = 'scoped memory for forward.1']
    %25 = vsyncpa [#allocation12], 0
    %26 = vsyncpa [#allocation14], 0
    %27 = vsyncpa [#allocation17], 0
    %28 = vsyncpa [#allocation20], 0
    // Predicated region
    $region2: #{forward.1} parent=1 // pred_check
      _
    $region3: #{forward.1} parent=1 // pred_check_branch
      %30 = sbr.rel (0) target = $region5
    $region4: #{forward.1} parent=1 // pred_region
      _
    $region5: #{forward.1} parent=1 // pred_fallthru
      _
    // Predicated region
    $region6: #{forward.1} parent=1 // pred_check
      _
    $region7: #{forward.1} parent=1 // pred_check_branch
      %32 = sbr.rel (0) target = $region9
    $region8: #{forward.1} parent=1 // pred_region
      _
    $region9: #{forward.1} parent=1 // pred_fallthru
      _
    // Predicated region
    $region10: #{forward.1} parent=1 // pred_check
      _
    $region11: #{forward.1} parent=1 // pred_check_branch
      %34 = sbr.rel (0) target = $region13
    $region12: #{forward.1} parent=1 // pred_region
      _
    $region13: #{forward.1} parent=1 // pred_fallthru
      _
    // Predicated region
    $region14: #{forward.1} parent=1 // pred_check
      _
    $region15: #{forward.1} parent=1 // pred_check_branch
      %36 = sbr.rel (0) target = $region17
    $region16: #{forward.1} parent=1 // pred_region
      %s38 = ssub.s32 16, 16
      %39 = vsyncadd [#allocation12], %s38
      %s41 = sshll.u32 [#allocation11], 4
      %s42 = int_to_ptr.vmem [resolvable:$true] %s41
      %44 = dma.hbm_to_vmem [thread:$0]  %s3, 16, %s42, [#allocation12]
    $region17: #{forward.1} parent=1 // pred_fallthru
      _
    // Predicated region
    $region18: #{forward.1} parent=1 // pred_check
      _
    $region19: #{forward.1} parent=1 // pred_check_branch
      %46 = sbr.rel (0) target = $region21
    $region20: #{forward.1} parent=1 // pred_region
      %s48 = ssub.s32 16, 16
      %49 = vsyncadd [#allocation14], %s48
      %s51 = sshll.u32 [#allocation13], 4
      %s52 = int_to_ptr.vmem [resolvable:$true] %s51
      %54 = dma.hbm_to_vmem [thread:$0]  %s4, 16, %s52, [#allocation14]
    $region21: #{forward.1} parent=1 // pred_fallthru
      _
    // Predicated region
    $region22: #{forward.1} parent=1 // pred_check
      _
    $region23: #{forward.1} parent=1 // pred_check_branch
      %56 = sbr.rel (0) target = $region25
    $region24: #{forward.1} parent=1 // pred_region
      %s58 = ssub.s32 1536, 1536
      %59 = vsyncadd [#allocation14], %s58
      %s60 = sshll.u32 [#allocation15], 4
      %s61 = int_to_ptr.vmem [resolvable:$true] %s60
      %66 = dma.hbm_to_vmem [thread:$0]  %s5, 1536, %s61, [#allocation14], 128, 128, 8
    $region25: #{forward.1} parent=1 // pred_fallthru
      _
    // Predicated region
    $region26: #{forward.1} parent=1 // pred_check
      _
    $region27: #{forward.1} parent=1 // pred_check_branch
      %68 = sbr.rel (0) target = $region29
    $region28: #{forward.1} parent=1 // pred_region
      %s70 = ssub.s32 1536, 1536
      %71 = vsyncadd [#allocation17], %s70
      %s72 = sshll.u32 [#allocation16], 4
      %s73 = int_to_ptr.vmem [resolvable:$true] %s72
      %78 = dma.hbm_to_vmem [thread:$0]  %s6, 1536, %s73, [#allocation17], 128, 128, 8
    $region29: #{forward.1} parent=1 // pred_fallthru
      _
    // Predicated region
    $region30: #{forward.1} parent=1 // pred_check
      _
    $region31: #{forward.1} parent=1 // pred_check_branch
      %80 = sbr.rel (0) target = $region33
    $region32: #{forward.1} parent=1 // pred_region
      _
    $region33: #{forward.1} parent=1 // pred_fallthru
      _
    // Predicated region
    $region34: #{forward.1} parent=1 // pred_check
      _
    $region35: #{forward.1} parent=1 // pred_check_branch
      %82 = sbr.rel (0) target = $region37
    $region36: #{forward.1} parent=1 // pred_region
      _
    $region37: #{forward.1} parent=1 // pred_fallthru
      _
    // Predicated region
    $region38: #{forward.1} parent=1 // pred_check
      _
    $region39: #{forward.1} parent=1 // pred_check_branch
      %84 = sbr.rel (0) target = $region41
    $region40: #{forward.1} parent=1 // pred_region
      %s86 = ssub.s32 1536, 1536
      %87 = vsyncadd [#allocation17], %s86
      %s88 = sshll.u32 [#allocation18], 4
      %s89 = int_to_ptr.vmem [resolvable:$true] %s88
      %94 = dma.hbm_to_vmem [thread:$0]  %s9, 1536, %s89, [#allocation17], 128, 128, 8
    $region41: #{forward.1} parent=1 // pred_fallthru
      _
    // Predicated region
    $region42: #{forward.1} parent=1 // pred_check
      _
    $region43: #{forward.1} parent=1 // pred_check_branch
      %96 = sbr.rel (0) target = $region45
    $region44: #{forward.1} parent=1 // pred_region
      %s98 = ssub.s32 1536, 1536
      %99 = vsyncadd [#allocation20], %s98
      %s100 = sshll.u32 [#allocation19], 4
      %s101 = int_to_ptr.vmem [resolvable:$true] %s100
      %106 = dma.hbm_to_vmem [thread:$0]  %s10, 1536, %s101, [#allocation20], 128, 128, 8
    $region45: #{forward.1} parent=1 // pred_fallthru
      _
    // Predicated region
    $region46: #{forward.1} parent=1 // pred_check
      _
    $region47: #{forward.1} parent=1 // pred_check_branch
      %108 = sbr.rel (0) target = $region49
    $region48: #{forward.1} parent=1 // pred_region
      _
    $region49: #{forward.1} parent=1 // pred_fallthru
      _
    // Predicated region
    $region50: #{forward.1} parent=1 // pred_check
      _
    $region51: #{forward.1} parent=1 // pred_check_branch
      %110 = sbr.rel (0) target = $region53
    $region52: #{forward.1} parent=1 // pred_region
      _
    $region53: #{forward.1} parent=1 // pred_fallthru
      _
    // Predicated region
    $region54: #{forward.1} parent=1 // pred_check
      _
    $region55: #{forward.1} parent=1 // pred_check_branch
      %112 = sbr.rel (0) target = $region57
    $region56: #{forward.1} parent=1 // pred_region
      _
    $region57: #{forward.1} parent=1 // pred_fallthru
      _
    // Predicated region
    $region58: #{forward.1} parent=1 // pred_check
      _
    $region59: #{forward.1} parent=1 // pred_check_branch
      %114 = sbr.rel (0) target = $region61
    $region60: #{forward.1} parent=1 // pred_region
      _
    $region61: #{forward.1} parent=1 // pred_fallthru
      _
    // Predicated region
    $region62: #{forward.1} parent=1 // pred_check
      _
    $region63: #{forward.1} parent=1 // pred_check_branch
      %116 = sbr.rel (0) target = $region65
    $region64: #{forward.1} parent=1 // pred_region
      _
    $region65: #{forward.1} parent=1 // pred_fallthru
      _
    // Predicated region
    $region66: #{forward.1} parent=1 // pred_check
      _
    $region67: #{forward.1} parent=1 // pred_check_branch
      %118 = sbr.rel (0) target = $region69
    $region68: #{forward.1} parent=1 // pred_region
      _
    $region69: #{forward.1} parent=1 // pred_fallthru
      _
    // Predicated region
    $region70: #{forward.1} parent=1 // pred_check
      _
    $region71: #{forward.1} parent=1 // pred_check_branch
      %120 = sbr.rel (0) target = $region73
    $region72: #{forward.1} parent=1 // pred_region
      %121 = dma.done [#allocation12], 16
    $region73: #{forward.1} parent=1 // pred_fallthru
      _
    // Predicated region
    $region74: #{forward.1} parent=1 // pred_check
      _
    $region75: #{forward.1} parent=1 // pred_check_branch
      %123 = sbr.rel (0) target = $region77
    $region76: #{forward.1} parent=1 // pred_region
      %124 = dma.done [#allocation14], 16
    $region77: #{forward.1} parent=1 // pred_fallthru
      _
    // Predicated region
    $region78: #{forward.1} parent=1 // pred_check
      _
    $region79: #{forward.1} parent=1 // pred_check_branch
      %126 = sbr.rel (0) target = $region81
    $region80: #{forward.1} parent=1 // pred_region
      %127 = dma.done [#allocation14], 1536
    $region81: #{forward.1} parent=1 // pred_fallthru
      _
    // Predicated region
    $region82: #{forward.1} parent=1 // pred_check
      _
    $region83: #{forward.1} parent=1 // pred_check_branch
      %129 = sbr.rel (0) target = $region85
    $region84: #{forward.1} parent=1 // pred_region
      %130 = dma.done [#allocation17], 1536
    $region85: #{forward.1} parent=1 // pred_fallthru
      _
    // Predicated region
    $region86: #{forward.1} parent=1 // pred_check
      _
    $region87: #{forward.1} parent=1 // pred_check_branch
      %132 = sbr.rel (0) target = $region89
    $region88: #{forward.1} parent=1 // pred_region
      %133 = dma.done [#allocation17], 1536
    $region89: #{forward.1} parent=1 // pred_fallthru
      _
    // Predicated region
    $region90: #{forward.1} parent=1 // pred_check
      _
    $region91: #{forward.1} parent=1 // pred_check_branch
      %135 = sbr.rel (0) target = $region93
    $region92: #{forward.1} parent=1 // pred_region
      %136 = dma.done [#allocation20], 1536
    $region93: #{forward.1} parent=1 // pred_fallthru
      _
    %v137 = vld [vmem:[%s0] sm:$0xff]
    %v138 = vld [vmem:[%s0 + $0x8] sm:$0xff]
    %v139 = vld [vmem:[%s0 + $0x10] sm:$0xff]
    %v140 = vld [vmem:[%s0 + $0x18] sm:$0xff]
    %v141 = vld [vmem:[%s1] sm:$0xf]
    %vm142 = vcmask 31744
    %v144 = vsel %vm142, %v137, 0
    %v147 = vsel %vm142, %v138, 0
    %v150 = vsel %vm142, %v139, 0
    %v153 = vsel %vm142, %v140, 0
    %vm155 = vcmask 1043456
    %v157 = vsel %vm155, %v141, 0
    %159 = vmatprep.subr.mxu0 0.0
    %160 = vmatpush1.msra.mxu0 %v157
    %161 = vmatprep.subr.mxu0 0.0
    %162 = vmatpush1.msra.mxu0 0.0
    %163 = vmatprep.subr.mxu0 0.0
    %164 = vmatpush1.msra.mxu0 0.0
    %165 = vmatprep.subr.mxu0 0.0
    %166 = vmatpush1.msra.mxu0 0.0
    %167 = vmatprep.subr.mxu0 0.0
    %168 = vmatpush1.msra.mxu0 0.0
    %169 = vmatprep.subr.mxu0 0.0
    %170 = vmatpush1.msra.mxu0 0.0
    %171 = vmatprep.subr.mxu0 0.0
    %172 = vmatpush1.msra.mxu0 0.0
    %173 = vmatprep.subr.mxu0 0.0
    %174 = vmatpush1.msra.mxu0 0.0
    %175 = vmatprep.subr.mxu0 0.0
    %176 = vmatpush1.msra.mxu0 0.0
    %177 = vmatprep.subr.mxu0 0.0
    %178 = vmatpush1.msra.mxu0 0.0
    %179 = vmatprep.subr.mxu0 0.0
    %180 = vmatpush1.msra.mxu0 0.0
    %181 = vmatprep.subr.mxu0 0.0
    %182 = vmatpush1.msra.mxu0 0.0
    %183 = vmatprep.subr.mxu0 0.0
    %184 = vmatpush1.msra.mxu0 0.0
    %185 = vmatprep.subr.mxu0 0.0
    %186 = vmatpush1.msra.mxu0 0.0
    %187 = vmatprep.subr.mxu0 0.0
    %188 = vmatpush1.msra.mxu0 0.0
    %189 = vmatprep.subr.mxu0 0.0
    %190 = vmatpush1.msra.mxu0 0.0
    %191 = vmatprep.subr.mxu0 0.0
    %192 = vmatpush1.msra.mxu0 0.0
    %193 = vmatprep.subr.mxu0 0.0
    %194 = vmatpush1.msra.mxu0 0.0
    %195 = vmatprep.subr.mxu0 0.0
    %196 = vmatpush1.msra.mxu0 0.0
    %197 = vmatprep.subr.mxu0 0.0
    %198 = vmatpush1.msra.mxu0 0.0
    %199 = vmatprep.subr.mxu0 0.0
    %200 = vmatpush1.msra.mxu0 0.0
    %201 = vmatprep.subr.mxu0 0.0
    %202 = vmatpush1.msra.mxu0 0.0
    %203 = vmatprep.subr.mxu0 0.0
    %204 = vmatpush1.msra.mxu0 0.0
    %205 = vmatprep.subr.mxu0 0.0
    %206 = vmatpush1.msra.mxu0 0.0
    %207 = vmatprep.subr.mxu0 0.0
    %208 = vmatpush1.msra.mxu0 0.0
    %209 = vmatprep.subr.mxu0 0.0
    %210 = vmatpush1.msra.mxu0 0.0
    %211 = vmatprep.subr.mxu0 0.0
    %212 = vmatpush1.msra.mxu0 0.0
    %213 = vmatprep.subr.mxu0 0.0
    %214 = vmatpush1.msra.mxu0 0.0
    %215 = vmatprep.subr.mxu0 0.0
    %216 = vmatpush1.msra.mxu0 0.0
    %217 = vmatprep.subr.mxu0 0.0
    %218 = vmatpush1.msra.mxu0 0.0
    %219 = vmatprep.subr.mxu0 0.0
    %220 = vmatpush1.msra.mxu0 0.0
    %221 = vmatprep.subr.mxu0 0.0
    %222 = vmatpush1.msra.mxu0 0.0
    %223 = vmatprep.mubr.f32.mxu0 0.0
    %224 = vmatmul.mubr.f32.gmra.mrb[0].mxu0 %v144
    %v225 = vpop.f32.mrb[0].mxu0
    %v226 = vadd.f32 0.0, %v225
    %v227 = vpop.f32.mrb[0].mxu0
    %228 = vmatprep.mubr.f32.mxu0 0.0
    %229 = vmatmul.mubr.f32.gmra.mrb[0].mxu0 %v147
    %v230 = vpop.f32.mrb[0].mxu0
    %v231 = vadd.f32 0.0, %v230
    %v232 = vpop.f32.mrb[0].mxu0
    %233 = vmatprep.mubr.f32.mxu0 0.0
    %234 = vmatmul.mubr.f32.gmra.mrb[0].mxu0 %v150
    %v235 = vpop.f32.mrb[0].mxu0
    %v236 = vadd.f32 0.0, %v235
    %v237 = vpop.f32.mrb[0].mxu0
    %238 = vmatprep.mubr.f32.mxu0 0.0
    %239 = vmatmul.mubr.f32.gmra.mrb[0].mxu0 %v153
    %v240 = vpop.f32.mrb[0].mxu0
    %v241 = vadd.f32 0.0, %v240
    %v242 = vpop.f32.mrb[0].mxu0
    %243 = vdwg.mxu0
    %vm244 = vcmask 130048
    %245 = vst.msk [vmem:[#allocation2] sm:$0xff] %vm244, %v226
    %246 = vst.msk [vmem:[#allocation2 + $0x8] sm:$0xff] %vm244, %v231
    %247 = vst.msk [vmem:[#allocation2 + $0x10] sm:$0xff] %vm244, %v236
    %248 = vst.msk [vmem:[#allocation2 + $0x18] sm:$0xff] %vm244, %v241
    %s249 = scalar_lea.vmem %s1, 4
    %v250 = vld [vmem:[%s249] sm:$0xf]
    %v252 = vsel %vm155, %v250, 0
    %254 = vmatprep.subr.mxu0 0.0
    %255 = vmatpush1.msra.mxu0 %v252
    %256 = vmatprep.subr.mxu0 0.0
    %257 = vmatpush1.msra.mxu0 0.0
    %258 = vmatprep.subr.mxu0 0.0
    %259 = vmatpush1.msra.mxu0 0.0
    %260 = vmatprep.subr.mxu0 0.0
    %261 = vmatpush1.msra.mxu0 0.0
    %262 = vmatprep.subr.mxu0 0.0
    %263 = vmatpush1.msra.mxu0 0.0
    %264 = vmatprep.subr.mxu0 0.0
    %265 = vmatpush1.msra.mxu0 0.0
    %266 = vmatprep.subr.mxu0 0.0
    %267 = vmatpush1.msra.mxu0 0.0
    %268 = vmatprep.subr.mxu0 0.0
    %269 = vmatpush1.msra.mxu0 0.0
    %270 = vmatprep.subr.mxu0 0.0
    %271 = vmatpush1.msra.mxu0 0.0
    %272 = vmatprep.subr.mxu0 0.0
    %273 = vmatpush1.msra.mxu0 0.0
    %274 = vmatprep.subr.mxu0 0.0
    %275 = vmatpush1.msra.mxu0 0.0
    %276 = vmatprep.subr.mxu0 0.0
    %277 = vmatpush1.msra.mxu0 0.0
    %278 = vmatprep.subr.mxu0 0.0
    %279 = vmatpush1.msra.mxu0 0.0
    %280 = vmatprep.subr.mxu0 0.0
    %281 = vmatpush1.msra.mxu0 0.0
    %282 = vmatprep.subr.mxu0 0.0
    %283 = vmatpush1.msra.mxu0 0.0
    %284 = vmatprep.subr.mxu0 0.0
    %285 = vmatpush1.msra.mxu0 0.0
    %286 = vmatprep.subr.mxu0 0.0
    %287 = vmatpush1.msra.mxu0 0.0
    %288 = vmatprep.subr.mxu0 0.0
    %289 = vmatpush1.msra.mxu0 0.0
    %290 = vmatprep.subr.mxu0 0.0
    %291 = vmatpush1.msra.mxu0 0.0
    %292 = vmatprep.subr.mxu0 0.0
    %293 = vmatpush1.msra.mxu0 0.0
    %294 = vmatprep.subr.mxu0 0.0
    %295 = vmatpush1.msra.mxu0 0.0
    %296 = vmatprep.subr.mxu0 0.0
    %297 = vmatpush1.msra.mxu0 0.0
    %298 = vmatprep.subr.mxu0 0.0
    %299 = vmatpush1.msra.mxu0 0.0
    %300 = vmatprep.subr.mxu0 0.0
    %301 = vmatpush1.msra.mxu0 0.0
    %302 = vmatprep.subr.mxu0 0.0
    %303 = vmatpush1.msra.mxu0 0.0
    %304 = vmatprep.subr.mxu0 0.0
    %305 = vmatpush1.msra.mxu0 0.0
    %306 = vmatprep.subr.mxu0 0.0
    %307 = vmatpush1.msra.mxu0 0.0
    %308 = vmatprep.subr.mxu0 0.0
    %309 = vmatpush1.msra.mxu0 0.0
    %310 = vmatprep.subr.mxu0 0.0
    %311 = vmatpush1.msra.mxu0 0.0
    %312 = vmatprep.subr.mxu0 0.0
    %313 = vmatpush1.msra.mxu0 0.0
    %314 = vmatprep.subr.mxu0 0.0
    %315 = vmatpush1.msra.mxu0 0.0
    %316 = vmatprep.subr.mxu0 0.0
    %317 = vmatpush1.msra.mxu0 0.0
    %318 = vmatprep.mubr.f32.mxu0 0.0
    %319 = vmatmul.mubr.f32.gmra.mrb[0].mxu0 %v144
    %v320 = vpop.f32.mrb[0].mxu0
    %v321 = vadd.f32 0.0, %v320
    %v322 = vpop.f32.mrb[0].mxu0
    %323 = vmatprep.mubr.f32.mxu0 0.0
    %324 = vmatmul.mubr.f32.gmra.mrb[0].mxu0 %v147
    %v325 = vpop.f32.mrb[0].mxu0
    %v326 = vadd.f32 0.0, %v325
    %v327 = vpop.f32.mrb[0].mxu0
    %328 = vmatprep.mubr.f32.mxu0 0.0
    %329 = vmatmul.mubr.f32.gmra.mrb[0].mxu0 %v150
    %v330 = vpop.f32.mrb[0].mxu0
    %v331 = vadd.f32 0.0, %v330
    %v332 = vpop.f32.mrb[0].mxu0
    %333 = vmatprep.mubr.f32.mxu0 0.0
    %334 = vmatmul.mubr.f32.gmra.mrb[0].mxu0 %v153
    %v335 = vpop.f32.mrb[0].mxu0
    %v336 = vadd.f32 0.0, %v335
    %v337 = vpop.f32.mrb[0].mxu0
    %338 = vdwg.mxu0
    %s339 = scalar_lea.vmem [#allocation2], 32
    %340 = vst.msk [vmem:[%s339] sm:$0xff] %vm244, %v321
    %341 = vst.msk [vmem:[%s339 + $0x8] sm:$0xff] %vm244, %v326
    %342 = vst.msk [vmem:[%s339 + $0x10] sm:$0xff] %vm244, %v331
    %343 = vst.msk [vmem:[%s339 + $0x18] sm:$0xff] %vm244, %v336
    %s344 = scalar_lea.vmem %s1, 8
    %v345 = vld [vmem:[%s344] sm:$0xf]
    %v347 = vsel %vm155, %v345, 0
    %349 = vmatprep.subr.mxu0 0.0
    %350 = vmatpush1.msra.mxu0 %v347
    %351 = vmatprep.subr.mxu0 0.0
    %352 = vmatpush1.msra.mxu0 0.0
    %353 = vmatprep.subr.mxu0 0.0
    %354 = vmatpush1.msra.mxu0 0.0
    %355 = vmatprep.subr.mxu0 0.0
    %356 = vmatpush1.msra.mxu0 0.0
    %357 = vmatprep.subr.mxu0 0.0
    %358 = vmatpush1.msra.mxu0 0.0
    %359 = vmatprep.subr.mxu0 0.0
    %360 = vmatpush1.msra.mxu0 0.0
    %361 = vmatprep.subr.mxu0 0.0
    %362 = vmatpush1.msra.mxu0 0.0
    %363 = vmatprep.subr.mxu0 0.0
    %364 = vmatpush1.msra.mxu0 0.0
    %365 = vmatprep.subr.mxu0 0.0
    %366 = vmatpush1.msra.mxu0 0.0
    %367 = vmatprep.subr.mxu0 0.0
    %368 = vmatpush1.msra.mxu0 0.0
    %369 = vmatprep.subr.mxu0 0.0
    %370 = vmatpush1.msra.mxu0 0.0
    %371 = vmatprep.subr.mxu0 0.0
    %372 = vmatpush1.msra.mxu0 0.0
    %373 = vmatprep.subr.mxu0 0.0
    %374 = vmatpush1.msra.mxu0 0.0
    %375 = vmatprep.subr.mxu0 0.0
    %376 = vmatpush1.msra.mxu0 0.0
    %377 = vmatprep.subr.mxu0 0.0
    %378 = vmatpush1.msra.mxu0 0.0
    %379 = vmatprep.subr.mxu0 0.0
    %380 = vmatpush1.msra.mxu0 0.0
    %381 = vmatprep.subr.mxu0 0.0
    %382 = vmatpush1.msra.mxu0 0.0
    %383 = vmatprep.subr.mxu0 0.0
    %384 = vmatpush1.msra.mxu0 0.0
    %385 = vmatprep.subr.mxu0 0.0
    %386 = vmatpush1.msra.mxu0 0.0
    %387 = vmatprep.subr.mxu0 0.0
    %388 = vmatpush1.msra.mxu0 0.0
    %389 = vmatprep.subr.mxu0 0.0
    %390 = vmatpush1.msra.mxu0 0.0
    %391 = vmatprep.subr.mxu0 0.0
    %392 = vmatpush1.msra.mxu0 0.0
    %393 = vmatprep.subr.mxu0 0.0
    %394 = vmatpush1.msra.mxu0 0.0
    %395 = vmatprep.subr.mxu0 0.0
    %396 = vmatpush1.msra.mxu0 0.0
    %397 = vmatprep.subr.mxu0 0.0
    %398 = vmatpush1.msra.mxu0 0.0
    %399 = vmatprep.subr.mxu0 0.0
    %400 = vmatpush1.msra.mxu0 0.0
    %401 = vmatprep.subr.mxu0 0.0
    %402 = vmatpush1.msra.mxu0 0.0
    %403 = vmatprep.subr.mxu0 0.0
    %404 = vmatpush1.msra.mxu0 0.0
    %405 = vmatprep.subr.mxu0 0.0
    %406 = vmatpush1.msra.mxu0 0.0
    %407 = vmatprep.subr.mxu0 0.0
    %408 = vmatpush1.msra.mxu0 0.0
    %409 = vmatprep.subr.mxu0 0.0
    %410 = vmatpush1.msra.mxu0 0.0
    %411 = vmatprep.subr.mxu0 0.0
    %412 = vmatpush1.msra.mxu0 0.0
    %413 = vmatprep.mubr.f32.mxu0 0.0
    %414 = vmatmul.mubr.f32.gmra.mrb[0].mxu0 %v144
    %v415 = vpop.f32.mrb[0].mxu0
    %v416 = vadd.f32 0.0, %v415
    %v417 = vpop.f32.mrb[0].mxu0
    %418 = vmatprep.mubr.f32.mxu0 0.0
    %419 = vmatmul.mubr.f32.gmra.mrb[0].mxu0 %v147
    %v420 = vpop.f32.mrb[0].mxu0
    %v421 = vadd.f32 0.0, %v420
    %v422 = vpop.f32.mrb[0].mxu0
    %423 = vmatprep.mubr.f32.mxu0 0.0
    %424 = vmatmul.mubr.f32.gmra.mrb[0].mxu0 %v150
    %v425 = vpop.f32.mrb[0].mxu0
    %v426 = vadd.f32 0.0, %v425
    %v427 = vpop.f32.mrb[0].mxu0
    %428 = vmatprep.mubr.f32.mxu0 0.0
    %429 = vmatmul.mubr.f32.gmra.mrb[0].mxu0 %v153
    %v430 = vpop.f32.mrb[0].mxu0
    %v431 = vadd.f32 0.0, %v430
    %v432 = vpop.f32.mrb[0].mxu0
    %433 = vdwg.mxu0
    %s434 = scalar_lea.vmem [#allocation2], 64
    %435 = vst.msk [vmem:[%s434] sm:$0xff] %vm244, %v416
    %436 = vst.msk [vmem:[%s434 + $0x8] sm:$0xff] %vm244, %v421
    %437 = vst.msk [vmem:[%s434 + $0x10] sm:$0xff] %vm244, %v426
    %438 = vst.msk [vmem:[%s434 + $0x18] sm:$0xff] %vm244, %v431
    %v439 = vld [vmem:[#allocation11] sm:$0x1]
    %v441 = vlaneseq
    %v442 = vshrl.u32 %v441, 7
    %v443 = vsub.s32 0, %v442
    %v444 = vrot.slane %v439, %v443
    %v446 = vld [vmem:[%s339] sm:$0x3]
    %v447 = vadd.f32 %v444, %v446
    %v448 = vld [vmem:[%s434 + $0x2] sm:$0x3]
    %v449 = vadd.f32 %v447, %v448
    %v450 = vmax.f32 %v449, 0.0
    %vm451 = vcmask 123904
    %452 = vst.msk [vmem:[#allocation4] sm:$0x3] %vm451, %v450
    %v453 = vld [vmem:[#allocation2 + $0x2] sm:$0x3]
    %v454 = vadd.f32 %v444, %v453
    %v455 = vld [vmem:[%s339 + $0x4] sm:$0x3]
    %v456 = vadd.f32 %v454, %v455
    %v457 = vld [vmem:[%s434 + $0x6] sm:$0x3]
    %v458 = vadd.f32 %v456, %v457
    %v459 = vmax.f32 %v458, 0.0
    %460 = vst.msk [vmem:[#allocation4 + $0x2] sm:$0x3] %vm451, %v459
    %v461 = vld [vmem:[#allocation2 + $0x6] sm:$0x3]
    %v462 = vadd.f32 %v444, %v461
    %v463 = vld [vmem:[%s339 + $0x8] sm:$0x3]
    %v464 = vadd.f32 %v462, %v463
    %v465 = vld [vmem:[%s434 + $0xa] sm:$0x3]
    %v466 = vadd.f32 %v464, %v465
    %v467 = vmax.f32 %v466, 0.0
    %468 = vst.msk [vmem:[#allocation4 + $0x4] sm:$0x3] %vm451, %v467
    %v469 = vld [vmem:[#allocation2 + $0xa] sm:$0x3]
    %v470 = vadd.f32 %v444, %v469
    %v471 = vld [vmem:[%s339 + $0xc] sm:$0x3]
    %v472 = vadd.f32 %v470, %v471
    %v473 = vld [vmem:[%s434 + $0xe] sm:$0x3]
    %v474 = vadd.f32 %v472, %v473
    %v475 = vmax.f32 %v474, 0.0
    %476 = vst.msk [vmem:[#allocation4 + $0x6] sm:$0x3] %vm451, %v475
    %v477 = vld [vmem:[#allocation2 + $0xe] sm:$0x3]
    %v478 = vadd.f32 %v444, %v477
    %v479 = vld [vmem:[%s339 + $0x10] sm:$0x3]
    %v480 = vadd.f32 %v478, %v479
    %v481 = vld [vmem:[%s434 + $0x12] sm:$0x3]
    %v482 = vadd.f32 %v480, %v481
    %v483 = vmax.f32 %v482, 0.0
    %484 = vst.msk [vmem:[#allocation4 + $0x8] sm:$0x3] %vm451, %v483
    %v485 = vld [vmem:[#allocation2 + $0x12] sm:$0x3]
    %v486 = vadd.f32 %v444, %v485
    %v487 = vld [vmem:[%s339 + $0x14] sm:$0x3]
    %v488 = vadd.f32 %v486, %v487
    %v489 = vld [vmem:[%s434 + $0x16] sm:$0x3]
    %v490 = vadd.f32 %v488, %v489
    %v491 = vmax.f32 %v490, 0.0
    %492 = vst.msk [vmem:[#allocation4 + $0xa] sm:$0x3] %vm451, %v491
    %v493 = vld [vmem:[#allocation2 + $0x16] sm:$0x3]
    %v494 = vadd.f32 %v444, %v493
    %v495 = vld [vmem:[%s339 + $0x18] sm:$0x3]
    %v496 = vadd.f32 %v494, %v495
    %v497 = vld [vmem:[%s434 + $0x1a] sm:$0x3]
    %v498 = vadd.f32 %v496, %v497
    %v499 = vmax.f32 %v498, 0.0
    %500 = vst.msk [vmem:[#allocation4 + $0xc] sm:$0x3] %vm451, %v499
    %v501 = vld [vmem:[#allocation2 + $0x1a] sm:$0x3]
    %v502 = vadd.f32 %v444, %v501
    %v503 = vld [vmem:[%s339 + $0x1c] sm:$0x3]
    %v504 = vadd.f32 %v502, %v503
    %v505 = vld [vmem:[%s434 + $0x1e] sm:$0x3]
    %v506 = vadd.f32 %v504, %v505
    %v507 = vmax.f32 %v506, 0.0
    %508 = vst.msk [vmem:[#allocation4 + $0xe] sm:$0x3] %vm451, %v507
    %v509 = vld [vmem:[#allocation4] sm:$0xff]
    %v510 = vld [vmem:[#allocation4 + $0x8] sm:$0xff]
    %v511 = vld [vmem:[%s2] sm:$0xff]
    %v512 = vld [vmem:[%s2 + $0x8] sm:$0xff]
    %v514 = vsel %vm244, %v509, 0
    %v517 = vsel %vm244, %v510, 0
    %519 = vmatprep.subr.mxu0 0.0
    %520 = vmatpush1.msra.mxu0 %v511
    %521 = vmatprep.subr.mxu0 0.0
    %522 = vmatpush1.msra.mxu0 %v512
    %523 = vmatprep.subr.mxu0 0.0
    %524 = vmatpush1.msra.mxu0 0.0
    %525 = vmatprep.subr.mxu0 0.0
    %526 = vmatpush1.msra.mxu0 0.0
    %527 = vmatprep.subr.mxu0 0.0
    %528 = vmatpush1.msra.mxu0 0.0
    %529 = vmatprep.subr.mxu0 0.0
    %530 = vmatpush1.msra.mxu0 0.0
    %531 = vmatprep.subr.mxu0 0.0
    %532 = vmatpush1.msra.mxu0 0.0
    %533 = vmatprep.subr.mxu0 0.0
    %534 = vmatpush1.msra.mxu0 0.0
    %535 = vmatprep.subr.mxu0 0.0
    %536 = vmatpush1.msra.mxu0 0.0
    %537 = vmatprep.subr.mxu0 0.0
    %538 = vmatpush1.msra.mxu0 0.0
    %539 = vmatprep.subr.mxu0 0.0
    %540 = vmatpush1.msra.mxu0 0.0
    %541 = vmatprep.subr.mxu0 0.0
    %542 = vmatpush1.msra.mxu0 0.0
    %543 = vmatprep.subr.mxu0 0.0
    %544 = vmatpush1.msra.mxu0 0.0
    %545 = vmatprep.subr.mxu0 0.0
    %546 = vmatpush1.msra.mxu0 0.0
    %547 = vmatprep.subr.mxu0 0.0
    %548 = vmatpush1.msra.mxu0 0.0
    %549 = vmatprep.subr.mxu0 0.0
    %550 = vmatpush1.msra.mxu0 0.0
    %551 = vmatprep.subr.mxu0 0.0
    %552 = vmatpush1.msra.mxu0 0.0
    %553 = vmatprep.subr.mxu0 0.0
    %554 = vmatpush1.msra.mxu0 0.0
    %555 = vmatprep.subr.mxu0 0.0
    %556 = vmatpush1.msra.mxu0 0.0
    %557 = vmatprep.subr.mxu0 0.0
    %558 = vmatpush1.msra.mxu0 0.0
    %559 = vmatprep.subr.mxu0 0.0
    %560 = vmatpush1.msra.mxu0 0.0
    %561 = vmatprep.subr.mxu0 0.0
    %562 = vmatpush1.msra.mxu0 0.0
    %563 = vmatprep.subr.mxu0 0.0
    %564 = vmatpush1.msra.mxu0 0.0
    %565 = vmatprep.subr.mxu0 0.0
    %566 = vmatpush1.msra.mxu0 0.0
    %567 = vmatprep.subr.mxu0 0.0
    %568 = vmatpush1.msra.mxu0 0.0
    %569 = vmatprep.subr.mxu0 0.0
    %570 = vmatpush1.msra.mxu0 0.0
    %571 = vmatprep.subr.mxu0 0.0
    %572 = vmatpush1.msra.mxu0 0.0
    %573 = vmatprep.subr.mxu0 0.0
    %574 = vmatpush1.msra.mxu0 0.0
    %575 = vmatprep.subr.mxu0 0.0
    %576 = vmatpush1.msra.mxu0 0.0
    %577 = vmatprep.subr.mxu0 0.0
    %578 = vmatpush1.msra.mxu0 0.0
    %579 = vmatprep.subr.mxu0 0.0
    %580 = vmatpush1.msra.mxu0 0.0
    %581 = vmatprep.subr.mxu0 0.0
    %582 = vmatpush1.msra.mxu0 0.0
    %583 = vmatprep.mubr.f32.mxu0 0.0
    %584 = vmatmul.mubr.f32.gmra.mrb[0].mxu0 %v514
    %v585 = vpop.f32.mrb[0].mxu0
    %v586 = vadd.f32 0.0, %v585
    %v587 = vpop.f32.mrb[0].mxu0
    %588 = vmatprep.mubr.f32.mxu0 0.0
    %589 = vmatmul.mubr.f32.gmra.mrb[0].mxu0 %v517
    %v590 = vpop.f32.mrb[0].mxu0
    %v591 = vadd.f32 0.0, %v590
    %v592 = vpop.f32.mrb[0].mxu0
    %593 = vdwg.mxu0
    %vm594 = vcmask 261120
    %595 = vst.msk [vmem:[#allocation3] sm:$0xff] %vm594, %v586
    %596 = vst.msk [vmem:[#allocation3 + $0x8] sm:$0xff] %vm594, %v591
    %s597 = scalar_lea.vmem %s2, 16
    %v598 = vld [vmem:[%s597] sm:$0xff]
    %v599 = vld [vmem:[%s597 + $0x8] sm:$0xff]
    %600 = vmatprep.subr.mxu0 0.0
    %601 = vmatpush1.msra.mxu0 %v598
    %602 = vmatprep.subr.mxu0 0.0
    %603 = vmatpush1.msra.mxu0 %v599
    %604 = vmatprep.subr.mxu0 0.0
    %605 = vmatpush1.msra.mxu0 0.0
    %606 = vmatprep.subr.mxu0 0.0
    %607 = vmatpush1.msra.mxu0 0.0
    %608 = vmatprep.subr.mxu0 0.0
    %609 = vmatpush1.msra.mxu0 0.0
    %610 = vmatprep.subr.mxu0 0.0
    %611 = vmatpush1.msra.mxu0 0.0
    %612 = vmatprep.subr.mxu0 0.0
    %613 = vmatpush1.msra.mxu0 0.0
    %614 = vmatprep.subr.mxu0 0.0
    %615 = vmatpush1.msra.mxu0 0.0
    %616 = vmatprep.subr.mxu0 0.0
    %617 = vmatpush1.msra.mxu0 0.0
    %618 = vmatprep.subr.mxu0 0.0
    %619 = vmatpush1.msra.mxu0 0.0
    %620 = vmatprep.subr.mxu0 0.0
    %621 = vmatpush1.msra.mxu0 0.0
    %622 = vmatprep.subr.mxu0 0.0
    %623 = vmatpush1.msra.mxu0 0.0
    %624 = vmatprep.subr.mxu0 0.0
    %625 = vmatpush1.msra.mxu0 0.0
    %626 = vmatprep.subr.mxu0 0.0
    %627 = vmatpush1.msra.mxu0 0.0
    %628 = vmatprep.subr.mxu0 0.0
    %629 = vmatpush1.msra.mxu0 0.0
    %630 = vmatprep.subr.mxu0 0.0
    %631 = vmatpush1.msra.mxu0 0.0
    %632 = vmatprep.subr.mxu0 0.0
    %633 = vmatpush1.msra.mxu0 0.0
    %634 = vmatprep.subr.mxu0 0.0
    %635 = vmatpush1.msra.mxu0 0.0
    %636 = vmatprep.subr.mxu0 0.0
    %637 = vmatpush1.msra.mxu0 0.0
    %638 = vmatprep.subr.mxu0 0.0
    %639 = vmatpush1.msra.mxu0 0.0
    %640 = vmatprep.subr.mxu0 0.0
    %641 = vmatpush1.msra.mxu0 0.0
    %642 = vmatprep.subr.mxu0 0.0
    %643 = vmatpush1.msra.mxu0 0.0
    %644 = vmatprep.subr.mxu0 0.0
    %645 = vmatpush1.msra.mxu0 0.0
    %646 = vmatprep.subr.mxu0 0.0
    %647 = vmatpush1.msra.mxu0 0.0
    %648 = vmatprep.subr.mxu0 0.0
    %649 = vmatpush1.msra.mxu0 0.0
    %650 = vmatprep.subr.mxu0 0.0
    %651 = vmatpush1.msra.mxu0 0.0
    %652 = vmatprep.subr.mxu0 0.0
    %653 = vmatpush1.msra.mxu0 0.0
    %654 = vmatprep.subr.mxu0 0.0
    %655 = vmatpush1.msra.mxu0 0.0
    %656 = vmatprep.subr.mxu0 0.0
    %657 = vmatpush1.msra.mxu0 0.0
    %658 = vmatprep.subr.mxu0 0.0
    %659 = vmatpush1.msra.mxu0 0.0
    %660 = vmatprep.subr.mxu0 0.0
    %661 = vmatpush1.msra.mxu0 0.0
    %662 = vmatprep.subr.mxu0 0.0
    %663 = vmatpush1.msra.mxu0 0.0
    %664 = vmatprep.mubr.f32.mxu0 0.0
    %665 = vmatmul.mubr.f32.gmra.mrb[0].mxu0 %v514
    %v666 = vpop.f32.mrb[0].mxu0
    %v667 = vadd.f32 0.0, %v666
    %v668 = vpop.f32.mrb[0].mxu0
    %669 = vmatprep.mubr.f32.mxu0 0.0
    %670 = vmatmul.mubr.f32.gmra.mrb[0].mxu0 %v517
    %v671 = vpop.f32.mrb[0].mxu0
    %v672 = vadd.f32 0.0, %v671
    %v673 = vpop.f32.mrb[0].mxu0
    %674 = vdwg.mxu0
    %s675 = scalar_lea.vmem [#allocation3], 16
    %676 = vst.msk [vmem:[%s675] sm:$0xff] %vm594, %v667
    %677 = vst.msk [vmem:[%s675 + $0x8] sm:$0xff] %vm594, %v672
    %s678 = scalar_lea.vmem %s2, 32
    %v679 = vld [vmem:[%s678] sm:$0xff]
    %v680 = vld [vmem:[%s678 + $0x8] sm:$0xff]
    %681 = vmatprep.subr.mxu0 0.0
    %682 = vmatpush1.msra.mxu0 %v679
    %683 = vmatprep.subr.mxu0 0.0
    %684 = vmatpush1.msra.mxu0 %v680
    %685 = vmatprep.subr.mxu0 0.0
    %686 = vmatpush1.msra.mxu0 0.0
    %687 = vmatprep.subr.mxu0 0.0
    %688 = vmatpush1.msra.mxu0 0.0
    %689 = vmatprep.subr.mxu0 0.0
    %690 = vmatpush1.msra.mxu0 0.0
    %691 = vmatprep.subr.mxu0 0.0
    %692 = vmatpush1.msra.mxu0 0.0
    %693 = vmatprep.subr.mxu0 0.0
    %694 = vmatpush1.msra.mxu0 0.0
    %695 = vmatprep.subr.mxu0 0.0
    %696 = vmatpush1.msra.mxu0 0.0
    %697 = vmatprep.subr.mxu0 0.0
    %698 = vmatpush1.msra.mxu0 0.0
    %699 = vmatprep.subr.mxu0 0.0
    %700 = vmatpush1.msra.mxu0 0.0
    %701 = vmatprep.subr.mxu0 0.0
    %702 = vmatpush1.msra.mxu0 0.0
    %703 = vmatprep.subr.mxu0 0.0
    %704 = vmatpush1.msra.mxu0 0.0
    %705 = vmatprep.subr.mxu0 0.0
    %706 = vmatpush1.msra.mxu0 0.0
    %707 = vmatprep.subr.mxu0 0.0
    %708 = vmatpush1.msra.mxu0 0.0
    %709 = vmatprep.subr.mxu0 0.0
    %710 = vmatpush1.msra.mxu0 0.0
    %711 = vmatprep.subr.mxu0 0.0
    %712 = vmatpush1.msra.mxu0 0.0
    %713 = vmatprep.subr.mxu0 0.0
    %714 = vmatpush1.msra.mxu0 0.0
    %715 = vmatprep.subr.mxu0 0.0
    %716 = vmatpush1.msra.mxu0 0.0
    %717 = vmatprep.subr.mxu0 0.0
    %718 = vmatpush1.msra.mxu0 0.0
    %719 = vmatprep.subr.mxu0 0.0
    %720 = vmatpush1.msra.mxu0 0.0
    %721 = vmatprep.subr.mxu0 0.0
    %722 = vmatpush1.msra.mxu0 0.0
    %723 = vmatprep.subr.mxu0 0.0
    %724 = vmatpush1.msra.mxu0 0.0
    %725 = vmatprep.subr.mxu0 0.0
    %726 = vmatpush1.msra.mxu0 0.0
    %727 = vmatprep.subr.mxu0 0.0
    %728 = vmatpush1.msra.mxu0 0.0
    %729 = vmatprep.subr.mxu0 0.0
    %730 = vmatpush1.msra.mxu0 0.0
    %731 = vmatprep.subr.mxu0 0.0
    %732 = vmatpush1.msra.mxu0 0.0
    %733 = vmatprep.subr.mxu0 0.0
    %734 = vmatpush1.msra.mxu0 0.0
    %735 = vmatprep.subr.mxu0 0.0
    %736 = vmatpush1.msra.mxu0 0.0
    %737 = vmatprep.subr.mxu0 0.0
    %738 = vmatpush1.msra.mxu0 0.0
    %739 = vmatprep.subr.mxu0 0.0
    %740 = vmatpush1.msra.mxu0 0.0
    %741 = vmatprep.subr.mxu0 0.0
    %742 = vmatpush1.msra.mxu0 0.0
    %743 = vmatprep.subr.mxu0 0.0
    %744 = vmatpush1.msra.mxu0 0.0
    %745 = vmatprep.mubr.f32.mxu0 0.0
    %746 = vmatmul.mubr.f32.gmra.mrb[0].mxu0 %v514
    %v747 = vpop.f32.mrb[0].mxu0
    %v748 = vadd.f32 0.0, %v747
    %v749 = vpop.f32.mrb[0].mxu0
    %750 = vmatprep.mubr.f32.mxu0 0.0
    %751 = vmatmul.mubr.f32.gmra.mrb[0].mxu0 %v517
    %v752 = vpop.f32.mrb[0].mxu0
    %v753 = vadd.f32 0.0, %v752
    %v754 = vpop.f32.mrb[0].mxu0
    %755 = vdwg.mxu0
    %s756 = scalar_lea.vmem [#allocation3], 32
    %757 = vst.msk [vmem:[%s756] sm:$0xff] %vm594, %v748
    %758 = vst.msk [vmem:[%s756 + $0x8] sm:$0xff] %vm594, %v753
    %v759 = vld [vmem:[#allocation13] sm:$0x1]
    %v761 = vlaneseq
    %v762 = vshrl.u32 %v761, 7
    %v763 = vsub.s32 0, %v762
    %v764 = vrot.slane %v759, %v763
    %v766 = vld [vmem:[%s675] sm:$0x3]
    %v767 = vadd.f32 %v764, %v766
    %v768 = vld [vmem:[%s756 + $0x2] sm:$0x3]
    %v769 = vadd.f32 %v767, %v768
    %v770 = vmax.f32 %v769, 0.0
    %vm771 = vcmask 254976
    %772 = vst.msk [vmem:[#allocation5] sm:$0x3] %vm771, %v770
    %v773 = vld [vmem:[#allocation3 + $0x2] sm:$0x3]
    %v774 = vadd.f32 %v764, %v773
    %v775 = vld [vmem:[%s675 + $0x4] sm:$0x3]
    %v776 = vadd.f32 %v774, %v775
    %v777 = vld [vmem:[%s756 + $0x6] sm:$0x3]
    %v778 = vadd.f32 %v776, %v777
    %v779 = vmax.f32 %v778, 0.0
    %780 = vst.msk [vmem:[#allocation5 + $0x2] sm:$0x3] %vm771, %v779
    %v781 = vld [vmem:[#allocation3 + $0x6] sm:$0x3]
    %v782 = vadd.f32 %v764, %v781
    %v783 = vld [vmem:[%s675 + $0x8] sm:$0x3]
    %v784 = vadd.f32 %v782, %v783
    %v785 = vld [vmem:[%s756 + $0xa] sm:$0x3]
    %v786 = vadd.f32 %v784, %v785
    %v787 = vmax.f32 %v786, 0.0
    %788 = vst.msk [vmem:[#allocation5 + $0x4] sm:$0x3] %vm771, %v787
    %v789 = vld [vmem:[#allocation3 + $0xa] sm:$0x3]
    %v790 = vadd.f32 %v764, %v789
    %v791 = vld [vmem:[%s675 + $0xc] sm:$0x3]
    %v792 = vadd.f32 %v790, %v791
    %v793 = vld [vmem:[%s756 + $0xe] sm:$0x3]
    %v794 = vadd.f32 %v792, %v793
    %v795 = vmax.f32 %v794, 0.0
    %796 = vst.msk [vmem:[#allocation5 + $0x6] sm:$0x3] %vm771, %v795
    %v797 = vld [vmem:[#allocation5] sm:$0xff]
    %v798 = vld [vmem:[#allocation15] sm:$0xff]
    %v799 = vld [vmem:[#allocation15 + $0x8] sm:$0xff]
    %v800 = vld [vmem:[#allocation15 + $0x10] sm:$0xff]
    %v801 = vld [vmem:[#allocation15 + $0x18] sm:$0xff]
    %v802 = vld [vmem:[%s7] sm:$0x1]
    %v804 = vlaneseq
    %v805 = vshrl.u32 %v804, 7
    %v806 = vsub.s32 0, %v805
    %v807 = vrot.slane %v802, %v806
    %v810 = vsel %vm594, %v797, 0
    %812 = vmatprep.subr.mxu0 0.0
    %813 = vmatpush1.msra.mxu0 %v798
    %814 = vmatprep.subr.mxu0 0.0
    %815 = vmatpush1.msra.mxu0 %v799
    %816 = vmatprep.subr.mxu0 0.0
    %817 = vmatpush1.msra.mxu0 %v800
    %818 = vmatprep.subr.mxu0 0.0
    %819 = vmatpush1.msra.mxu0 %v801
    %820 = vmatprep.subr.mxu0 0.0
    %821 = vmatpush1.msra.mxu0 0.0
    %822 = vmatprep.subr.mxu0 0.0
    %823 = vmatpush1.msra.mxu0 0.0
    %824 = vmatprep.subr.mxu0 0.0
    %825 = vmatpush1.msra.mxu0 0.0
    %826 = vmatprep.subr.mxu0 0.0
    %827 = vmatpush1.msra.mxu0 0.0
    %828 = vmatprep.subr.mxu0 0.0
    %829 = vmatpush1.msra.mxu0 0.0
    %830 = vmatprep.subr.mxu0 0.0
    %831 = vmatpush1.msra.mxu0 0.0
    %832 = vmatprep.subr.mxu0 0.0
    %833 = vmatpush1.msra.mxu0 0.0
    %834 = vmatprep.subr.mxu0 0.0
    %835 = vmatpush1.msra.mxu0 0.0
    %836 = vmatprep.subr.mxu0 0.0
    %837 = vmatpush1.msra.mxu0 0.0
    %838 = vmatprep.subr.mxu0 0.0
    %839 = vmatpush1.msra.mxu0 0.0
    %840 = vmatprep.subr.mxu0 0.0
    %841 = vmatpush1.msra.mxu0 0.0
    %842 = vmatprep.subr.mxu0 0.0
    %843 = vmatpush1.msra.mxu0 0.0
    %844 = vmatprep.subr.mxu0 0.0
    %845 = vmatpush1.msra.mxu0 0.0
    %846 = vmatprep.subr.mxu0 0.0
    %847 = vmatpush1.msra.mxu0 0.0
    %848 = vmatprep.subr.mxu0 0.0
    %849 = vmatpush1.msra.mxu0 0.0
    %850 = vmatprep.subr.mxu0 0.0
    %851 = vmatpush1.msra.mxu0 0.0
    %852 = vmatprep.subr.mxu0 0.0
    %853 = vmatpush1.msra.mxu0 0.0
    %854 = vmatprep.subr.mxu0 0.0
    %855 = vmatpush1.msra.mxu0 0.0
    %856 = vmatprep.subr.mxu0 0.0
    %857 = vmatpush1.msra.mxu0 0.0
    %858 = vmatprep.subr.mxu0 0.0
    %859 = vmatpush1.msra.mxu0 0.0
    %860 = vmatprep.subr.mxu0 0.0
    %861 = vmatpush1.msra.mxu0 0.0
    %862 = vmatprep.subr.mxu0 0.0
    %863 = vmatpush1.msra.mxu0 0.0
    %864 = vmatprep.subr.mxu0 0.0
    %865 = vmatpush1.msra.mxu0 0.0
    %866 = vmatprep.subr.mxu0 0.0
    %867 = vmatpush1.msra.mxu0 0.0
    %868 = vmatprep.subr.mxu0 0.0
    %869 = vmatpush1.msra.mxu0 0.0
    %870 = vmatprep.subr.mxu0 0.0
    %871 = vmatpush1.msra.mxu0 0.0
    %872 = vmatprep.subr.mxu0 0.0
    %873 = vmatpush1.msra.mxu0 0.0
    %874 = vmatprep.subr.mxu0 0.0
    %875 = vmatpush1.msra.mxu0 0.0
    %876 = vmatprep.mubr.f32.mxu0 0.0
    %877 = vmatmul.mubr.f32.gmra.mrb[0].mxu0 %v810
    %v878 = vpop.f32.mrb[0].mxu0
    %v879 = vadd.f32 %v807, %v878
    %v880 = vpop.f32.mrb[0].mxu0
    %881 = vdwg.mxu0
    %882 = vst.msk [vmem:[#allocation6] sm:$0xff] %vm594, %v879
    %s883 = scalar_lea.vmem [#allocation15], 32
    %v884 = vld [vmem:[%s883] sm:$0xff]
    %v885 = vld [vmem:[%s883 + $0x8] sm:$0xff]
    %v886 = vld [vmem:[%s883 + $0x10] sm:$0xff]
    %v887 = vld [vmem:[%s883 + $0x18] sm:$0xff]
    %s888 = scalar_lea.vmem %s7, 1
    %v889 = vld [vmem:[%s888] sm:$0x1]
    %v891 = vlaneseq
    %v892 = vshrl.u32 %v891, 7
    %v893 = vsub.s32 0, %v892
    %v894 = vrot.slane %v889, %v893
    %896 = vmatprep.subr.mxu0 0.0
    %897 = vmatpush1.msra.mxu0 %v884
    %898 = vmatprep.subr.mxu0 0.0
    %899 = vmatpush1.msra.mxu0 %v885
    %900 = vmatprep.subr.mxu0 0.0
    %901 = vmatpush1.msra.mxu0 %v886
    %902 = vmatprep.subr.mxu0 0.0
    %903 = vmatpush1.msra.mxu0 %v887
    %904 = vmatprep.subr.mxu0 0.0
    %905 = vmatpush1.msra.mxu0 0.0
    %906 = vmatprep.subr.mxu0 0.0
    %907 = vmatpush1.msra.mxu0 0.0
    %908 = vmatprep.subr.mxu0 0.0
    %909 = vmatpush1.msra.mxu0 0.0
    %910 = vmatprep.subr.mxu0 0.0
    %911 = vmatpush1.msra.mxu0 0.0
    %912 = vmatprep.subr.mxu0 0.0
    %913 = vmatpush1.msra.mxu0 0.0
    %914 = vmatprep.subr.mxu0 0.0
    %915 = vmatpush1.msra.mxu0 0.0
    %916 = vmatprep.subr.mxu0 0.0
    %917 = vmatpush1.msra.mxu0 0.0
    %918 = vmatprep.subr.mxu0 0.0
    %919 = vmatpush1.msra.mxu0 0.0
    %920 = vmatprep.subr.mxu0 0.0
    %921 = vmatpush1.msra.mxu0 0.0
    %922 = vmatprep.subr.mxu0 0.0
    %923 = vmatpush1.msra.mxu0 0.0
    %924 = vmatprep.subr.mxu0 0.0
    %925 = vmatpush1.msra.mxu0 0.0
    %926 = vmatprep.subr.mxu0 0.0
    %927 = vmatpush1.msra.mxu0 0.0
    %928 = vmatprep.subr.mxu0 0.0
    %929 = vmatpush1.msra.mxu0 0.0
    %930 = vmatprep.subr.mxu0 0.0
    %931 = vmatpush1.msra.mxu0 0.0
    %932 = vmatprep.subr.mxu0 0.0
    %933 = vmatpush1.msra.mxu0 0.0
    %934 = vmatprep.subr.mxu0 0.0
    %935 = vmatpush1.msra.mxu0 0.0
    %936 = vmatprep.subr.mxu0 0.0
    %937 = vmatpush1.msra.mxu0 0.0
    %938 = vmatprep.subr.mxu0 0.0
    %939 = vmatpush1.msra.mxu0 0.0
    %940 = vmatprep.subr.mxu0 0.0
    %941 = vmatpush1.msra.mxu0 0.0
    %942 = vmatprep.subr.mxu0 0.0
    %943 = vmatpush1.msra.mxu0 0.0
    %944 = vmatprep.subr.mxu0 0.0
    %945 = vmatpush1.msra.mxu0 0.0
    %946 = vmatprep.subr.mxu0 0.0
    %947 = vmatpush1.msra.mxu0 0.0
    %948 = vmatprep.subr.mxu0 0.0
    %949 = vmatpush1.msra.mxu0 0.0
    %950 = vmatprep.subr.mxu0 0.0
    %951 = vmatpush1.msra.mxu0 0.0
    %952 = vmatprep.subr.mxu0 0.0
    %953 = vmatpush1.msra.mxu0 0.0
    %954 = vmatprep.subr.mxu0 0.0
    %955 = vmatpush1.msra.mxu0 0.0
    %956 = vmatprep.subr.mxu0 0.0
    %957 = vmatpush1.msra.mxu0 0.0
    %958 = vmatprep.subr.mxu0 0.0
    %959 = vmatpush1.msra.mxu0 0.0
    %960 = vmatprep.mubr.f32.mxu0 0.0
    %961 = vmatmul.mubr.f32.gmra.mrb[0].mxu0 %v810
    %v962 = vpop.f32.mrb[0].mxu0
    %v963 = vadd.f32 %v894, %v962
    %v964 = vpop.f32.mrb[0].mxu0
    %965 = vdwg.mxu0
    %s966 = scalar_lea.vmem [#allocation6], 8
    %967 = vst.msk [vmem:[%s966] sm:$0xff] %vm594, %v963
    %s968 = scalar_lea.vmem [#allocation15], 64
    %v969 = vld [vmem:[%s968] sm:$0xff]
    %v970 = vld [vmem:[%s968 + $0x8] sm:$0xff]
    %v971 = vld [vmem:[%s968 + $0x10] sm:$0xff]
    %v972 = vld [vmem:[%s968 + $0x18] sm:$0xff]
    %s973 = scalar_lea.vmem %s7, 2
    %v974 = vld [vmem:[%s973] sm:$0x1]
    %v976 = vlaneseq
    %v977 = vshrl.u32 %v976, 7
    %v978 = vsub.s32 0, %v977
    %v979 = vrot.slane %v974, %v978
    %981 = vmatprep.subr.mxu0 0.0
    %982 = vmatpush1.msra.mxu0 %v969
    %983 = vmatprep.subr.mxu0 0.0
    %984 = vmatpush1.msra.mxu0 %v970
    %985 = vmatprep.subr.mxu0 0.0
    %986 = vmatpush1.msra.mxu0 %v971
    %987 = vmatprep.subr.mxu0 0.0
    %988 = vmatpush1.msra.mxu0 %v972
    %989 = vmatprep.subr.mxu0 0.0
    %990 = vmatpush1.msra.mxu0 0.0
    %991 = vmatprep.subr.mxu0 0.0
    %992 = vmatpush1.msra.mxu0 0.0
    %993 = vmatprep.subr.mxu0 0.0
    %994 = vmatpush1.msra.mxu0 0.0
    %995 = vmatprep.subr.mxu0 0.0
    %996 = vmatpush1.msra.mxu0 0.0
    %997 = vmatprep.subr.mxu0 0.0
    %998 = vmatpush1.msra.mxu0 0.0
    %999 = vmatprep.subr.mxu0 0.0
    %1000 = vmatpush1.msra.mxu0 0.0
    %1001 = vmatprep.subr.mxu0 0.0
    %1002 = vmatpush1.msra.mxu0 0.0
    %1003 = vmatprep.subr.mxu0 0.0
    %1004 = vmatpush1.msra.mxu0 0.0
    %1005 = vmatprep.subr.mxu0 0.0
    %1006 = vmatpush1.msra.mxu0 0.0
    %1007 = vmatprep.subr.mxu0 0.0
    %1008 = vmatpush1.msra.mxu0 0.0
    %1009 = vmatprep.subr.mxu0 0.0
    %1010 = vmatpush1.msra.mxu0 0.0
    %1011 = vmatprep.subr.mxu0 0.0
    %1012 = vmatpush1.msra.mxu0 0.0
    %1013 = vmatprep.subr.mxu0 0.0
    %1014 = vmatpush1.msra.mxu0 0.0
    %1015 = vmatprep.subr.mxu0 0.0
    %1016 = vmatpush1.msra.mxu0 0.0
    %1017 = vmatprep.subr.mxu0 0.0
    %1018 = vmatpush1.msra.mxu0 0.0
    %1019 = vmatprep.subr.mxu0 0.0
    %1020 = vmatpush1.msra.mxu0 0.0
    %1021 = vmatprep.subr.mxu0 0.0
    %1022 = vmatpush1.msra.mxu0 0.0
    %1023 = vmatprep.subr.mxu0 0.0
    %1024 = vmatpush1.msra.mxu0 0.0
    %1025 = vmatprep.subr.mxu0 0.0
    %1026 = vmatpush1.msra.mxu0 0.0
    %1027 = vmatprep.subr.mxu0 0.0
    %1028 = vmatpush1.msra.mxu0 0.0
    %1029 = vmatprep.subr.mxu0 0.0
    %1030 = vmatpush1.msra.mxu0 0.0
    %1031 = vmatprep.subr.mxu0 0.0
    %1032 = vmatpush1.msra.mxu0 0.0
    %1033 = vmatprep.subr.mxu0 0.0
    %1034 = vmatpush1.msra.mxu0 0.0
    %1035 = vmatprep.subr.mxu0 0.0
    %1036 = vmatpush1.msra.mxu0 0.0
    %1037 = vmatprep.subr.mxu0 0.0
    %1038 = vmatpush1.msra.mxu0 0.0
    %1039 = vmatprep.subr.mxu0 0.0
    %1040 = vmatpush1.msra.mxu0 0.0
    %1041 = vmatprep.subr.mxu0 0.0
    %1042 = vmatpush1.msra.mxu0 0.0
    %1043 = vmatprep.subr.mxu0 0.0
    %1044 = vmatpush1.msra.mxu0 0.0
    %1045 = vmatprep.mubr.f32.mxu0 0.0
    %1046 = vmatmul.mubr.f32.gmra.mrb[0].mxu0 %v810
    %v1047 = vpop.f32.mrb[0].mxu0
    %v1048 = vadd.f32 %v979, %v1047
    %v1049 = vpop.f32.mrb[0].mxu0
    %1050 = vdwg.mxu0
    %s1051 = scalar_lea.vmem [#allocation6], 16
    %1052 = vst.msk [vmem:[%s1051] sm:$0xff] %vm594, %v1048
    %v1053 = vld [vmem:[#allocation16] sm:$0xff]
    %v1054 = vld [vmem:[#allocation16 + $0x8] sm:$0xff]
    %v1055 = vld [vmem:[#allocation16 + $0x10] sm:$0xff]
    %v1056 = vld [vmem:[#allocation16 + $0x18] sm:$0xff]
    %s1057 = scalar_lea.vmem [#allocation16], 32
    %v1058 = vld [vmem:[%s1057] sm:$0xff]
    %v1059 = vld [vmem:[%s1057 + $0x8] sm:$0xff]
    %v1060 = vld [vmem:[%s1057 + $0x10] sm:$0xff]
    %v1061 = vld [vmem:[%s1057 + $0x18] sm:$0xff]
    %s1062 = scalar_lea.vmem [#allocation16], 64
    %v1063 = vld [vmem:[%s1062] sm:$0xff]
    %v1064 = vld [vmem:[%s1062 + $0x8] sm:$0xff]
    %v1065 = vld [vmem:[%s1062 + $0x10] sm:$0xff]
    %v1066 = vld [vmem:[%s1062 + $0x18] sm:$0xff]
    %v1067 = vld [vmem:[%s8] sm:$0x1]
    %v1069 = vlaneseq
    %v1070 = vshrl.u32 %v1069, 7
    %v1071 = vsub.s32 0, %v1070
    %v1072 = vrot.slane %v1067, %v1071
    %s1074 = scalar_lea.vmem %s8, 1
    %v1075 = vld [vmem:[%s1074] sm:$0x1]
    %v1077 = vlaneseq
    %v1078 = vshrl.u32 %v1077, 7
    %v1079 = vsub.s32 0, %v1078
    %v1080 = vrot.slane %v1075, %v1079
    %s1082 = scalar_lea.vmem %s8, 2
    %v1083 = vld [vmem:[%s1082] sm:$0x1]
    %v1085 = vlaneseq
    %v1086 = vshrl.u32 %v1085, 7
    %v1087 = vsub.s32 0, %v1086
    %v1088 = vrot.slane %v1083, %v1087
    %v1090 = vld [vmem:[#allocation6] sm:$0x3]
    %v1091 = vld [vmem:[%s966] sm:$0x3]
    %v1092 = vld [vmem:[%s1051] sm:$0x3]
    %v1094 = vsel %vm594, 0.0, 0
    %1096 = vmatprep.subr.mxu0 0.0
    %1097 = vmatpush1.msra.mxu0 %v1053
    %1098 = vmatprep.subr.mxu0 0.0
    %1099 = vmatpush1.msra.mxu0 %v1054
    %1100 = vmatprep.subr.mxu0 0.0
    %1101 = vmatpush1.msra.mxu0 %v1055
    %1102 = vmatprep.subr.mxu0 0.0
    %1103 = vmatpush1.msra.mxu0 %v1056
    %1104 = vmatprep.subr.mxu0 0.0
    %1105 = vmatpush1.msra.mxu0 0.0
    %1106 = vmatprep.subr.mxu0 0.0
    %1107 = vmatpush1.msra.mxu0 0.0
    %1108 = vmatprep.subr.mxu0 0.0
    %1109 = vmatpush1.msra.mxu0 0.0
    %1110 = vmatprep.subr.mxu0 0.0
    %1111 = vmatpush1.msra.mxu0 0.0
    %1112 = vmatprep.subr.mxu0 0.0
    %1113 = vmatpush1.msra.mxu0 0.0
    %1114 = vmatprep.subr.mxu0 0.0
    %1115 = vmatpush1.msra.mxu0 0.0
    %1116 = vmatprep.subr.mxu0 0.0
    %1117 = vmatpush1.msra.mxu0 0.0
    %1118 = vmatprep.subr.mxu0 0.0
    %1119 = vmatpush1.msra.mxu0 0.0
    %1120 = vmatprep.subr.mxu0 0.0
    %1121 = vmatpush1.msra.mxu0 0.0
    %1122 = vmatprep.subr.mxu0 0.0
    %1123 = vmatpush1.msra.mxu0 0.0
    %1124 = vmatprep.subr.mxu0 0.0
    %1125 = vmatpush1.msra.mxu0 0.0
    %1126 = vmatprep.subr.mxu0 0.0
    %1127 = vmatpush1.msra.mxu0 0.0
    %1128 = vmatprep.subr.mxu0 0.0
    %1129 = vmatpush1.msra.mxu0 0.0
    %1130 = vmatprep.subr.mxu0 0.0
    %1131 = vmatpush1.msra.mxu0 0.0
    %1132 = vmatprep.subr.mxu0 0.0
    %1133 = vmatpush1.msra.mxu0 0.0
    %1134 = vmatprep.subr.mxu0 0.0
    %1135 = vmatpush1.msra.mxu0 0.0
    %1136 = vmatprep.subr.mxu0 0.0
    %1137 = vmatpush1.msra.mxu0 0.0
    %1138 = vmatprep.subr.mxu0 0.0
    %1139 = vmatpush1.msra.mxu0 0.0
    %1140 = vmatprep.subr.mxu0 0.0
    %1141 = vmatpush1.msra.mxu0 0.0
    %1142 = vmatprep.subr.mxu0 0.0
    %1143 = vmatpush1.msra.mxu0 0.0
    %1144 = vmatprep.subr.mxu0 0.0
    %1145 = vmatpush1.msra.mxu0 0.0
    %1146 = vmatprep.subr.mxu0 0.0
    %1147 = vmatpush1.msra.mxu0 0.0
    %1148 = vmatprep.subr.mxu0 0.0
    %1149 = vmatpush1.msra.mxu0 0.0
    %1150 = vmatprep.subr.mxu0 0.0
    %1151 = vmatpush1.msra.mxu0 0.0
    %1152 = vmatprep.subr.mxu0 0.0
    %1153 = vmatpush1.msra.mxu0 0.0
    %1154 = vmatprep.subr.mxu0 0.0
    %1155 = vmatpush1.msra.mxu0 0.0
    %1156 = vmatprep.subr.mxu0 0.0
    %1157 = vmatpush1.msra.mxu0 0.0
    %1158 = vmatprep.subr.mxu0 0.0
    %1159 = vmatpush1.msra.mxu0 0.0
    %1160 = vmatprep.mubr.f32.mxu0 0.0
    %1161 = vmatmul.mubr.f32.gmra.mrb[0].mxu0 %v1094
    %v1162 = vpop.f32.mrb[0].mxu0
    %v1163 = vadd.f32 %v1072, %v1162
    %v1164 = vpop.f32.mrb[0].mxu0
    %1165 = vdwg.mxu0
    %1166 = vmatprep.subr.mxu0 0.0
    %1167 = vmatpush1.msra.mxu0 %v1058
    %1168 = vmatprep.subr.mxu0 0.0
    %1169 = vmatpush1.msra.mxu0 %v1059
    %1170 = vmatprep.subr.mxu0 0.0
    %1171 = vmatpush1.msra.mxu0 %v1060
    %1172 = vmatprep.subr.mxu0 0.0
    %1173 = vmatpush1.msra.mxu0 %v1061
    %1174 = vmatprep.subr.mxu0 0.0
    %1175 = vmatpush1.msra.mxu0 0.0
    %1176 = vmatprep.subr.mxu0 0.0
    %1177 = vmatpush1.msra.mxu0 0.0
    %1178 = vmatprep.subr.mxu0 0.0
    %1179 = vmatpush1.msra.mxu0 0.0
    %1180 = vmatprep.subr.mxu0 0.0
    %1181 = vmatpush1.msra.mxu0 0.0
    %1182 = vmatprep.subr.mxu0 0.0
    %1183 = vmatpush1.msra.mxu0 0.0
    %1184 = vmatprep.subr.mxu0 0.0
    %1185 = vmatpush1.msra.mxu0 0.0
    %1186 = vmatprep.subr.mxu0 0.0
    %1187 = vmatpush1.msra.mxu0 0.0
    %1188 = vmatprep.subr.mxu0 0.0
    %1189 = vmatpush1.msra.mxu0 0.0
    %1190 = vmatprep.subr.mxu0 0.0
    %1191 = vmatpush1.msra.mxu0 0.0
    %1192 = vmatprep.subr.mxu0 0.0
    %1193 = vmatpush1.msra.mxu0 0.0
    %1194 = vmatprep.subr.mxu0 0.0
    %1195 = vmatpush1.msra.mxu0 0.0
    %1196 = vmatprep.subr.mxu0 0.0
    %1197 = vmatpush1.msra.mxu0 0.0
    %1198 = vmatprep.subr.mxu0 0.0
    %1199 = vmatpush1.msra.mxu0 0.0
    %1200 = vmatprep.subr.mxu0 0.0
    %1201 = vmatpush1.msra.mxu0 0.0
    %1202 = vmatprep.subr.mxu0 0.0
    %1203 = vmatpush1.msra.mxu0 0.0
    %1204 = vmatprep.subr.mxu0 0.0
    %1205 = vmatpush1.msra.mxu0 0.0
    %1206 = vmatprep.subr.mxu0 0.0
    %1207 = vmatpush1.msra.mxu0 0.0
    %1208 = vmatprep.subr.mxu0 0.0
    %1209 = vmatpush1.msra.mxu0 0.0
    %1210 = vmatprep.subr.mxu0 0.0
    %1211 = vmatpush1.msra.mxu0 0.0
    %1212 = vmatprep.subr.mxu0 0.0
    %1213 = vmatpush1.msra.mxu0 0.0
    %1214 = vmatprep.subr.mxu0 0.0
    %1215 = vmatpush1.msra.mxu0 0.0
    %1216 = vmatprep.subr.mxu0 0.0
    %1217 = vmatpush1.msra.mxu0 0.0
    %1218 = vmatprep.subr.mxu0 0.0
    %1219 = vmatpush1.msra.mxu0 0.0
    %1220 = vmatprep.subr.mxu0 0.0
    %1221 = vmatpush1.msra.mxu0 0.0
    %1222 = vmatprep.subr.mxu0 0.0
    %1223 = vmatpush1.msra.mxu0 0.0
    %1224 = vmatprep.subr.mxu0 0.0
    %1225 = vmatpush1.msra.mxu0 0.0
    %1226 = vmatprep.subr.mxu0 0.0
    %1227 = vmatpush1.msra.mxu0 0.0
    %1228 = vmatprep.subr.mxu0 0.0
    %1229 = vmatpush1.msra.mxu0 0.0
    %1230 = vmatprep.mubr.f32.mxu0 0.0
    %1231 = vmatmul.mubr.f32.gmra.mrb[0].mxu0 %v1094
    %v1232 = vpop.f32.mrb[0].mxu0
    %v1233 = vadd.f32 %v1080, %v1232
    %v1234 = vpop.f32.mrb[0].mxu0
    %1235 = vdwg.mxu0
    %1236 = vmatprep.subr.mxu0 0.0
    %1237 = vmatpush1.msra.mxu0 %v1063
    %1238 = vmatprep.subr.mxu0 0.0
    %1239 = vmatpush1.msra.mxu0 %v1064
    %1240 = vmatprep.subr.mxu0 0.0
    %1241 = vmatpush1.msra.mxu0 %v1065
    %1242 = vmatprep.subr.mxu0 0.0
    %1243 = vmatpush1.msra.mxu0 %v1066
    %1244 = vmatprep.subr.mxu0 0.0
    %1245 = vmatpush1.msra.mxu0 0.0
    %1246 = vmatprep.subr.mxu0 0.0
    %1247 = vmatpush1.msra.mxu0 0.0
    %1248 = vmatprep.subr.mxu0 0.0
    %1249 = vmatpush1.msra.mxu0 0.0
    %1250 = vmatprep.subr.mxu0 0.0
    %1251 = vmatpush1.msra.mxu0 0.0
    %1252 = vmatprep.subr.mxu0 0.0
    %1253 = vmatpush1.msra.mxu0 0.0
    %1254 = vmatprep.subr.mxu0 0.0
    %1255 = vmatpush1.msra.mxu0 0.0
    %1256 = vmatprep.subr.mxu0 0.0
    %1257 = vmatpush1.msra.mxu0 0.0
    %1258 = vmatprep.subr.mxu0 0.0
    %1259 = vmatpush1.msra.mxu0 0.0
    %1260 = vmatprep.subr.mxu0 0.0
    %1261 = vmatpush1.msra.mxu0 0.0
    %1262 = vmatprep.subr.mxu0 0.0
    %1263 = vmatpush1.msra.mxu0 0.0
    %1264 = vmatprep.subr.mxu0 0.0
    %1265 = vmatpush1.msra.mxu0 0.0
    %1266 = vmatprep.subr.mxu0 0.0
    %1267 = vmatpush1.msra.mxu0 0.0
    %1268 = vmatprep.subr.mxu0 0.0
    %1269 = vmatpush1.msra.mxu0 0.0
    %1270 = vmatprep.subr.mxu0 0.0
    %1271 = vmatpush1.msra.mxu0 0.0
    %1272 = vmatprep.subr.mxu0 0.0
    %1273 = vmatpush1.msra.mxu0 0.0
    %1274 = vmatprep.subr.mxu0 0.0
    %1275 = vmatpush1.msra.mxu0 0.0
    %1276 = vmatprep.subr.mxu0 0.0
    %1277 = vmatpush1.msra.mxu0 0.0
    %1278 = vmatprep.subr.mxu0 0.0
    %1279 = vmatpush1.msra.mxu0 0.0
    %1280 = vmatprep.subr.mxu0 0.0
    %1281 = vmatpush1.msra.mxu0 0.0
    %1282 = vmatprep.subr.mxu0 0.0
    %1283 = vmatpush1.msra.mxu0 0.0
    %1284 = vmatprep.subr.mxu0 0.0
    %1285 = vmatpush1.msra.mxu0 0.0
    %1286 = vmatprep.subr.mxu0 0.0
    %1287 = vmatpush1.msra.mxu0 0.0
    %1288 = vmatprep.subr.mxu0 0.0
    %1289 = vmatpush1.msra.mxu0 0.0
    %1290 = vmatprep.subr.mxu0 0.0
    %1291 = vmatpush1.msra.mxu0 0.0
    %1292 = vmatprep.subr.mxu0 0.0
    %1293 = vmatpush1.msra.mxu0 0.0
    %1294 = vmatprep.subr.mxu0 0.0
    %1295 = vmatpush1.msra.mxu0 0.0
    %1296 = vmatprep.subr.mxu0 0.0
    %1297 = vmatpush1.msra.mxu0 0.0
    %1298 = vmatprep.subr.mxu0 0.0
    %1299 = vmatpush1.msra.mxu0 0.0
    %1300 = vmatprep.mubr.f32.mxu0 0.0
    %1301 = vmatmul.mubr.f32.gmra.mrb[0].mxu0 %v1094
    %v1302 = vpop.f32.mrb[0].mxu0
    %v1303 = vadd.f32 %v1088, %v1302
    %v1304 = vpop.f32.mrb[0].mxu0
    %1305 = vdwg.mxu0
    %v1306 = vadd.f32 %v1090, %v1163
    %v1307 = vxor.u32 %v1306, 2147483648
    %v1308 = vmul.f32 %v1307, 1.442695
    %v1309 = vpow.pop %v1308
    %v1310 = vadd.f32 %v1309, 1.0
    %v1311 = vrcp.pop %v1310
    %v1312 = vmul.f32 1.0, %v1311
    %v1313 = vadd.f32 %v1091, %v1233
    %v1314 = vxor.u32 %v1313, 2147483648
    %v1315 = vmul.f32 %v1314, 1.442695
    %v1316 = vpow.pop %v1315
    %v1317 = vadd.f32 %v1316, 1.0
    %v1318 = vrcp.pop %v1317
    %v1319 = vmul.f32 1.0, %v1318
    %v1320 = vmul.f32 %v1312, %v1303
    %v1321 = vadd.f32 %v1092, %v1320
    %v1322 = vtanh.pop %v1321
    %v1323 = vsub.f32 1.0, %v1319
    %v1324 = vmul.f32 %v1323, %v1322
    %v1325 = vmul.f32 %v1319, 0.0
    %v1326 = vadd.f32 %v1324, %v1325
    %1327 = vst.msk [vmem:[#allocation7] sm:$0x3] %vm771, %v1326
    %v1328 = vld [vmem:[#allocation6 + $0x2] sm:$0x3]
    %v1329 = vld [vmem:[%s966 + $0x2] sm:$0x3]
    %v1330 = vld [vmem:[%s1051 + $0x2] sm:$0x3]
    %v1332 = vsel %vm594, %v1326, 0
    %1334 = vmatprep.subr.mxu0 0.0
    %1335 = vmatpush1.msra.mxu0 %v1053
    %1336 = vmatprep.subr.mxu0 0.0
    %1337 = vmatpush1.msra.mxu0 %v1054
    %1338 = vmatprep.subr.mxu0 0.0
    %1339 = vmatpush1.msra.mxu0 %v1055
    %1340 = vmatprep.subr.mxu0 0.0
    %1341 = vmatpush1.msra.mxu0 %v1056
    %1342 = vmatprep.subr.mxu0 0.0
    %1343 = vmatpush1.msra.mxu0 0.0
    %1344 = vmatprep.subr.mxu0 0.0
    %1345 = vmatpush1.msra.mxu0 0.0
    %1346 = vmatprep.subr.mxu0 0.0
    %1347 = vmatpush1.msra.mxu0 0.0
    %1348 = vmatprep.subr.mxu0 0.0
    %1349 = vmatpush1.msra.mxu0 0.0
    %1350 = vmatprep.subr.mxu0 0.0
    %1351 = vmatpush1.msra.mxu0 0.0
    %1352 = vmatprep.subr.mxu0 0.0
    %1353 = vmatpush1.msra.mxu0 0.0
    %1354 = vmatprep.subr.mxu0 0.0
    %1355 = vmatpush1.msra.mxu0 0.0
    %1356 = vmatprep.subr.mxu0 0.0
    %1357 = vmatpush1.msra.mxu0 0.0
    %1358 = vmatprep.subr.mxu0 0.0
    %1359 = vmatpush1.msra.mxu0 0.0
    %1360 = vmatprep.subr.mxu0 0.0
    %1361 = vmatpush1.msra.mxu0 0.0
    %1362 = vmatprep.subr.mxu0 0.0
    %1363 = vmatpush1.msra.mxu0 0.0
    %1364 = vmatprep.subr.mxu0 0.0
    %1365 = vmatpush1.msra.mxu0 0.0
    %1366 = vmatprep.subr.mxu0 0.0
    %1367 = vmatpush1.msra.mxu0 0.0
    %1368 = vmatprep.subr.mxu0 0.0
    %1369 = vmatpush1.msra.mxu0 0.0
    %1370 = vmatprep.subr.mxu0 0.0
    %1371 = vmatpush1.msra.mxu0 0.0
    %1372 = vmatprep.subr.mxu0 0.0
    %1373 = vmatpush1.msra.mxu0 0.0
    %1374 = vmatprep.subr.mxu0 0.0
    %1375 = vmatpush1.msra.mxu0 0.0
    %1376 = vmatprep.subr.mxu0 0.0
    %1377 = vmatpush1.msra.mxu0 0.0
    %1378 = vmatprep.subr.mxu0 0.0
    %1379 = vmatpush1.msra.mxu0 0.0
    %1380 = vmatprep.subr.mxu0 0.0
    %1381 = vmatpush1.msra.mxu0 0.0
    %1382 = vmatprep.subr.mxu0 0.0
    %1383 = vmatpush1.msra.mxu0 0.0
    %1384 = vmatprep.subr.mxu0 0.0
    %1385 = vmatpush1.msra.mxu0 0.0
    %1386 = vmatprep.subr.mxu0 0.0
    %1387 = vmatpush1.msra.mxu0 0.0
    %1388 = vmatprep.subr.mxu0 0.0
    %1389 = vmatpush1.msra.mxu0 0.0
    %1390 = vmatprep.subr.mxu0 0.0
    %1391 = vmatpush1.msra.mxu0 0.0
    %1392 = vmatprep.subr.mxu0 0.0
    %1393 = vmatpush1.msra.mxu0 0.0
    %1394 = vmatprep.subr.mxu0 0.0
    %1395 = vmatpush1.msra.mxu0 0.0
    %1396 = vmatprep.subr.mxu0 0.0
    %1397 = vmatpush1.msra.mxu0 0.0
    %1398 = vmatprep.mubr.f32.mxu0 0.0
    %1399 = vmatmul.mubr.f32.gmra.mrb[0].mxu0 %v1332
    %v1400 = vpop.f32.mrb[0].mxu0
    %v1401 = vadd.f32 %v1072, %v1400
    %v1402 = vpop.f32.mrb[0].mxu0
    %1403 = vdwg.mxu0
    %1404 = vmatprep.subr.mxu0 0.0
    %1405 = vmatpush1.msra.mxu0 %v1058
    %1406 = vmatprep.subr.mxu0 0.0
    %1407 = vmatpush1.msra.mxu0 %v1059
    %1408 = vmatprep.subr.mxu0 0.0
    %1409 = vmatpush1.msra.mxu0 %v1060
    %1410 = vmatprep.subr.mxu0 0.0
    %1411 = vmatpush1.msra.mxu0 %v1061
    %1412 = vmatprep.subr.mxu0 0.0
    %1413 = vmatpush1.msra.mxu0 0.0
    %1414 = vmatprep.subr.mxu0 0.0
    %1415 = vmatpush1.msra.mxu0 0.0
    %1416 = vmatprep.subr.mxu0 0.0
    %1417 = vmatpush1.msra.mxu0 0.0
    %1418 = vmatprep.subr.mxu0 0.0
    %1419 = vmatpush1.msra.mxu0 0.0
    %1420 = vmatprep.subr.mxu0 0.0
    %1421 = vmatpush1.msra.mxu0 0.0
    %1422 = vmatprep.subr.mxu0 0.0
    %1423 = vmatpush1.msra.mxu0 0.0
    %1424 = vmatprep.subr.mxu0 0.0
    %1425 = vmatpush1.msra.mxu0 0.0
    %1426 = vmatprep.subr.mxu0 0.0
    %1427 = vmatpush1.msra.mxu0 0.0
    %1428 = vmatprep.subr.mxu0 0.0
    %1429 = vmatpush1.msra.mxu0 0.0
    %1430 = vmatprep.subr.mxu0 0.0
    %1431 = vmatpush1.msra.mxu0 0.0
    %1432 = vmatprep.subr.mxu0 0.0
    %1433 = vmatpush1.msra.mxu0 0.0
    %1434 = vmatprep.subr.mxu0 0.0
    %1435 = vmatpush1.msra.mxu0 0.0
    %1436 = vmatprep.subr.mxu0 0.0
    %1437 = vmatpush1.msra.mxu0 0.0
    %1438 = vmatprep.subr.mxu0 0.0
    %1439 = vmatpush1.msra.mxu0 0.0
    %1440 = vmatprep.subr.mxu0 0.0
    %1441 = vmatpush1.msra.mxu0 0.0
    %1442 = vmatprep.subr.mxu0 0.0
    %1443 = vmatpush1.msra.mxu0 0.0
    %1444 = vmatprep.subr.mxu0 0.0
    %1445 = vmatpush1.msra.mxu0 0.0
    %1446 = vmatprep.subr.mxu0 0.0
    %1447 = vmatpush1.msra.mxu0 0.0
    %1448 = vmatprep.subr.mxu0 0.0
    %1449 = vmatpush1.msra.mxu0 0.0
    %1450 = vmatprep.subr.mxu0 0.0
    %1451 = vmatpush1.msra.mxu0 0.0
    %1452 = vmatprep.subr.mxu0 0.0
    %1453 = vmatpush1.msra.mxu0 0.0
    %1454 = vmatprep.subr.mxu0 0.0
    %1455 = vmatpush1.msra.mxu0 0.0
    %1456 = vmatprep.subr.mxu0 0.0
    %1457 = vmatpush1.msra.mxu0 0.0
    %1458 = vmatprep.subr.mxu0 0.0
    %1459 = vmatpush1.msra.mxu0 0.0
    %1460 = vmatprep.subr.mxu0 0.0
    %1461 = vmatpush1.msra.mxu0 0.0
    %1462 = vmatprep.subr.mxu0 0.0
    %1463 = vmatpush1.msra.mxu0 0.0
    %1464 = vmatprep.subr.mxu0 0.0
    %1465 = vmatpush1.msra.mxu0 0.0
    %1466 = vmatprep.subr.mxu0 0.0
    %1467 = vmatpush1.msra.mxu0 0.0
    %1468 = vmatprep.mubr.f32.mxu0 0.0
    %1469 = vmatmul.mubr.f32.gmra.mrb[0].mxu0 %v1332
    %v1470 = vpop.f32.mrb[0].mxu0
    %v1471 = vadd.f32 %v1080, %v1470
    %v1472 = vpop.f32.mrb[0].mxu0
    %1473 = vdwg.mxu0
    %1474 = vmatprep.subr.mxu0 0.0
    %1475 = vmatpush1.msra.mxu0 %v1063
    %1476 = vmatprep.subr.mxu0 0.0
    %1477 = vmatpush1.msra.mxu0 %v1064
    %1478 = vmatprep.subr.mxu0 0.0
    %1479 = vmatpush1.msra.mxu0 %v1065
    %1480 = vmatprep.subr.mxu0 0.0
    %1481 = vmatpush1.msra.mxu0 %v1066
    %1482 = vmatprep.subr.mxu0 0.0
    %1483 = vmatpush1.msra.mxu0 0.0
    %1484 = vmatprep.subr.mxu0 0.0
    %1485 = vmatpush1.msra.mxu0 0.0
    %1486 = vmatprep.subr.mxu0 0.0
    %1487 = vmatpush1.msra.mxu0 0.0
    %1488 = vmatprep.subr.mxu0 0.0
    %1489 = vmatpush1.msra.mxu0 0.0
    %1490 = vmatprep.subr.mxu0 0.0
    %1491 = vmatpush1.msra.mxu0 0.0
    %1492 = vmatprep.subr.mxu0 0.0
    %1493 = vmatpush1.msra.mxu0 0.0
    %1494 = vmatprep.subr.mxu0 0.0
    %1495 = vmatpush1.msra.mxu0 0.0
    %1496 = vmatprep.subr.mxu0 0.0
    %1497 = vmatpush1.msra.mxu0 0.0
    %1498 = vmatprep.subr.mxu0 0.0
    %1499 = vmatpush1.msra.mxu0 0.0
    %1500 = vmatprep.subr.mxu0 0.0
    %1501 = vmatpush1.msra.mxu0 0.0
    %1502 = vmatprep.subr.mxu0 0.0
    %1503 = vmatpush1.msra.mxu0 0.0
    %1504 = vmatprep.subr.mxu0 0.0
    %1505 = vmatpush1.msra.mxu0 0.0
    %1506 = vmatprep.subr.mxu0 0.0
    %1507 = vmatpush1.msra.mxu0 0.0
    %1508 = vmatprep.subr.mxu0 0.0
    %1509 = vmatpush1.msra.mxu0 0.0
    %1510 = vmatprep.subr.mxu0 0.0
    %1511 = vmatpush1.msra.mxu0 0.0
    %1512 = vmatprep.subr.mxu0 0.0
    %1513 = vmatpush1.msra.mxu0 0.0
    %1514 = vmatprep.subr.mxu0 0.0
    %1515 = vmatpush1.msra.mxu0 0.0
    %1516 = vmatprep.subr.mxu0 0.0
    %1517 = vmatpush1.msra.mxu0 0.0
    %1518 = vmatprep.subr.mxu0 0.0
    %1519 = vmatpush1.msra.mxu0 0.0
    %1520 = vmatprep.subr.mxu0 0.0
    %1521 = vmatpush1.msra.mxu0 0.0
    %1522 = vmatprep.subr.mxu0 0.0
    %1523 = vmatpush1.msra.mxu0 0.0
    %1524 = vmatprep.subr.mxu0 0.0
    %1525 = vmatpush1.msra.mxu0 0.0
    %1526 = vmatprep.subr.mxu0 0.0
    %1527 = vmatpush1.msra.mxu0 0.0
    %1528 = vmatprep.subr.mxu0 0.0
    %1529 = vmatpush1.msra.mxu0 0.0
    %1530 = vmatprep.subr.mxu0 0.0
    %1531 = vmatpush1.msra.mxu0 0.0
    %1532 = vmatprep.subr.mxu0 0.0
    %1533 = vmatpush1.msra.mxu0 0.0
    %1534 = vmatprep.subr.mxu0 0.0
    %1535 = vmatpush1.msra.mxu0 0.0
    %1536 = vmatprep.subr.mxu0 0.0
    %1537 = vmatpush1.msra.mxu0 0.0
    %1538 = vmatprep.mubr.f32.mxu0 0.0
    %1539 = vmatmul.mubr.f32.gmra.mrb[0].mxu0 %v1332
    %v1540 = vpop.f32.mrb[0].mxu0
    %v1541 = vadd.f32 %v1088, %v1540
    %v1542 = vpop.f32.mrb[0].mxu0
    %1543 = vdwg.mxu0
    %v1544 = vadd.f32 %v1328, %v1401
    %v1545 = vxor.u32 %v1544, 2147483648
    %v1546 = vmul.f32 %v1545, 1.442695
    %v1547 = vpow.pop %v1546
    %v1548 = vadd.f32 %v1547, 1.0
    %v1549 = vrcp.pop %v1548
    %v1550 = vmul.f32 1.0, %v1549
    %v1551 = vadd.f32 %v1329, %v1471
    %v1552 = vxor.u32 %v1551, 2147483648
    %v1553 = vmul.f32 %v1552, 1.442695
    %v1554 = vpow.pop %v1553
    %v1555 = vadd.f32 %v1554, 1.0
    %v1556 = vrcp.pop %v1555
    %v1557 = vmul.f32 1.0, %v1556
    %v1558 = vmul.f32 %v1550, %v1541
    %v1559 = vadd.f32 %v1330, %v1558
    %v1560 = vtanh.pop %v1559
    %v1561 = vsub.f32 1.0, %v1557
    %v1562 = vmul.f32 %v1561, %v1560
    %v1563 = vmul.f32 %v1557, %v1326
    %v1564 = vadd.f32 %v1562, %v1563
    %1565 = vst.msk [vmem:[#allocation7 + $0x2] sm:$0x3] %vm771, %v1564
    %v1566 = vld [vmem:[#allocation6 + $0x4] sm:$0x3]
    %v1567 = vld [vmem:[%s966 + $0x4] sm:$0x3]
    %v1568 = vld [vmem:[%s1051 + $0x4] sm:$0x3]
    %v1570 = vsel %vm594, %v1564, 0
    %1572 = vmatprep.subr.mxu0 0.0
    %1573 = vmatpush1.msra.mxu0 %v1053
    %1574 = vmatprep.subr.mxu0 0.0
    %1575 = vmatpush1.msra.mxu0 %v1054
    %1576 = vmatprep.subr.mxu0 0.0
    %1577 = vmatpush1.msra.mxu0 %v1055
    %1578 = vmatprep.subr.mxu0 0.0
    %1579 = vmatpush1.msra.mxu0 %v1056
    %1580 = vmatprep.subr.mxu0 0.0
    %1581 = vmatpush1.msra.mxu0 0.0
    %1582 = vmatprep.subr.mxu0 0.0
    %1583 = vmatpush1.msra.mxu0 0.0
    %1584 = vmatprep.subr.mxu0 0.0
    %1585 = vmatpush1.msra.mxu0 0.0
    %1586 = vmatprep.subr.mxu0 0.0
    %1587 = vmatpush1.msra.mxu0 0.0
    %1588 = vmatprep.subr.mxu0 0.0
    %1589 = vmatpush1.msra.mxu0 0.0
    %1590 = vmatprep.subr.mxu0 0.0
    %1591 = vmatpush1.msra.mxu0 0.0
    %1592 = vmatprep.subr.mxu0 0.0
    %1593 = vmatpush1.msra.mxu0 0.0
    %1594 = vmatprep.subr.mxu0 0.0
    %1595 = vmatpush1.msra.mxu0 0.0
    %1596 = vmatprep.subr.mxu0 0.0
    %1597 = vmatpush1.msra.mxu0 0.0
    %1598 = vmatprep.subr.mxu0 0.0
    %1599 = vmatpush1.msra.mxu0 0.0
    %1600 = vmatprep.subr.mxu0 0.0
    %1601 = vmatpush1.msra.mxu0 0.0
    %1602 = vmatprep.subr.mxu0 0.0
    %1603 = vmatpush1.msra.mxu0 0.0
    %1604 = vmatprep.subr.mxu0 0.0
    %1605 = vmatpush1.msra.mxu0 0.0
    %1606 = vmatprep.subr.mxu0 0.0
    %1607 = vmatpush1.msra.mxu0 0.0
    %1608 = vmatprep.subr.mxu0 0.0
    %1609 = vmatpush1.msra.mxu0 0.0
    %1610 = vmatprep.subr.mxu0 0.0
    %1611 = vmatpush1.msra.mxu0 0.0
    %1612 = vmatprep.subr.mxu0 0.0
    %1613 = vmatpush1.msra.mxu0 0.0
    %1614 = vmatprep.subr.mxu0 0.0
    %1615 = vmatpush1.msra.mxu0 0.0
    %1616 = vmatprep.subr.mxu0 0.0
    %1617 = vmatpush1.msra.mxu0 0.0
    %1618 = vmatprep.subr.mxu0 0.0
    %1619 = vmatpush1.msra.mxu0 0.0
    %1620 = vmatprep.subr.mxu0 0.0
    %1621 = vmatpush1.msra.mxu0 0.0
    %1622 = vmatprep.subr.mxu0 0.0
    %1623 = vmatpush1.msra.mxu0 0.0
    %1624 = vmatprep.subr.mxu0 0.0
    %1625 = vmatpush1.msra.mxu0 0.0
    %1626 = vmatprep.subr.mxu0 0.0
    %1627 = vmatpush1.msra.mxu0 0.0
    %1628 = vmatprep.subr.mxu0 0.0
    %1629 = vmatpush1.msra.mxu0 0.0
    %1630 = vmatprep.subr.mxu0 0.0
    %1631 = vmatpush1.msra.mxu0 0.0
    %1632 = vmatprep.subr.mxu0 0.0
    %1633 = vmatpush1.msra.mxu0 0.0
    %1634 = vmatprep.subr.mxu0 0.0
    %1635 = vmatpush1.msra.mxu0 0.0
    %1636 = vmatprep.mubr.f32.mxu0 0.0
    %1637 = vmatmul.mubr.f32.gmra.mrb[0].mxu0 %v1570
    %v1638 = vpop.f32.mrb[0].mxu0
    %v1639 = vadd.f32 %v1072, %v1638
    %v1640 = vpop.f32.mrb[0].mxu0
    %1641 = vdwg.mxu0
    %1642 = vmatprep.subr.mxu0 0.0
    %1643 = vmatpush1.msra.mxu0 %v1058
    %1644 = vmatprep.subr.mxu0 0.0
    %1645 = vmatpush1.msra.mxu0 %v1059
    %1646 = vmatprep.subr.mxu0 0.0
    %1647 = vmatpush1.msra.mxu0 %v1060
    %1648 = vmatprep.subr.mxu0 0.0
    %1649 = vmatpush1.msra.mxu0 %v1061
    %1650 = vmatprep.subr.mxu0 0.0
    %1651 = vmatpush1.msra.mxu0 0.0
    %1652 = vmatprep.subr.mxu0 0.0
    %1653 = vmatpush1.msra.mxu0 0.0
    %1654 = vmatprep.subr.mxu0 0.0
    %1655 = vmatpush1.msra.mxu0 0.0
    %1656 = vmatprep.subr.mxu0 0.0
    %1657 = vmatpush1.msra.mxu0 0.0
    %1658 = vmatprep.subr.mxu0 0.0
    %1659 = vmatpush1.msra.mxu0 0.0
    %1660 = vmatprep.subr.mxu0 0.0
    %1661 = vmatpush1.msra.mxu0 0.0
    %1662 = vmatprep.subr.mxu0 0.0
    %1663 = vmatpush1.msra.mxu0 0.0
    %1664 = vmatprep.subr.mxu0 0.0
    %1665 = vmatpush1.msra.mxu0 0.0
    %1666 = vmatprep.subr.mxu0 0.0
    %1667 = vmatpush1.msra.mxu0 0.0
    %1668 = vmatprep.subr.mxu0 0.0
    %1669 = vmatpush1.msra.mxu0 0.0
    %1670 = vmatprep.subr.mxu0 0.0
    %1671 = vmatpush1.msra.mxu0 0.0
    %1672 = vmatprep.subr.mxu0 0.0
    %1673 = vmatpush1.msra.mxu0 0.0
    %1674 = vmatprep.subr.mxu0 0.0
    %1675 = vmatpush1.msra.mxu0 0.0
    %1676 = vmatprep.subr.mxu0 0.0
    %1677 = vmatpush1.msra.mxu0 0.0
    %1678 = vmatprep.subr.mxu0 0.0
    %1679 = vmatpush1.msra.mxu0 0.0
    %1680 = vmatprep.subr.mxu0 0.0
    %1681 = vmatpush1.msra.mxu0 0.0
    %1682 = vmatprep.subr.mxu0 0.0
    %1683 = vmatpush1.msra.mxu0 0.0
    %1684 = vmatprep.subr.mxu0 0.0
    %1685 = vmatpush1.msra.mxu0 0.0
    %1686 = vmatprep.subr.mxu0 0.0
    %1687 = vmatpush1.msra.mxu0 0.0
    %1688 = vmatprep.subr.mxu0 0.0
    %1689 = vmatpush1.msra.mxu0 0.0
    %1690 = vmatprep.subr.mxu0 0.0
    %1691 = vmatpush1.msra.mxu0 0.0
    %1692 = vmatprep.subr.mxu0 0.0
    %1693 = vmatpush1.msra.mxu0 0.0
    %1694 = vmatprep.subr.mxu0 0.0
    %1695 = vmatpush1.msra.mxu0 0.0
    %1696 = vmatprep.subr.mxu0 0.0
    %1697 = vmatpush1.msra.mxu0 0.0
    %1698 = vmatprep.subr.mxu0 0.0
    %1699 = vmatpush1.msra.mxu0 0.0
    %1700 = vmatprep.subr.mxu0 0.0
    %1701 = vmatpush1.msra.mxu0 0.0
    %1702 = vmatprep.subr.mxu0 0.0
    %1703 = vmatpush1.msra.mxu0 0.0
    %1704 = vmatprep.subr.mxu0 0.0
    %1705 = vmatpush1.msra.mxu0 0.0
    %1706 = vmatprep.mubr.f32.mxu0 0.0
    %1707 = vmatmul.mubr.f32.gmra.mrb[0].mxu0 %v1570
    %v1708 = vpop.f32.mrb[0].mxu0
    %v1709 = vadd.f32 %v1080, %v1708
    %v1710 = vpop.f32.mrb[0].mxu0
    %1711 = vdwg.mxu0
    %1712 = vmatprep.subr.mxu0 0.0
    %1713 = vmatpush1.msra.mxu0 %v1063
    %1714 = vmatprep.subr.mxu0 0.0
    %1715 = vmatpush1.msra.mxu0 %v1064
    %1716 = vmatprep.subr.mxu0 0.0
    %1717 = vmatpush1.msra.mxu0 %v1065
    %1718 = vmatprep.subr.mxu0 0.0
    %1719 = vmatpush1.msra.mxu0 %v1066
    %1720 = vmatprep.subr.mxu0 0.0
    %1721 = vmatpush1.msra.mxu0 0.0
    %1722 = vmatprep.subr.mxu0 0.0
    %1723 = vmatpush1.msra.mxu0 0.0
    %1724 = vmatprep.subr.mxu0 0.0
    %1725 = vmatpush1.msra.mxu0 0.0
    %1726 = vmatprep.subr.mxu0 0.0
    %1727 = vmatpush1.msra.mxu0 0.0
    %1728 = vmatprep.subr.mxu0 0.0
    %1729 = vmatpush1.msra.mxu0 0.0
    %1730 = vmatprep.subr.mxu0 0.0
    %1731 = vmatpush1.msra.mxu0 0.0
    %1732 = vmatprep.subr.mxu0 0.0
    %1733 = vmatpush1.msra.mxu0 0.0
    %1734 = vmatprep.subr.mxu0 0.0
    %1735 = vmatpush1.msra.mxu0 0.0
    %1736 = vmatprep.subr.mxu0 0.0
    %1737 = vmatpush1.msra.mxu0 0.0
    %1738 = vmatprep.subr.mxu0 0.0
    %1739 = vmatpush1.msra.mxu0 0.0
    %1740 = vmatprep.subr.mxu0 0.0
    %1741 = vmatpush1.msra.mxu0 0.0
    %1742 = vmatprep.subr.mxu0 0.0
    %1743 = vmatpush1.msra.mxu0 0.0
    %1744 = vmatprep.subr.mxu0 0.0
    %1745 = vmatpush1.msra.mxu0 0.0
    %1746 = vmatprep.subr.mxu0 0.0
    %1747 = vmatpush1.msra.mxu0 0.0
    %1748 = vmatprep.subr.mxu0 0.0
    %1749 = vmatpush1.msra.mxu0 0.0
    %1750 = vmatprep.subr.mxu0 0.0
    %1751 = vmatpush1.msra.mxu0 0.0
    %1752 = vmatprep.subr.mxu0 0.0
    %1753 = vmatpush1.msra.mxu0 0.0
    %1754 = vmatprep.subr.mxu0 0.0
    %1755 = vmatpush1.msra.mxu0 0.0
    %1756 = vmatprep.subr.mxu0 0.0
    %1757 = vmatpush1.msra.mxu0 0.0
    %1758 = vmatprep.subr.mxu0 0.0
    %1759 = vmatpush1.msra.mxu0 0.0
    %1760 = vmatprep.subr.mxu0 0.0
    %1761 = vmatpush1.msra.mxu0 0.0
    %1762 = vmatprep.subr.mxu0 0.0
    %1763 = vmatpush1.msra.mxu0 0.0
    %1764 = vmatprep.subr.mxu0 0.0
    %1765 = vmatpush1.msra.mxu0 0.0
    %1766 = vmatprep.subr.mxu0 0.0
    %1767 = vmatpush1.msra.mxu0 0.0
    %1768 = vmatprep.subr.mxu0 0.0
    %1769 = vmatpush1.msra.mxu0 0.0
    %1770 = vmatprep.subr.mxu0 0.0
    %1771 = vmatpush1.msra.mxu0 0.0
    %1772 = vmatprep.subr.mxu0 0.0
    %1773 = vmatpush1.msra.mxu0 0.0
    %1774 = vmatprep.subr.mxu0 0.0
    %1775 = vmatpush1.msra.mxu0 0.0
    %1776 = vmatprep.mubr.f32.mxu0 0.0
    %1777 = vmatmul.mubr.f32.gmra.mrb[0].mxu0 %v1570
    %v1778 = vpop.f32.mrb[0].mxu0
    %v1779 = vadd.f32 %v1088, %v1778
    %v1780 = vpop.f32.mrb[0].mxu0
    %1781 = vdwg.mxu0
    %v1782 = vadd.f32 %v1566, %v1639
    %v1783 = vxor.u32 %v1782, 2147483648
    %v1784 = vmul.f32 %v1783, 1.442695
    %v1785 = vpow.pop %v1784
    %v1786 = vadd.f32 %v1785, 1.0
    %v1787 = vrcp.pop %v1786
    %v1788 = vmul.f32 1.0, %v1787
    %v1789 = vadd.f32 %v1567, %v1709
    %v1790 = vxor.u32 %v1789, 2147483648
    %v1791 = vmul.f32 %v1790, 1.442695
    %v1792 = vpow.pop %v1791
    %v1793 = vadd.f32 %v1792, 1.0
    %v1794 = vrcp.pop %v1793
    %v1795 = vmul.f32 1.0, %v1794
    %v1796 = vmul.f32 %v1788, %v1779
    %v1797 = vadd.f32 %v1568, %v1796
    %v1798 = vtanh.pop %v1797
    %v1799 = vsub.f32 1.0, %v1795
    %v1800 = vmul.f32 %v1799, %v1798
    %v1801 = vmul.f32 %v1795, %v1564
    %v1802 = vadd.f32 %v1800, %v1801
    %1803 = vst.msk [vmem:[#allocation7 + $0x4] sm:$0x3] %vm771, %v1802
    %v1804 = vld [vmem:[#allocation6 + $0x6] sm:$0x3]
    %v1805 = vld [vmem:[%s966 + $0x6] sm:$0x3]
    %v1806 = vld [vmem:[%s1051 + $0x6] sm:$0x3]
    %v1808 = vsel %vm594, %v1802, 0
    %1810 = vmatprep.subr.mxu0 0.0
    %1811 = vmatpush1.msra.mxu0 %v1053
    %1812 = vmatprep.subr.mxu0 0.0
    %1813 = vmatpush1.msra.mxu0 %v1054
    %1814 = vmatprep.subr.mxu0 0.0
    %1815 = vmatpush1.msra.mxu0 %v1055
    %1816 = vmatprep.subr.mxu0 0.0
    %1817 = vmatpush1.msra.mxu0 %v1056
    %1818 = vmatprep.subr.mxu0 0.0
    %1819 = vmatpush1.msra.mxu0 0.0
    %1820 = vmatprep.subr.mxu0 0.0
    %1821 = vmatpush1.msra.mxu0 0.0
    %1822 = vmatprep.subr.mxu0 0.0
    %1823 = vmatpush1.msra.mxu0 0.0
    %1824 = vmatprep.subr.mxu0 0.0
    %1825 = vmatpush1.msra.mxu0 0.0
    %1826 = vmatprep.subr.mxu0 0.0
    %1827 = vmatpush1.msra.mxu0 0.0
    %1828 = vmatprep.subr.mxu0 0.0
    %1829 = vmatpush1.msra.mxu0 0.0
    %1830 = vmatprep.subr.mxu0 0.0
    %1831 = vmatpush1.msra.mxu0 0.0
    %1832 = vmatprep.subr.mxu0 0.0
    %1833 = vmatpush1.msra.mxu0 0.0
    %1834 = vmatprep.subr.mxu0 0.0
    %1835 = vmatpush1.msra.mxu0 0.0
    %1836 = vmatprep.subr.mxu0 0.0
    %1837 = vmatpush1.msra.mxu0 0.0
    %1838 = vmatprep.subr.mxu0 0.0
    %1839 = vmatpush1.msra.mxu0 0.0
    %1840 = vmatprep.subr.mxu0 0.0
    %1841 = vmatpush1.msra.mxu0 0.0
    %1842 = vmatprep.subr.mxu0 0.0
    %1843 = vmatpush1.msra.mxu0 0.0
    %1844 = vmatprep.subr.mxu0 0.0
    %1845 = vmatpush1.msra.mxu0 0.0
    %1846 = vmatprep.subr.mxu0 0.0
    %1847 = vmatpush1.msra.mxu0 0.0
    %1848 = vmatprep.subr.mxu0 0.0
    %1849 = vmatpush1.msra.mxu0 0.0
    %1850 = vmatprep.subr.mxu0 0.0
    %1851 = vmatpush1.msra.mxu0 0.0
    %1852 = vmatprep.subr.mxu0 0.0
    %1853 = vmatpush1.msra.mxu0 0.0
    %1854 = vmatprep.subr.mxu0 0.0
    %1855 = vmatpush1.msra.mxu0 0.0
    %1856 = vmatprep.subr.mxu0 0.0
    %1857 = vmatpush1.msra.mxu0 0.0
    %1858 = vmatprep.subr.mxu0 0.0
    %1859 = vmatpush1.msra.mxu0 0.0
    %1860 = vmatprep.subr.mxu0 0.0
    %1861 = vmatpush1.msra.mxu0 0.0
    %1862 = vmatprep.subr.mxu0 0.0
    %1863 = vmatpush1.msra.mxu0 0.0
    %1864 = vmatprep.subr.mxu0 0.0
    %1865 = vmatpush1.msra.mxu0 0.0
    %1866 = vmatprep.subr.mxu0 0.0
    %1867 = vmatpush1.msra.mxu0 0.0
    %1868 = vmatprep.subr.mxu0 0.0
    %1869 = vmatpush1.msra.mxu0 0.0
    %1870 = vmatprep.subr.mxu0 0.0
    %1871 = vmatpush1.msra.mxu0 0.0
    %1872 = vmatprep.subr.mxu0 0.0
    %1873 = vmatpush1.msra.mxu0 0.0
    %1874 = vmatprep.mubr.f32.mxu0 0.0
    %1875 = vmatmul.mubr.f32.gmra.mrb[0].mxu0 %v1808
    %v1876 = vpop.f32.mrb[0].mxu0
    %v1877 = vadd.f32 %v1072, %v1876
    %v1878 = vpop.f32.mrb[0].mxu0
    %1879 = vdwg.mxu0
    %1880 = vmatprep.subr.mxu0 0.0
    %1881 = vmatpush1.msra.mxu0 %v1058
    %1882 = vmatprep.subr.mxu0 0.0
    %1883 = vmatpush1.msra.mxu0 %v1059
    %1884 = vmatprep.subr.mxu0 0.0
    %1885 = vmatpush1.msra.mxu0 %v1060
    %1886 = vmatprep.subr.mxu0 0.0
    %1887 = vmatpush1.msra.mxu0 %v1061
    %1888 = vmatprep.subr.mxu0 0.0
    %1889 = vmatpush1.msra.mxu0 0.0
    %1890 = vmatprep.subr.mxu0 0.0
    %1891 = vmatpush1.msra.mxu0 0.0
    %1892 = vmatprep.subr.mxu0 0.0
    %1893 = vmatpush1.msra.mxu0 0.0
    %1894 = vmatprep.subr.mxu0 0.0
    %1895 = vmatpush1.msra.mxu0 0.0
    %1896 = vmatprep.subr.mxu0 0.0
    %1897 = vmatpush1.msra.mxu0 0.0
    %1898 = vmatprep.subr.mxu0 0.0
    %1899 = vmatpush1.msra.mxu0 0.0
    %1900 = vmatprep.subr.mxu0 0.0
    %1901 = vmatpush1.msra.mxu0 0.0
    %1902 = vmatprep.subr.mxu0 0.0
    %1903 = vmatpush1.msra.mxu0 0.0
    %1904 = vmatprep.subr.mxu0 0.0
    %1905 = vmatpush1.msra.mxu0 0.0
    %1906 = vmatprep.subr.mxu0 0.0
    %1907 = vmatpush1.msra.mxu0 0.0
    %1908 = vmatprep.subr.mxu0 0.0
    %1909 = vmatpush1.msra.mxu0 0.0
    %1910 = vmatprep.subr.mxu0 0.0
    %1911 = vmatpush1.msra.mxu0 0.0
    %1912 = vmatprep.subr.mxu0 0.0
    %1913 = vmatpush1.msra.mxu0 0.0
    %1914 = vmatprep.subr.mxu0 0.0
    %1915 = vmatpush1.msra.mxu0 0.0
    %1916 = vmatprep.subr.mxu0 0.0
    %1917 = vmatpush1.msra.mxu0 0.0
    %1918 = vmatprep.subr.mxu0 0.0
    %1919 = vmatpush1.msra.mxu0 0.0
    %1920 = vmatprep.subr.mxu0 0.0
    %1921 = vmatpush1.msra.mxu0 0.0
    %1922 = vmatprep.subr.mxu0 0.0
    %1923 = vmatpush1.msra.mxu0 0.0
    %1924 = vmatprep.subr.mxu0 0.0
    %1925 = vmatpush1.msra.mxu0 0.0
    %1926 = vmatprep.subr.mxu0 0.0
    %1927 = vmatpush1.msra.mxu0 0.0
    %1928 = vmatprep.subr.mxu0 0.0
    %1929 = vmatpush1.msra.mxu0 0.0
    %1930 = vmatprep.subr.mxu0 0.0
    %1931 = vmatpush1.msra.mxu0 0.0
    %1932 = vmatprep.subr.mxu0 0.0
    %1933 = vmatpush1.msra.mxu0 0.0
    %1934 = vmatprep.subr.mxu0 0.0
    %1935 = vmatpush1.msra.mxu0 0.0
    %1936 = vmatprep.subr.mxu0 0.0
    %1937 = vmatpush1.msra.mxu0 0.0
    %1938 = vmatprep.subr.mxu0 0.0
    %1939 = vmatpush1.msra.mxu0 0.0
    %1940 = vmatprep.subr.mxu0 0.0
    %1941 = vmatpush1.msra.mxu0 0.0
    %1942 = vmatprep.subr.mxu0 0.0
    %1943 = vmatpush1.msra.mxu0 0.0
    %1944 = vmatprep.mubr.f32.mxu0 0.0
    %1945 = vmatmul.mubr.f32.gmra.mrb[0].mxu0 %v1808
    %v1946 = vpop.f32.mrb[0].mxu0
    %v1947 = vadd.f32 %v1080, %v1946
    %v1948 = vpop.f32.mrb[0].mxu0
    %1949 = vdwg.mxu0
    %1950 = vmatprep.subr.mxu0 0.0
    %1951 = vmatpush1.msra.mxu0 %v1063
    %1952 = vmatprep.subr.mxu0 0.0
    %1953 = vmatpush1.msra.mxu0 %v1064
    %1954 = vmatprep.subr.mxu0 0.0
    %1955 = vmatpush1.msra.mxu0 %v1065
    %1956 = vmatprep.subr.mxu0 0.0
    %1957 = vmatpush1.msra.mxu0 %v1066
    %1958 = vmatprep.subr.mxu0 0.0
    %1959 = vmatpush1.msra.mxu0 0.0
    %1960 = vmatprep.subr.mxu0 0.0
    %1961 = vmatpush1.msra.mxu0 0.0
    %1962 = vmatprep.subr.mxu0 0.0
    %1963 = vmatpush1.msra.mxu0 0.0
    %1964 = vmatprep.subr.mxu0 0.0
    %1965 = vmatpush1.msra.mxu0 0.0
    %1966 = vmatprep.subr.mxu0 0.0
    %1967 = vmatpush1.msra.mxu0 0.0
    %1968 = vmatprep.subr.mxu0 0.0
    %1969 = vmatpush1.msra.mxu0 0.0
    %1970 = vmatprep.subr.mxu0 0.0
    %1971 = vmatpush1.msra.mxu0 0.0
    %1972 = vmatprep.subr.mxu0 0.0
    %1973 = vmatpush1.msra.mxu0 0.0
    %1974 = vmatprep.subr.mxu0 0.0
    %1975 = vmatpush1.msra.mxu0 0.0
    %1976 = vmatprep.subr.mxu0 0.0
    %1977 = vmatpush1.msra.mxu0 0.0
    %1978 = vmatprep.subr.mxu0 0.0
    %1979 = vmatpush1.msra.mxu0 0.0
    %1980 = vmatprep.subr.mxu0 0.0
    %1981 = vmatpush1.msra.mxu0 0.0
    %1982 = vmatprep.subr.mxu0 0.0
    %1983 = vmatpush1.msra.mxu0 0.0
    %1984 = vmatprep.subr.mxu0 0.0
    %1985 = vmatpush1.msra.mxu0 0.0
    %1986 = vmatprep.subr.mxu0 0.0
    %1987 = vmatpush1.msra.mxu0 0.0
    %1988 = vmatprep.subr.mxu0 0.0
    %1989 = vmatpush1.msra.mxu0 0.0
    %1990 = vmatprep.subr.mxu0 0.0
    %1991 = vmatpush1.msra.mxu0 0.0
    %1992 = vmatprep.subr.mxu0 0.0
    %1993 = vmatpush1.msra.mxu0 0.0
    %1994 = vmatprep.subr.mxu0 0.0
    %1995 = vmatpush1.msra.mxu0 0.0
    %1996 = vmatprep.subr.mxu0 0.0
    %1997 = vmatpush1.msra.mxu0 0.0
    %1998 = vmatprep.subr.mxu0 0.0
    %1999 = vmatpush1.msra.mxu0 0.0
    %2000 = vmatprep.subr.mxu0 0.0
    %2001 = vmatpush1.msra.mxu0 0.0
    %2002 = vmatprep.subr.mxu0 0.0
    %2003 = vmatpush1.msra.mxu0 0.0
    %2004 = vmatprep.subr.mxu0 0.0
    %2005 = vmatpush1.msra.mxu0 0.0
    %2006 = vmatprep.subr.mxu0 0.0
    %2007 = vmatpush1.msra.mxu0 0.0
    %2008 = vmatprep.subr.mxu0 0.0
    %2009 = vmatpush1.msra.mxu0 0.0
    %2010 = vmatprep.subr.mxu0 0.0
    %2011 = vmatpush1.msra.mxu0 0.0
    %2012 = vmatprep.subr.mxu0 0.0
    %2013 = vmatpush1.msra.mxu0 0.0
    %2014 = vmatprep.mubr.f32.mxu0 0.0
    %2015 = vmatmul.mubr.f32.gmra.mrb[0].mxu0 %v1808
    %v2016 = vpop.f32.mrb[0].mxu0
    %v2017 = vadd.f32 %v1088, %v2016
    %v2018 = vpop.f32.mrb[0].mxu0
    %2019 = vdwg.mxu0
    %v2020 = vadd.f32 %v1804, %v1877
    %v2021 = vxor.u32 %v2020, 2147483648
    %v2022 = vmul.f32 %v2021, 1.442695
    %v2023 = vpow.pop %v2022
    %v2024 = vadd.f32 %v2023, 1.0
    %v2025 = vrcp.pop %v2024
    %v2026 = vmul.f32 1.0, %v2025
    %v2027 = vadd.f32 %v1805, %v1947
    %v2028 = vxor.u32 %v2027, 2147483648
    %v2029 = vmul.f32 %v2028, 1.442695
    %v2030 = vpow.pop %v2029
    %v2031 = vadd.f32 %v2030, 1.0
    %v2032 = vrcp.pop %v2031
    %v2033 = vmul.f32 1.0, %v2032
    %v2034 = vmul.f32 %v2026, %v2017
    %v2035 = vadd.f32 %v1806, %v2034
    %v2036 = vtanh.pop %v2035
    %v2037 = vsub.f32 1.0, %v2033
    %v2038 = vmul.f32 %v2037, %v2036
    %v2039 = vmul.f32 %v2033, %v1802
    %v2040 = vadd.f32 %v2038, %v2039
    %2041 = vst.msk [vmem:[#allocation7 + $0x6] sm:$0x3] %vm771, %v2040
    %v2042 = vld [vmem:[#allocation7] sm:$0xff]
    %v2043 = vld [vmem:[#allocation18] sm:$0xff]
    %v2044 = vld [vmem:[#allocation18 + $0x8] sm:$0xff]
    %v2045 = vld [vmem:[#allocation18 + $0x10] sm:$0xff]
    %v2046 = vld [vmem:[#allocation18 + $0x18] sm:$0xff]
    %v2047 = vld [vmem:[%s11] sm:$0x1]
    %v2049 = vlaneseq
    %v2050 = vshrl.u32 %v2049, 7
    %v2051 = vsub.s32 0, %v2050
    %v2052 = vrot.slane %v2047, %v2051
    %v2055 = vsel %vm594, %v2042, 0
    %2057 = vmatprep.subr.mxu0 0.0
    %2058 = vmatpush1.msra.mxu0 %v2043
    %2059 = vmatprep.subr.mxu0 0.0
    %2060 = vmatpush1.msra.mxu0 %v2044
    %2061 = vmatprep.subr.mxu0 0.0
    %2062 = vmatpush1.msra.mxu0 %v2045
    %2063 = vmatprep.subr.mxu0 0.0
    %2064 = vmatpush1.msra.mxu0 %v2046
    %2065 = vmatprep.subr.mxu0 0.0
    %2066 = vmatpush1.msra.mxu0 0.0
    %2067 = vmatprep.subr.mxu0 0.0
    %2068 = vmatpush1.msra.mxu0 0.0
    %2069 = vmatprep.subr.mxu0 0.0
    %2070 = vmatpush1.msra.mxu0 0.0
    %2071 = vmatprep.subr.mxu0 0.0
    %2072 = vmatpush1.msra.mxu0 0.0
    %2073 = vmatprep.subr.mxu0 0.0
    %2074 = vmatpush1.msra.mxu0 0.0
    %2075 = vmatprep.subr.mxu0 0.0
    %2076 = vmatpush1.msra.mxu0 0.0
    %2077 = vmatprep.subr.mxu0 0.0
    %2078 = vmatpush1.msra.mxu0 0.0
    %2079 = vmatprep.subr.mxu0 0.0
    %2080 = vmatpush1.msra.mxu0 0.0
    %2081 = vmatprep.subr.mxu0 0.0
    %2082 = vmatpush1.msra.mxu0 0.0
    %2083 = vmatprep.subr.mxu0 0.0
    %2084 = vmatpush1.msra.mxu0 0.0
    %2085 = vmatprep.subr.mxu0 0.0
    %2086 = vmatpush1.msra.mxu0 0.0
    %2087 = vmatprep.subr.mxu0 0.0
    %2088 = vmatpush1.msra.mxu0 0.0
    %2089 = vmatprep.subr.mxu0 0.0
    %2090 = vmatpush1.msra.mxu0 0.0
    %2091 = vmatprep.subr.mxu0 0.0
    %2092 = vmatpush1.msra.mxu0 0.0
    %2093 = vmatprep.subr.mxu0 0.0
    %2094 = vmatpush1.msra.mxu0 0.0
    %2095 = vmatprep.subr.mxu0 0.0
    %2096 = vmatpush1.msra.mxu0 0.0
    %2097 = vmatprep.subr.mxu0 0.0
    %2098 = vmatpush1.msra.mxu0 0.0
    %2099 = vmatprep.subr.mxu0 0.0
    %2100 = vmatpush1.msra.mxu0 0.0
    %2101 = vmatprep.subr.mxu0 0.0
    %2102 = vmatpush1.msra.mxu0 0.0
    %2103 = vmatprep.subr.mxu0 0.0
    %2104 = vmatpush1.msra.mxu0 0.0
    %2105 = vmatprep.subr.mxu0 0.0
    %2106 = vmatpush1.msra.mxu0 0.0
    %2107 = vmatprep.subr.mxu0 0.0
    %2108 = vmatpush1.msra.mxu0 0.0
    %2109 = vmatprep.subr.mxu0 0.0
    %2110 = vmatpush1.msra.mxu0 0.0
    %2111 = vmatprep.subr.mxu0 0.0
    %2112 = vmatpush1.msra.mxu0 0.0
    %2113 = vmatprep.subr.mxu0 0.0
    %2114 = vmatpush1.msra.mxu0 0.0
    %2115 = vmatprep.subr.mxu0 0.0
    %2116 = vmatpush1.msra.mxu0 0.0
    %2117 = vmatprep.subr.mxu0 0.0
    %2118 = vmatpush1.msra.mxu0 0.0
    %2119 = vmatprep.subr.mxu0 0.0
    %2120 = vmatpush1.msra.mxu0 0.0
    %2121 = vmatprep.mubr.f32.mxu0 0.0
    %2122 = vmatmul.mubr.f32.gmra.mrb[0].mxu0 %v2055
    %v2123 = vpop.f32.mrb[0].mxu0
    %v2124 = vadd.f32 %v2052, %v2123
    %v2125 = vpop.f32.mrb[0].mxu0
    %2126 = vdwg.mxu0
    %2127 = vst.msk [vmem:[#allocation8] sm:$0xff] %vm594, %v2124
    %s2128 = scalar_lea.vmem [#allocation18], 32
    %v2129 = vld [vmem:[%s2128] sm:$0xff]
    %v2130 = vld [vmem:[%s2128 + $0x8] sm:$0xff]
    %v2131 = vld [vmem:[%s2128 + $0x10] sm:$0xff]
    %v2132 = vld [vmem:[%s2128 + $0x18] sm:$0xff]
    %s2133 = scalar_lea.vmem %s11, 1
    %v2134 = vld [vmem:[%s2133] sm:$0x1]
    %v2136 = vlaneseq
    %v2137 = vshrl.u32 %v2136, 7
    %v2138 = vsub.s32 0, %v2137
    %v2139 = vrot.slane %v2134, %v2138
    %2141 = vmatprep.subr.mxu0 0.0
    %2142 = vmatpush1.msra.mxu0 %v2129
    %2143 = vmatprep.subr.mxu0 0.0
    %2144 = vmatpush1.msra.mxu0 %v2130
    %2145 = vmatprep.subr.mxu0 0.0
    %2146 = vmatpush1.msra.mxu0 %v2131
    %2147 = vmatprep.subr.mxu0 0.0
    %2148 = vmatpush1.msra.mxu0 %v2132
    %2149 = vmatprep.subr.mxu0 0.0
    %2150 = vmatpush1.msra.mxu0 0.0
    %2151 = vmatprep.subr.mxu0 0.0
    %2152 = vmatpush1.msra.mxu0 0.0
    %2153 = vmatprep.subr.mxu0 0.0
    %2154 = vmatpush1.msra.mxu0 0.0
    %2155 = vmatprep.subr.mxu0 0.0
    %2156 = vmatpush1.msra.mxu0 0.0
    %2157 = vmatprep.subr.mxu0 0.0
    %2158 = vmatpush1.msra.mxu0 0.0
    %2159 = vmatprep.subr.mxu0 0.0
    %2160 = vmatpush1.msra.mxu0 0.0
    %2161 = vmatprep.subr.mxu0 0.0
    %2162 = vmatpush1.msra.mxu0 0.0
    %2163 = vmatprep.subr.mxu0 0.0
    %2164 = vmatpush1.msra.mxu0 0.0
    %2165 = vmatprep.subr.mxu0 0.0
    %2166 = vmatpush1.msra.mxu0 0.0
    %2167 = vmatprep.subr.mxu0 0.0
    %2168 = vmatpush1.msra.mxu0 0.0
    %2169 = vmatprep.subr.mxu0 0.0
    %2170 = vmatpush1.msra.mxu0 0.0
    %2171 = vmatprep.subr.mxu0 0.0
    %2172 = vmatpush1.msra.mxu0 0.0
    %2173 = vmatprep.subr.mxu0 0.0
    %2174 = vmatpush1.msra.mxu0 0.0
    %2175 = vmatprep.subr.mxu0 0.0
    %2176 = vmatpush1.msra.mxu0 0.0
    %2177 = vmatprep.subr.mxu0 0.0
    %2178 = vmatpush1.msra.mxu0 0.0
    %2179 = vmatprep.subr.mxu0 0.0
    %2180 = vmatpush1.msra.mxu0 0.0
    %2181 = vmatprep.subr.mxu0 0.0
    %2182 = vmatpush1.msra.mxu0 0.0
    %2183 = vmatprep.subr.mxu0 0.0
    %2184 = vmatpush1.msra.mxu0 0.0
    %2185 = vmatprep.subr.mxu0 0.0
    %2186 = vmatpush1.msra.mxu0 0.0
    %2187 = vmatprep.subr.mxu0 0.0
    %2188 = vmatpush1.msra.mxu0 0.0
    %2189 = vmatprep.subr.mxu0 0.0
    %2190 = vmatpush1.msra.mxu0 0.0
    %2191 = vmatprep.subr.mxu0 0.0
    %2192 = vmatpush1.msra.mxu0 0.0
    %2193 = vmatprep.subr.mxu0 0.0
    %2194 = vmatpush1.msra.mxu0 0.0
    %2195 = vmatprep.subr.mxu0 0.0
    %2196 = vmatpush1.msra.mxu0 0.0
    %2197 = vmatprep.subr.mxu0 0.0
    %2198 = vmatpush1.msra.mxu0 0.0
    %2199 = vmatprep.subr.mxu0 0.0
    %2200 = vmatpush1.msra.mxu0 0.0
    %2201 = vmatprep.subr.mxu0 0.0
    %2202 = vmatpush1.msra.mxu0 0.0
    %2203 = vmatprep.subr.mxu0 0.0
    %2204 = vmatpush1.msra.mxu0 0.0
    %2205 = vmatprep.mubr.f32.mxu0 0.0
    %2206 = vmatmul.mubr.f32.gmra.mrb[0].mxu0 %v2055
    %v2207 = vpop.f32.mrb[0].mxu0
    %v2208 = vadd.f32 %v2139, %v2207
    %v2209 = vpop.f32.mrb[0].mxu0
    %2210 = vdwg.mxu0
    %s2211 = scalar_lea.vmem [#allocation8], 8
    %2212 = vst.msk [vmem:[%s2211] sm:$0xff] %vm594, %v2208
    %s2213 = scalar_lea.vmem [#allocation18], 64
    %v2214 = vld [vmem:[%s2213] sm:$0xff]
    %v2215 = vld [vmem:[%s2213 + $0x8] sm:$0xff]
    %v2216 = vld [vmem:[%s2213 + $0x10] sm:$0xff]
    %v2217 = vld [vmem:[%s2213 + $0x18] sm:$0xff]
    %s2218 = scalar_lea.vmem %s11, 2
    %v2219 = vld [vmem:[%s2218] sm:$0x1]
    %v2221 = vlaneseq
    %v2222 = vshrl.u32 %v2221, 7
    %v2223 = vsub.s32 0, %v2222
    %v2224 = vrot.slane %v2219, %v2223
    %2226 = vmatprep.subr.mxu0 0.0
    %2227 = vmatpush1.msra.mxu0 %v2214
    %2228 = vmatprep.subr.mxu0 0.0
    %2229 = vmatpush1.msra.mxu0 %v2215
    %2230 = vmatprep.subr.mxu0 0.0
    %2231 = vmatpush1.msra.mxu0 %v2216
    %2232 = vmatprep.subr.mxu0 0.0
    %2233 = vmatpush1.msra.mxu0 %v2217
    %2234 = vmatprep.subr.mxu0 0.0
    %2235 = vmatpush1.msra.mxu0 0.0
    %2236 = vmatprep.subr.mxu0 0.0
    %2237 = vmatpush1.msra.mxu0 0.0
    %2238 = vmatprep.subr.mxu0 0.0
    %2239 = vmatpush1.msra.mxu0 0.0
    %2240 = vmatprep.subr.mxu0 0.0
    %2241 = vmatpush1.msra.mxu0 0.0
    %2242 = vmatprep.subr.mxu0 0.0
    %2243 = vmatpush1.msra.mxu0 0.0
    %2244 = vmatprep.subr.mxu0 0.0
    %2245 = vmatpush1.msra.mxu0 0.0
    %2246 = vmatprep.subr.mxu0 0.0
    %2247 = vmatpush1.msra.mxu0 0.0
    %2248 = vmatprep.subr.mxu0 0.0
    %2249 = vmatpush1.msra.mxu0 0.0
    %2250 = vmatprep.subr.mxu0 0.0
    %2251 = vmatpush1.msra.mxu0 0.0
    %2252 = vmatprep.subr.mxu0 0.0
    %2253 = vmatpush1.msra.mxu0 0.0
    %2254 = vmatprep.subr.mxu0 0.0
    %2255 = vmatpush1.msra.mxu0 0.0
    %2256 = vmatprep.subr.mxu0 0.0
    %2257 = vmatpush1.msra.mxu0 0.0
    %2258 = vmatprep.subr.mxu0 0.0
    %2259 = vmatpush1.msra.mxu0 0.0
    %2260 = vmatprep.subr.mxu0 0.0
    %2261 = vmatpush1.msra.mxu0 0.0
    %2262 = vmatprep.subr.mxu0 0.0
    %2263 = vmatpush1.msra.mxu0 0.0
    %2264 = vmatprep.subr.mxu0 0.0
    %2265 = vmatpush1.msra.mxu0 0.0
    %2266 = vmatprep.subr.mxu0 0.0
    %2267 = vmatpush1.msra.mxu0 0.0
    %2268 = vmatprep.subr.mxu0 0.0
    %2269 = vmatpush1.msra.mxu0 0.0
    %2270 = vmatprep.subr.mxu0 0.0
    %2271 = vmatpush1.msra.mxu0 0.0
    %2272 = vmatprep.subr.mxu0 0.0
    %2273 = vmatpush1.msra.mxu0 0.0
    %2274 = vmatprep.subr.mxu0 0.0
    %2275 = vmatpush1.msra.mxu0 0.0
    %2276 = vmatprep.subr.mxu0 0.0
    %2277 = vmatpush1.msra.mxu0 0.0
    %2278 = vmatprep.subr.mxu0 0.0
    %2279 = vmatpush1.msra.mxu0 0.0
    %2280 = vmatprep.subr.mxu0 0.0
    %2281 = vmatpush1.msra.mxu0 0.0
    %2282 = vmatprep.subr.mxu0 0.0
    %2283 = vmatpush1.msra.mxu0 0.0
    %2284 = vmatprep.subr.mxu0 0.0
    %2285 = vmatpush1.msra.mxu0 0.0
    %2286 = vmatprep.subr.mxu0 0.0
    %2287 = vmatpush1.msra.mxu0 0.0
    %2288 = vmatprep.subr.mxu0 0.0
    %2289 = vmatpush1.msra.mxu0 0.0
    %2290 = vmatprep.mubr.f32.mxu0 0.0
    %2291 = vmatmul.mubr.f32.gmra.mrb[0].mxu0 %v2055
    %v2292 = vpop.f32.mrb[0].mxu0
    %v2293 = vadd.f32 %v2224, %v2292
    %v2294 = vpop.f32.mrb[0].mxu0
    %2295 = vdwg.mxu0
    %s2296 = scalar_lea.vmem [#allocation8], 16
    %2297 = vst.msk [vmem:[%s2296] sm:$0xff] %vm594, %v2293
    %v2298 = vld [vmem:[#allocation19] sm:$0xff]
    %v2299 = vld [vmem:[#allocation19 + $0x8] sm:$0xff]
    %v2300 = vld [vmem:[#allocation19 + $0x10] sm:$0xff]
    %v2301 = vld [vmem:[#allocation19 + $0x18] sm:$0xff]
    %s2302 = scalar_lea.vmem [#allocation19], 32
    %v2303 = vld [vmem:[%s2302] sm:$0xff]
    %v2304 = vld [vmem:[%s2302 + $0x8] sm:$0xff]
    %v2305 = vld [vmem:[%s2302 + $0x10] sm:$0xff]
    %v2306 = vld [vmem:[%s2302 + $0x18] sm:$0xff]
    %s2307 = scalar_lea.vmem [#allocation19], 64
    %v2308 = vld [vmem:[%s2307] sm:$0xff]
    %v2309 = vld [vmem:[%s2307 + $0x8] sm:$0xff]
    %v2310 = vld [vmem:[%s2307 + $0x10] sm:$0xff]
    %v2311 = vld [vmem:[%s2307 + $0x18] sm:$0xff]
    %v2312 = vld [vmem:[%s12] sm:$0x1]
    %v2314 = vlaneseq
    %v2315 = vshrl.u32 %v2314, 7
    %v2316 = vsub.s32 0, %v2315
    %v2317 = vrot.slane %v2312, %v2316
    %s2319 = scalar_lea.vmem %s12, 1
    %v2320 = vld [vmem:[%s2319] sm:$0x1]
    %v2322 = vlaneseq
    %v2323 = vshrl.u32 %v2322, 7
    %v2324 = vsub.s32 0, %v2323
    %v2325 = vrot.slane %v2320, %v2324
    %s2327 = scalar_lea.vmem %s12, 2
    %v2328 = vld [vmem:[%s2327] sm:$0x1]
    %v2330 = vlaneseq
    %v2331 = vshrl.u32 %v2330, 7
    %v2332 = vsub.s32 0, %v2331
    %v2333 = vrot.slane %v2328, %v2332
    %v2335 = vld [vmem:[#allocation8] sm:$0x3]
    %v2336 = vld [vmem:[%s2211] sm:$0x3]
    %v2337 = vld [vmem:[%s2296] sm:$0x3]
    %2338 = vmatprep.subr.mxu0 0.0
    %2339 = vmatpush1.msra.mxu0 %v2298
    %2340 = vmatprep.subr.mxu0 0.0
    %2341 = vmatpush1.msra.mxu0 %v2299
    %2342 = vmatprep.subr.mxu0 0.0
    %2343 = vmatpush1.msra.mxu0 %v2300
    %2344 = vmatprep.subr.mxu0 0.0
    %2345 = vmatpush1.msra.mxu0 %v2301
    %2346 = vmatprep.subr.mxu0 0.0
    %2347 = vmatpush1.msra.mxu0 0.0
    %2348 = vmatprep.subr.mxu0 0.0
    %2349 = vmatpush1.msra.mxu0 0.0
    %2350 = vmatprep.subr.mxu0 0.0
    %2351 = vmatpush1.msra.mxu0 0.0
    %2352 = vmatprep.subr.mxu0 0.0
    %2353 = vmatpush1.msra.mxu0 0.0
    %2354 = vmatprep.subr.mxu0 0.0
    %2355 = vmatpush1.msra.mxu0 0.0
    %2356 = vmatprep.subr.mxu0 0.0
    %2357 = vmatpush1.msra.mxu0 0.0
    %2358 = vmatprep.subr.mxu0 0.0
    %2359 = vmatpush1.msra.mxu0 0.0
    %2360 = vmatprep.subr.mxu0 0.0
    %2361 = vmatpush1.msra.mxu0 0.0
    %2362 = vmatprep.subr.mxu0 0.0
    %2363 = vmatpush1.msra.mxu0 0.0
    %2364 = vmatprep.subr.mxu0 0.0
    %2365 = vmatpush1.msra.mxu0 0.0
    %2366 = vmatprep.subr.mxu0 0.0
    %2367 = vmatpush1.msra.mxu0 0.0
    %2368 = vmatprep.subr.mxu0 0.0
    %2369 = vmatpush1.msra.mxu0 0.0
    %2370 = vmatprep.subr.mxu0 0.0
    %2371 = vmatpush1.msra.mxu0 0.0
    %2372 = vmatprep.subr.mxu0 0.0
    %2373 = vmatpush1.msra.mxu0 0.0
    %2374 = vmatprep.subr.mxu0 0.0
    %2375 = vmatpush1.msra.mxu0 0.0
    %2376 = vmatprep.subr.mxu0 0.0
    %2377 = vmatpush1.msra.mxu0 0.0
    %2378 = vmatprep.subr.mxu0 0.0
    %2379 = vmatpush1.msra.mxu0 0.0
    %2380 = vmatprep.subr.mxu0 0.0
    %2381 = vmatpush1.msra.mxu0 0.0
    %2382 = vmatprep.subr.mxu0 0.0
    %2383 = vmatpush1.msra.mxu0 0.0
    %2384 = vmatprep.subr.mxu0 0.0
    %2385 = vmatpush1.msra.mxu0 0.0
    %2386 = vmatprep.subr.mxu0 0.0
    %2387 = vmatpush1.msra.mxu0 0.0
    %2388 = vmatprep.subr.mxu0 0.0
    %2389 = vmatpush1.msra.mxu0 0.0
    %2390 = vmatprep.subr.mxu0 0.0
    %2391 = vmatpush1.msra.mxu0 0.0
    %2392 = vmatprep.subr.mxu0 0.0
    %2393 = vmatpush1.msra.mxu0 0.0
    %2394 = vmatprep.subr.mxu0 0.0
    %2395 = vmatpush1.msra.mxu0 0.0
    %2396 = vmatprep.subr.mxu0 0.0
    %2397 = vmatpush1.msra.mxu0 0.0
    %2398 = vmatprep.subr.mxu0 0.0
    %2399 = vmatpush1.msra.mxu0 0.0
    %2400 = vmatprep.subr.mxu0 0.0
    %2401 = vmatpush1.msra.mxu0 0.0
    %2402 = vmatprep.mubr.f32.mxu0 0.0
    %2403 = vmatmul.mubr.f32.gmra.mrb[0].mxu0 %v1094
    %v2404 = vpop.f32.mrb[0].mxu0
    %v2405 = vadd.f32 %v2317, %v2404
    %v2406 = vpop.f32.mrb[0].mxu0
    %2407 = vdwg.mxu0
    %2408 = vmatprep.subr.mxu0 0.0
    %2409 = vmatpush1.msra.mxu0 %v2303
    %2410 = vmatprep.subr.mxu0 0.0
    %2411 = vmatpush1.msra.mxu0 %v2304
    %2412 = vmatprep.subr.mxu0 0.0
    %2413 = vmatpush1.msra.mxu0 %v2305
    %2414 = vmatprep.subr.mxu0 0.0
    %2415 = vmatpush1.msra.mxu0 %v2306
    %2416 = vmatprep.subr.mxu0 0.0
    %2417 = vmatpush1.msra.mxu0 0.0
    %2418 = vmatprep.subr.mxu0 0.0
    %2419 = vmatpush1.msra.mxu0 0.0
    %2420 = vmatprep.subr.mxu0 0.0
    %2421 = vmatpush1.msra.mxu0 0.0
    %2422 = vmatprep.subr.mxu0 0.0
    %2423 = vmatpush1.msra.mxu0 0.0
    %2424 = vmatprep.subr.mxu0 0.0
    %2425 = vmatpush1.msra.mxu0 0.0
    %2426 = vmatprep.subr.mxu0 0.0
    %2427 = vmatpush1.msra.mxu0 0.0
    %2428 = vmatprep.subr.mxu0 0.0
    %2429 = vmatpush1.msra.mxu0 0.0
    %2430 = vmatprep.subr.mxu0 0.0
    %2431 = vmatpush1.msra.mxu0 0.0
    %2432 = vmatprep.subr.mxu0 0.0
    %2433 = vmatpush1.msra.mxu0 0.0
    %2434 = vmatprep.subr.mxu0 0.0
    %2435 = vmatpush1.msra.mxu0 0.0
    %2436 = vmatprep.subr.mxu0 0.0
    %2437 = vmatpush1.msra.mxu0 0.0
    %2438 = vmatprep.subr.mxu0 0.0
    %2439 = vmatpush1.msra.mxu0 0.0
    %2440 = vmatprep.subr.mxu0 0.0
    %2441 = vmatpush1.msra.mxu0 0.0
    %2442 = vmatprep.subr.mxu0 0.0
    %2443 = vmatpush1.msra.mxu0 0.0
    %2444 = vmatprep.subr.mxu0 0.0
    %2445 = vmatpush1.msra.mxu0 0.0
    %2446 = vmatprep.subr.mxu0 0.0
    %2447 = vmatpush1.msra.mxu0 0.0
    %2448 = vmatprep.subr.mxu0 0.0
    %2449 = vmatpush1.msra.mxu0 0.0
    %2450 = vmatprep.subr.mxu0 0.0
    %2451 = vmatpush1.msra.mxu0 0.0
    %2452 = vmatprep.subr.mxu0 0.0
    %2453 = vmatpush1.msra.mxu0 0.0
    %2454 = vmatprep.subr.mxu0 0.0
    %2455 = vmatpush1.msra.mxu0 0.0
    %2456 = vmatprep.subr.mxu0 0.0
    %2457 = vmatpush1.msra.mxu0 0.0
    %2458 = vmatprep.subr.mxu0 0.0
    %2459 = vmatpush1.msra.mxu0 0.0
    %2460 = vmatprep.subr.mxu0 0.0
    %2461 = vmatpush1.msra.mxu0 0.0
    %2462 = vmatprep.subr.mxu0 0.0
    %2463 = vmatpush1.msra.mxu0 0.0
    %2464 = vmatprep.subr.mxu0 0.0
    %2465 = vmatpush1.msra.mxu0 0.0
    %2466 = vmatprep.subr.mxu0 0.0
    %2467 = vmatpush1.msra.mxu0 0.0
    %2468 = vmatprep.subr.mxu0 0.0
    %2469 = vmatpush1.msra.mxu0 0.0
    %2470 = vmatprep.subr.mxu0 0.0
    %2471 = vmatpush1.msra.mxu0 0.0
    %2472 = vmatprep.mubr.f32.mxu0 0.0
    %2473 = vmatmul.mubr.f32.gmra.mrb[0].mxu0 %v1094
    %v2474 = vpop.f32.mrb[0].mxu0
    %v2475 = vadd.f32 %v2325, %v2474
    %v2476 = vpop.f32.mrb[0].mxu0
    %2477 = vdwg.mxu0
    %2478 = vmatprep.subr.mxu0 0.0
    %2479 = vmatpush1.msra.mxu0 %v2308
    %2480 = vmatprep.subr.mxu0 0.0
    %2481 = vmatpush1.msra.mxu0 %v2309
    %2482 = vmatprep.subr.mxu0 0.0
    %2483 = vmatpush1.msra.mxu0 %v2310
    %2484 = vmatprep.subr.mxu0 0.0
    %2485 = vmatpush1.msra.mxu0 %v2311
    %2486 = vmatprep.subr.mxu0 0.0
    %2487 = vmatpush1.msra.mxu0 0.0
    %2488 = vmatprep.subr.mxu0 0.0
    %2489 = vmatpush1.msra.mxu0 0.0
    %2490 = vmatprep.subr.mxu0 0.0
    %2491 = vmatpush1.msra.mxu0 0.0
    %2492 = vmatprep.subr.mxu0 0.0
    %2493 = vmatpush1.msra.mxu0 0.0
    %2494 = vmatprep.subr.mxu0 0.0
    %2495 = vmatpush1.msra.mxu0 0.0
    %2496 = vmatprep.subr.mxu0 0.0
    %2497 = vmatpush1.msra.mxu0 0.0
    %2498 = vmatprep.subr.mxu0 0.0
    %2499 = vmatpush1.msra.mxu0 0.0
    %2500 = vmatprep.subr.mxu0 0.0
    %2501 = vmatpush1.msra.mxu0 0.0
    %2502 = vmatprep.subr.mxu0 0.0
    %2503 = vmatpush1.msra.mxu0 0.0
    %2504 = vmatprep.subr.mxu0 0.0
    %2505 = vmatpush1.msra.mxu0 0.0
    %2506 = vmatprep.subr.mxu0 0.0
    %2507 = vmatpush1.msra.mxu0 0.0
    %2508 = vmatprep.subr.mxu0 0.0
    %2509 = vmatpush1.msra.mxu0 0.0
    %2510 = vmatprep.subr.mxu0 0.0
    %2511 = vmatpush1.msra.mxu0 0.0
    %2512 = vmatprep.subr.mxu0 0.0
    %2513 = vmatpush1.msra.mxu0 0.0
    %2514 = vmatprep.subr.mxu0 0.0
    %2515 = vmatpush1.msra.mxu0 0.0
    %2516 = vmatprep.subr.mxu0 0.0
    %2517 = vmatpush1.msra.mxu0 0.0
    %2518 = vmatprep.subr.mxu0 0.0
    %2519 = vmatpush1.msra.mxu0 0.0
    %2520 = vmatprep.subr.mxu0 0.0
    %2521 = vmatpush1.msra.mxu0 0.0
    %2522 = vmatprep.subr.mxu0 0.0
    %2523 = vmatpush1.msra.mxu0 0.0
    %2524 = vmatprep.subr.mxu0 0.0
    %2525 = vmatpush1.msra.mxu0 0.0
    %2526 = vmatprep.subr.mxu0 0.0
    %2527 = vmatpush1.msra.mxu0 0.0
    %2528 = vmatprep.subr.mxu0 0.0
    %2529 = vmatpush1.msra.mxu0 0.0
    %2530 = vmatprep.subr.mxu0 0.0
    %2531 = vmatpush1.msra.mxu0 0.0
    %2532 = vmatprep.subr.mxu0 0.0
    %2533 = vmatpush1.msra.mxu0 0.0
    %2534 = vmatprep.subr.mxu0 0.0
    %2535 = vmatpush1.msra.mxu0 0.0
    %2536 = vmatprep.subr.mxu0 0.0
    %2537 = vmatpush1.msra.mxu0 0.0
    %2538 = vmatprep.subr.mxu0 0.0
    %2539 = vmatpush1.msra.mxu0 0.0
    %2540 = vmatprep.subr.mxu0 0.0
    %2541 = vmatpush1.msra.mxu0 0.0
    %2542 = vmatprep.mubr.f32.mxu0 0.0
    %2543 = vmatmul.mubr.f32.gmra.mrb[0].mxu0 %v1094
    %v2544 = vpop.f32.mrb[0].mxu0
    %v2545 = vadd.f32 %v2333, %v2544
    %v2546 = vpop.f32.mrb[0].mxu0
    %2547 = vdwg.mxu0
    %v2548 = vadd.f32 %v2335, %v2405
    %v2549 = vxor.u32 %v2548, 2147483648
    %v2550 = vmul.f32 %v2549, 1.442695
    %v2551 = vpow.pop %v2550
    %v2552 = vadd.f32 %v2551, 1.0
    %v2553 = vrcp.pop %v2552
    %v2554 = vmul.f32 1.0, %v2553
    %v2555 = vadd.f32 %v2336, %v2475
    %v2556 = vxor.u32 %v2555, 2147483648
    %v2557 = vmul.f32 %v2556, 1.442695
    %v2558 = vpow.pop %v2557
    %v2559 = vadd.f32 %v2558, 1.0
    %v2560 = vrcp.pop %v2559
    %v2561 = vmul.f32 1.0, %v2560
    %v2562 = vmul.f32 %v2554, %v2545
    %v2563 = vadd.f32 %v2337, %v2562
    %v2564 = vtanh.pop %v2563
    %v2565 = vsub.f32 1.0, %v2561
    %v2566 = vmul.f32 %v2565, %v2564
    %v2567 = vmul.f32 %v2561, 0.0
    %v2568 = vadd.f32 %v2566, %v2567
    %v2569 = vld [vmem:[#allocation8 + $0x2] sm:$0x3]
    %v2570 = vld [vmem:[%s2211 + $0x2] sm:$0x3]
    %v2571 = vld [vmem:[%s2296 + $0x2] sm:$0x3]
    %v2573 = vsel %vm594, %v2568, 0
    %2575 = vmatprep.subr.mxu0 0.0
    %2576 = vmatpush1.msra.mxu0 %v2298
    %2577 = vmatprep.subr.mxu0 0.0
    %2578 = vmatpush1.msra.mxu0 %v2299
    %2579 = vmatprep.subr.mxu0 0.0
    %2580 = vmatpush1.msra.mxu0 %v2300
    %2581 = vmatprep.subr.mxu0 0.0
    %2582 = vmatpush1.msra.mxu0 %v2301
    %2583 = vmatprep.subr.mxu0 0.0
    %2584 = vmatpush1.msra.mxu0 0.0
    %2585 = vmatprep.subr.mxu0 0.0
    %2586 = vmatpush1.msra.mxu0 0.0
    %2587 = vmatprep.subr.mxu0 0.0
    %2588 = vmatpush1.msra.mxu0 0.0
    %2589 = vmatprep.subr.mxu0 0.0
    %2590 = vmatpush1.msra.mxu0 0.0
    %2591 = vmatprep.subr.mxu0 0.0
    %2592 = vmatpush1.msra.mxu0 0.0
    %2593 = vmatprep.subr.mxu0 0.0
    %2594 = vmatpush1.msra.mxu0 0.0
    %2595 = vmatprep.subr.mxu0 0.0
    %2596 = vmatpush1.msra.mxu0 0.0
    %2597 = vmatprep.subr.mxu0 0.0
    %2598 = vmatpush1.msra.mxu0 0.0
    %2599 = vmatprep.subr.mxu0 0.0
    %2600 = vmatpush1.msra.mxu0 0.0
    %2601 = vmatprep.subr.mxu0 0.0
    %2602 = vmatpush1.msra.mxu0 0.0
    %2603 = vmatprep.subr.mxu0 0.0
    %2604 = vmatpush1.msra.mxu0 0.0
    %2605 = vmatprep.subr.mxu0 0.0
    %2606 = vmatpush1.msra.mxu0 0.0
    %2607 = vmatprep.subr.mxu0 0.0
    %2608 = vmatpush1.msra.mxu0 0.0
    %2609 = vmatprep.subr.mxu0 0.0
    %2610 = vmatpush1.msra.mxu0 0.0
    %2611 = vmatprep.subr.mxu0 0.0
    %2612 = vmatpush1.msra.mxu0 0.0
    %2613 = vmatprep.subr.mxu0 0.0
    %2614 = vmatpush1.msra.mxu0 0.0
    %2615 = vmatprep.subr.mxu0 0.0
    %2616 = vmatpush1.msra.mxu0 0.0
    %2617 = vmatprep.subr.mxu0 0.0
    %2618 = vmatpush1.msra.mxu0 0.0
    %2619 = vmatprep.subr.mxu0 0.0
    %2620 = vmatpush1.msra.mxu0 0.0
    %2621 = vmatprep.subr.mxu0 0.0
    %2622 = vmatpush1.msra.mxu0 0.0
    %2623 = vmatprep.subr.mxu0 0.0
    %2624 = vmatpush1.msra.mxu0 0.0
    %2625 = vmatprep.subr.mxu0 0.0
    %2626 = vmatpush1.msra.mxu0 0.0
    %2627 = vmatprep.subr.mxu0 0.0
    %2628 = vmatpush1.msra.mxu0 0.0
    %2629 = vmatprep.subr.mxu0 0.0
    %2630 = vmatpush1.msra.mxu0 0.0
    %2631 = vmatprep.subr.mxu0 0.0
    %2632 = vmatpush1.msra.mxu0 0.0
    %2633 = vmatprep.subr.mxu0 0.0
    %2634 = vmatpush1.msra.mxu0 0.0
    %2635 = vmatprep.subr.mxu0 0.0
    %2636 = vmatpush1.msra.mxu0 0.0
    %2637 = vmatprep.subr.mxu0 0.0
    %2638 = vmatpush1.msra.mxu0 0.0
    %2639 = vmatprep.mubr.f32.mxu0 0.0
    %2640 = vmatmul.mubr.f32.gmra.mrb[0].mxu0 %v2573
    %v2641 = vpop.f32.mrb[0].mxu0
    %v2642 = vadd.f32 %v2317, %v2641
    %v2643 = vpop.f32.mrb[0].mxu0
    %2644 = vdwg.mxu0
    %2645 = vmatprep.subr.mxu0 0.0
    %2646 = vmatpush1.msra.mxu0 %v2303
    %2647 = vmatprep.subr.mxu0 0.0
    %2648 = vmatpush1.msra.mxu0 %v2304
    %2649 = vmatprep.subr.mxu0 0.0
    %2650 = vmatpush1.msra.mxu0 %v2305
    %2651 = vmatprep.subr.mxu0 0.0
    %2652 = vmatpush1.msra.mxu0 %v2306
    %2653 = vmatprep.subr.mxu0 0.0
    %2654 = vmatpush1.msra.mxu0 0.0
    %2655 = vmatprep.subr.mxu0 0.0
    %2656 = vmatpush1.msra.mxu0 0.0
    %2657 = vmatprep.subr.mxu0 0.0
    %2658 = vmatpush1.msra.mxu0 0.0
    %2659 = vmatprep.subr.mxu0 0.0
    %2660 = vmatpush1.msra.mxu0 0.0
    %2661 = vmatprep.subr.mxu0 0.0
    %2662 = vmatpush1.msra.mxu0 0.0
    %2663 = vmatprep.subr.mxu0 0.0
    %2664 = vmatpush1.msra.mxu0 0.0
    %2665 = vmatprep.subr.mxu0 0.0
    %2666 = vmatpush1.msra.mxu0 0.0
    %2667 = vmatprep.subr.mxu0 0.0
    %2668 = vmatpush1.msra.mxu0 0.0
    %2669 = vmatprep.subr.mxu0 0.0
    %2670 = vmatpush1.msra.mxu0 0.0
    %2671 = vmatprep.subr.mxu0 0.0
    %2672 = vmatpush1.msra.mxu0 0.0
    %2673 = vmatprep.subr.mxu0 0.0
    %2674 = vmatpush1.msra.mxu0 0.0
    %2675 = vmatprep.subr.mxu0 0.0
    %2676 = vmatpush1.msra.mxu0 0.0
    %2677 = vmatprep.subr.mxu0 0.0
    %2678 = vmatpush1.msra.mxu0 0.0
    %2679 = vmatprep.subr.mxu0 0.0
    %2680 = vmatpush1.msra.mxu0 0.0
    %2681 = vmatprep.subr.mxu0 0.0
    %2682 = vmatpush1.msra.mxu0 0.0
    %2683 = vmatprep.subr.mxu0 0.0
    %2684 = vmatpush1.msra.mxu0 0.0
    %2685 = vmatprep.subr.mxu0 0.0
    %2686 = vmatpush1.msra.mxu0 0.0
    %2687 = vmatprep.subr.mxu0 0.0
    %2688 = vmatpush1.msra.mxu0 0.0
    %2689 = vmatprep.subr.mxu0 0.0
    %2690 = vmatpush1.msra.mxu0 0.0
    %2691 = vmatprep.subr.mxu0 0.0
    %2692 = vmatpush1.msra.mxu0 0.0
    %2693 = vmatprep.subr.mxu0 0.0
    %2694 = vmatpush1.msra.mxu0 0.0
    %2695 = vmatprep.subr.mxu0 0.0
    %2696 = vmatpush1.msra.mxu0 0.0
    %2697 = vmatprep.subr.mxu0 0.0
    %2698 = vmatpush1.msra.mxu0 0.0
    %2699 = vmatprep.subr.mxu0 0.0
    %2700 = vmatpush1.msra.mxu0 0.0
    %2701 = vmatprep.subr.mxu0 0.0
    %2702 = vmatpush1.msra.mxu0 0.0
    %2703 = vmatprep.subr.mxu0 0.0
    %2704 = vmatpush1.msra.mxu0 0.0
    %2705 = vmatprep.subr.mxu0 0.0
    %2706 = vmatpush1.msra.mxu0 0.0
    %2707 = vmatprep.subr.mxu0 0.0
    %2708 = vmatpush1.msra.mxu0 0.0
    %2709 = vmatprep.mubr.f32.mxu0 0.0
    %2710 = vmatmul.mubr.f32.gmra.mrb[0].mxu0 %v2573
    %v2711 = vpop.f32.mrb[0].mxu0
    %v2712 = vadd.f32 %v2325, %v2711
    %v2713 = vpop.f32.mrb[0].mxu0
    %2714 = vdwg.mxu0
    %2715 = vmatprep.subr.mxu0 0.0
    %2716 = vmatpush1.msra.mxu0 %v2308
    %2717 = vmatprep.subr.mxu0 0.0
    %2718 = vmatpush1.msra.mxu0 %v2309
    %2719 = vmatprep.subr.mxu0 0.0
    %2720 = vmatpush1.msra.mxu0 %v2310
    %2721 = vmatprep.subr.mxu0 0.0
    %2722 = vmatpush1.msra.mxu0 %v2311
    %2723 = vmatprep.subr.mxu0 0.0
    %2724 = vmatpush1.msra.mxu0 0.0
    %2725 = vmatprep.subr.mxu0 0.0
    %2726 = vmatpush1.msra.mxu0 0.0
    %2727 = vmatprep.subr.mxu0 0.0
    %2728 = vmatpush1.msra.mxu0 0.0
    %2729 = vmatprep.subr.mxu0 0.0
    %2730 = vmatpush1.msra.mxu0 0.0
    %2731 = vmatprep.subr.mxu0 0.0
    %2732 = vmatpush1.msra.mxu0 0.0
    %2733 = vmatprep.subr.mxu0 0.0
    %2734 = vmatpush1.msra.mxu0 0.0
    %2735 = vmatprep.subr.mxu0 0.0
    %2736 = vmatpush1.msra.mxu0 0.0
    %2737 = vmatprep.subr.mxu0 0.0
    %2738 = vmatpush1.msra.mxu0 0.0
    %2739 = vmatprep.subr.mxu0 0.0
    %2740 = vmatpush1.msra.mxu0 0.0
    %2741 = vmatprep.subr.mxu0 0.0
    %2742 = vmatpush1.msra.mxu0 0.0
    %2743 = vmatprep.subr.mxu0 0.0
    %2744 = vmatpush1.msra.mxu0 0.0
    %2745 = vmatprep.subr.mxu0 0.0
    %2746 = vmatpush1.msra.mxu0 0.0
    %2747 = vmatprep.subr.mxu0 0.0
    %2748 = vmatpush1.msra.mxu0 0.0
    %2749 = vmatprep.subr.mxu0 0.0
    %2750 = vmatpush1.msra.mxu0 0.0
    %2751 = vmatprep.subr.mxu0 0.0
    %2752 = vmatpush1.msra.mxu0 0.0
    %2753 = vmatprep.subr.mxu0 0.0
    %2754 = vmatpush1.msra.mxu0 0.0
    %2755 = vmatprep.subr.mxu0 0.0
    %2756 = vmatpush1.msra.mxu0 0.0
    %2757 = vmatprep.subr.mxu0 0.0
    %2758 = vmatpush1.msra.mxu0 0.0
    %2759 = vmatprep.subr.mxu0 0.0
    %2760 = vmatpush1.msra.mxu0 0.0
    %2761 = vmatprep.subr.mxu0 0.0
    %2762 = vmatpush1.msra.mxu0 0.0
    %2763 = vmatprep.subr.mxu0 0.0
    %2764 = vmatpush1.msra.mxu0 0.0
    %2765 = vmatprep.subr.mxu0 0.0
    %2766 = vmatpush1.msra.mxu0 0.0
    %2767 = vmatprep.subr.mxu0 0.0
    %2768 = vmatpush1.msra.mxu0 0.0
    %2769 = vmatprep.subr.mxu0 0.0
    %2770 = vmatpush1.msra.mxu0 0.0
    %2771 = vmatprep.subr.mxu0 0.0
    %2772 = vmatpush1.msra.mxu0 0.0
    %2773 = vmatprep.subr.mxu0 0.0
    %2774 = vmatpush1.msra.mxu0 0.0
    %2775 = vmatprep.subr.mxu0 0.0
    %2776 = vmatpush1.msra.mxu0 0.0
    %2777 = vmatprep.subr.mxu0 0.0
    %2778 = vmatpush1.msra.mxu0 0.0
    %2779 = vmatprep.mubr.f32.mxu0 0.0
    %2780 = vmatmul.mubr.f32.gmra.mrb[0].mxu0 %v2573
    %v2781 = vpop.f32.mrb[0].mxu0
    %v2782 = vadd.f32 %v2333, %v2781
    %v2783 = vpop.f32.mrb[0].mxu0
    %2784 = vdwg.mxu0
    %v2785 = vadd.f32 %v2569, %v2642
    %v2786 = vxor.u32 %v2785, 2147483648
    %v2787 = vmul.f32 %v2786, 1.442695
    %v2788 = vpow.pop %v2787
    %v2789 = vadd.f32 %v2788, 1.0
    %v2790 = vrcp.pop %v2789
    %v2791 = vmul.f32 1.0, %v2790
    %v2792 = vadd.f32 %v2570, %v2712
    %v2793 = vxor.u32 %v2792, 2147483648
    %v2794 = vmul.f32 %v2793, 1.442695
    %v2795 = vpow.pop %v2794
    %v2796 = vadd.f32 %v2795, 1.0
    %v2797 = vrcp.pop %v2796
    %v2798 = vmul.f32 1.0, %v2797
    %v2799 = vmul.f32 %v2791, %v2782
    %v2800 = vadd.f32 %v2571, %v2799
    %v2801 = vtanh.pop %v2800
    %v2802 = vsub.f32 1.0, %v2798
    %v2803 = vmul.f32 %v2802, %v2801
    %v2804 = vmul.f32 %v2798, %v2568
    %v2805 = vadd.f32 %v2803, %v2804
    %v2806 = vld [vmem:[#allocation8 + $0x4] sm:$0x3]
    %v2807 = vld [vmem:[%s2211 + $0x4] sm:$0x3]
    %v2808 = vld [vmem:[%s2296 + $0x4] sm:$0x3]
    %v2810 = vsel %vm594, %v2805, 0
    %2812 = vmatprep.subr.mxu0 0.0
    %2813 = vmatpush1.msra.mxu0 %v2298
    %2814 = vmatprep.subr.mxu0 0.0
    %2815 = vmatpush1.msra.mxu0 %v2299
    %2816 = vmatprep.subr.mxu0 0.0
    %2817 = vmatpush1.msra.mxu0 %v2300
    %2818 = vmatprep.subr.mxu0 0.0
    %2819 = vmatpush1.msra.mxu0 %v2301
    %2820 = vmatprep.subr.mxu0 0.0
    %2821 = vmatpush1.msra.mxu0 0.0
    %2822 = vmatprep.subr.mxu0 0.0
    %2823 = vmatpush1.msra.mxu0 0.0
    %2824 = vmatprep.subr.mxu0 0.0
    %2825 = vmatpush1.msra.mxu0 0.0
    %2826 = vmatprep.subr.mxu0 0.0
    %2827 = vmatpush1.msra.mxu0 0.0
    %2828 = vmatprep.subr.mxu0 0.0
    %2829 = vmatpush1.msra.mxu0 0.0
    %2830 = vmatprep.subr.mxu0 0.0
    %2831 = vmatpush1.msra.mxu0 0.0
    %2832 = vmatprep.subr.mxu0 0.0
    %2833 = vmatpush1.msra.mxu0 0.0
    %2834 = vmatprep.subr.mxu0 0.0
    %2835 = vmatpush1.msra.mxu0 0.0
    %2836 = vmatprep.subr.mxu0 0.0
    %2837 = vmatpush1.msra.mxu0 0.0
    %2838 = vmatprep.subr.mxu0 0.0
    %2839 = vmatpush1.msra.mxu0 0.0
    %2840 = vmatprep.subr.mxu0 0.0
    %2841 = vmatpush1.msra.mxu0 0.0
    %2842 = vmatprep.subr.mxu0 0.0
    %2843 = vmatpush1.msra.mxu0 0.0
    %2844 = vmatprep.subr.mxu0 0.0
    %2845 = vmatpush1.msra.mxu0 0.0
    %2846 = vmatprep.subr.mxu0 0.0
    %2847 = vmatpush1.msra.mxu0 0.0
    %2848 = vmatprep.subr.mxu0 0.0
    %2849 = vmatpush1.msra.mxu0 0.0
    %2850 = vmatprep.subr.mxu0 0.0
    %2851 = vmatpush1.msra.mxu0 0.0
    %2852 = vmatprep.subr.mxu0 0.0
    %2853 = vmatpush1.msra.mxu0 0.0
    %2854 = vmatprep.subr.mxu0 0.0
    %2855 = vmatpush1.msra.mxu0 0.0
    %2856 = vmatprep.subr.mxu0 0.0
    %2857 = vmatpush1.msra.mxu0 0.0
    %2858 = vmatprep.subr.mxu0 0.0
    %2859 = vmatpush1.msra.mxu0 0.0
    %2860 = vmatprep.subr.mxu0 0.0
    %2861 = vmatpush1.msra.mxu0 0.0
    %2862 = vmatprep.subr.mxu0 0.0
    %2863 = vmatpush1.msra.mxu0 0.0
    %2864 = vmatprep.subr.mxu0 0.0
    %2865 = vmatpush1.msra.mxu0 0.0
    %2866 = vmatprep.subr.mxu0 0.0
    %2867 = vmatpush1.msra.mxu0 0.0
    %2868 = vmatprep.subr.mxu0 0.0
    %2869 = vmatpush1.msra.mxu0 0.0
    %2870 = vmatprep.subr.mxu0 0.0
    %2871 = vmatpush1.msra.mxu0 0.0
    %2872 = vmatprep.subr.mxu0 0.0
    %2873 = vmatpush1.msra.mxu0 0.0
    %2874 = vmatprep.subr.mxu0 0.0
    %2875 = vmatpush1.msra.mxu0 0.0
    %2876 = vmatprep.mubr.f32.mxu0 0.0
    %2877 = vmatmul.mubr.f32.gmra.mrb[0].mxu0 %v2810
    %v2878 = vpop.f32.mrb[0].mxu0
    %v2879 = vadd.f32 %v2317, %v2878
    %v2880 = vpop.f32.mrb[0].mxu0
    %2881 = vdwg.mxu0
    %2882 = vmatprep.subr.mxu0 0.0
    %2883 = vmatpush1.msra.mxu0 %v2303
    %2884 = vmatprep.subr.mxu0 0.0
    %2885 = vmatpush1.msra.mxu0 %v2304
    %2886 = vmatprep.subr.mxu0 0.0
    %2887 = vmatpush1.msra.mxu0 %v2305
    %2888 = vmatprep.subr.mxu0 0.0
    %2889 = vmatpush1.msra.mxu0 %v2306
    %2890 = vmatprep.subr.mxu0 0.0
    %2891 = vmatpush1.msra.mxu0 0.0
    %2892 = vmatprep.subr.mxu0 0.0
    %2893 = vmatpush1.msra.mxu0 0.0
    %2894 = vmatprep.subr.mxu0 0.0
    %2895 = vmatpush1.msra.mxu0 0.0
    %2896 = vmatprep.subr.mxu0 0.0
    %2897 = vmatpush1.msra.mxu0 0.0
    %2898 = vmatprep.subr.mxu0 0.0
    %2899 = vmatpush1.msra.mxu0 0.0
    %2900 = vmatprep.subr.mxu0 0.0
    %2901 = vmatpush1.msra.mxu0 0.0
    %2902 = vmatprep.subr.mxu0 0.0
    %2903 = vmatpush1.msra.mxu0 0.0
    %2904 = vmatprep.subr.mxu0 0.0
    %2905 = vmatpush1.msra.mxu0 0.0
    %2906 = vmatprep.subr.mxu0 0.0
    %2907 = vmatpush1.msra.mxu0 0.0
    %2908 = vmatprep.subr.mxu0 0.0
    %2909 = vmatpush1.msra.mxu0 0.0
    %2910 = vmatprep.subr.mxu0 0.0
    %2911 = vmatpush1.msra.mxu0 0.0
    %2912 = vmatprep.subr.mxu0 0.0
    %2913 = vmatpush1.msra.mxu0 0.0
    %2914 = vmatprep.subr.mxu0 0.0
    %2915 = vmatpush1.msra.mxu0 0.0
    %2916 = vmatprep.subr.mxu0 0.0
    %2917 = vmatpush1.msra.mxu0 0.0
    %2918 = vmatprep.subr.mxu0 0.0
    %2919 = vmatpush1.msra.mxu0 0.0
    %2920 = vmatprep.subr.mxu0 0.0
    %2921 = vmatpush1.msra.mxu0 0.0
    %2922 = vmatprep.subr.mxu0 0.0
    %2923 = vmatpush1.msra.mxu0 0.0
    %2924 = vmatprep.subr.mxu0 0.0
    %2925 = vmatpush1.msra.mxu0 0.0
    %2926 = vmatprep.subr.mxu0 0.0
    %2927 = vmatpush1.msra.mxu0 0.0
    %2928 = vmatprep.subr.mxu0 0.0
    %2929 = vmatpush1.msra.mxu0 0.0
    %2930 = vmatprep.subr.mxu0 0.0
    %2931 = vmatpush1.msra.mxu0 0.0
    %2932 = vmatprep.subr.mxu0 0.0
    %2933 = vmatpush1.msra.mxu0 0.0
    %2934 = vmatprep.subr.mxu0 0.0
    %2935 = vmatpush1.msra.mxu0 0.0
    %2936 = vmatprep.subr.mxu0 0.0
    %2937 = vmatpush1.msra.mxu0 0.0
    %2938 = vmatprep.subr.mxu0 0.0
    %2939 = vmatpush1.msra.mxu0 0.0
    %2940 = vmatprep.subr.mxu0 0.0
    %2941 = vmatpush1.msra.mxu0 0.0
    %2942 = vmatprep.subr.mxu0 0.0
    %2943 = vmatpush1.msra.mxu0 0.0
    %2944 = vmatprep.subr.mxu0 0.0
    %2945 = vmatpush1.msra.mxu0 0.0
    %2946 = vmatprep.mubr.f32.mxu0 0.0
    %2947 = vmatmul.mubr.f32.gmra.mrb[0].mxu0 %v2810
    %v2948 = vpop.f32.mrb[0].mxu0
    %v2949 = vadd.f32 %v2325, %v2948
    %v2950 = vpop.f32.mrb[0].mxu0
    %2951 = vdwg.mxu0
    %2952 = vmatprep.subr.mxu0 0.0
    %2953 = vmatpush1.msra.mxu0 %v2308
    %2954 = vmatprep.subr.mxu0 0.0
    %2955 = vmatpush1.msra.mxu0 %v2309
    %2956 = vmatprep.subr.mxu0 0.0
    %2957 = vmatpush1.msra.mxu0 %v2310
    %2958 = vmatprep.subr.mxu0 0.0
    %2959 = vmatpush1.msra.mxu0 %v2311
    %2960 = vmatprep.subr.mxu0 0.0
    %2961 = vmatpush1.msra.mxu0 0.0
    %2962 = vmatprep.subr.mxu0 0.0
    %2963 = vmatpush1.msra.mxu0 0.0
    %2964 = vmatprep.subr.mxu0 0.0
    %2965 = vmatpush1.msra.mxu0 0.0
    %2966 = vmatprep.subr.mxu0 0.0
    %2967 = vmatpush1.msra.mxu0 0.0
    %2968 = vmatprep.subr.mxu0 0.0
    %2969 = vmatpush1.msra.mxu0 0.0
    %2970 = vmatprep.subr.mxu0 0.0
    %2971 = vmatpush1.msra.mxu0 0.0
    %2972 = vmatprep.subr.mxu0 0.0
    %2973 = vmatpush1.msra.mxu0 0.0
    %2974 = vmatprep.subr.mxu0 0.0
    %2975 = vmatpush1.msra.mxu0 0.0
    %2976 = vmatprep.subr.mxu0 0.0
    %2977 = vmatpush1.msra.mxu0 0.0
    %2978 = vmatprep.subr.mxu0 0.0
    %2979 = vmatpush1.msra.mxu0 0.0
    %2980 = vmatprep.subr.mxu0 0.0
    %2981 = vmatpush1.msra.mxu0 0.0
    %2982 = vmatprep.subr.mxu0 0.0
    %2983 = vmatpush1.msra.mxu0 0.0
    %2984 = vmatprep.subr.mxu0 0.0
    %2985 = vmatpush1.msra.mxu0 0.0
    %2986 = vmatprep.subr.mxu0 0.0
    %2987 = vmatpush1.msra.mxu0 0.0
    %2988 = vmatprep.subr.mxu0 0.0
    %2989 = vmatpush1.msra.mxu0 0.0
    %2990 = vmatprep.subr.mxu0 0.0
    %2991 = vmatpush1.msra.mxu0 0.0
    %2992 = vmatprep.subr.mxu0 0.0
    %2993 = vmatpush1.msra.mxu0 0.0
    %2994 = vmatprep.subr.mxu0 0.0
    %2995 = vmatpush1.msra.mxu0 0.0
    %2996 = vmatprep.subr.mxu0 0.0
    %2997 = vmatpush1.msra.mxu0 0.0
    %2998 = vmatprep.subr.mxu0 0.0
    %2999 = vmatpush1.msra.mxu0 0.0
    %3000 = vmatprep.subr.mxu0 0.0
    %3001 = vmatpush1.msra.mxu0 0.0
    %3002 = vmatprep.subr.mxu0 0.0
    %3003 = vmatpush1.msra.mxu0 0.0
    %3004 = vmatprep.subr.mxu0 0.0
    %3005 = vmatpush1.msra.mxu0 0.0
    %3006 = vmatprep.subr.mxu0 0.0
    %3007 = vmatpush1.msra.mxu0 0.0
    %3008 = vmatprep.subr.mxu0 0.0
    %3009 = vmatpush1.msra.mxu0 0.0
    %3010 = vmatprep.subr.mxu0 0.0
    %3011 = vmatpush1.msra.mxu0 0.0
    %3012 = vmatprep.subr.mxu0 0.0
    %3013 = vmatpush1.msra.mxu0 0.0
    %3014 = vmatprep.subr.mxu0 0.0
    %3015 = vmatpush1.msra.mxu0 0.0
    %3016 = vmatprep.mubr.f32.mxu0 0.0
    %3017 = vmatmul.mubr.f32.gmra.mrb[0].mxu0 %v2810
    %v3018 = vpop.f32.mrb[0].mxu0
    %v3019 = vadd.f32 %v2333, %v3018
    %v3020 = vpop.f32.mrb[0].mxu0
    %3021 = vdwg.mxu0
    %v3022 = vadd.f32 %v2806, %v2879
    %v3023 = vxor.u32 %v3022, 2147483648
    %v3024 = vmul.f32 %v3023, 1.442695
    %v3025 = vpow.pop %v3024
    %v3026 = vadd.f32 %v3025, 1.0
    %v3027 = vrcp.pop %v3026
    %v3028 = vmul.f32 1.0, %v3027
    %v3029 = vadd.f32 %v2807, %v2949
    %v3030 = vxor.u32 %v3029, 2147483648
    %v3031 = vmul.f32 %v3030, 1.442695
    %v3032 = vpow.pop %v3031
    %v3033 = vadd.f32 %v3032, 1.0
    %v3034 = vrcp.pop %v3033
    %v3035 = vmul.f32 1.0, %v3034
    %v3036 = vmul.f32 %v3028, %v3019
    %v3037 = vadd.f32 %v2808, %v3036
    %v3038 = vtanh.pop %v3037
    %v3039 = vsub.f32 1.0, %v3035
    %v3040 = vmul.f32 %v3039, %v3038
    %v3041 = vmul.f32 %v3035, %v2805
    %v3042 = vadd.f32 %v3040, %v3041
    %v3043 = vld [vmem:[#allocation8 + $0x6] sm:$0x3]
    %v3044 = vld [vmem:[%s2211 + $0x6] sm:$0x3]
    %v3045 = vld [vmem:[%s2296 + $0x6] sm:$0x3]
    %v3047 = vsel %vm594, %v3042, 0
    %3049 = vmatprep.subr.mxu0 0.0
    %3050 = vmatpush1.msra.mxu0 %v2298
    %3051 = vmatprep.subr.mxu0 0.0
    %3052 = vmatpush1.msra.mxu0 %v2299
    %3053 = vmatprep.subr.mxu0 0.0
    %3054 = vmatpush1.msra.mxu0 %v2300
    %3055 = vmatprep.subr.mxu0 0.0
    %3056 = vmatpush1.msra.mxu0 %v2301
    %3057 = vmatprep.subr.mxu0 0.0
    %3058 = vmatpush1.msra.mxu0 0.0
    %3059 = vmatprep.subr.mxu0 0.0
    %3060 = vmatpush1.msra.mxu0 0.0
    %3061 = vmatprep.subr.mxu0 0.0
    %3062 = vmatpush1.msra.mxu0 0.0
    %3063 = vmatprep.subr.mxu0 0.0
    %3064 = vmatpush1.msra.mxu0 0.0
    %3065 = vmatprep.subr.mxu0 0.0
    %3066 = vmatpush1.msra.mxu0 0.0
    %3067 = vmatprep.subr.mxu0 0.0
    %3068 = vmatpush1.msra.mxu0 0.0
    %3069 = vmatprep.subr.mxu0 0.0
    %3070 = vmatpush1.msra.mxu0 0.0
    %3071 = vmatprep.subr.mxu0 0.0
    %3072 = vmatpush1.msra.mxu0 0.0
    %3073 = vmatprep.subr.mxu0 0.0
    %3074 = vmatpush1.msra.mxu0 0.0
    %3075 = vmatprep.subr.mxu0 0.0
    %3076 = vmatpush1.msra.mxu0 0.0
    %3077 = vmatprep.subr.mxu0 0.0
    %3078 = vmatpush1.msra.mxu0 0.0
    %3079 = vmatprep.subr.mxu0 0.0
    %3080 = vmatpush1.msra.mxu0 0.0
    %3081 = vmatprep.subr.mxu0 0.0
    %3082 = vmatpush1.msra.mxu0 0.0
    %3083 = vmatprep.subr.mxu0 0.0
    %3084 = vmatpush1.msra.mxu0 0.0
    %3085 = vmatprep.subr.mxu0 0.0
    %3086 = vmatpush1.msra.mxu0 0.0
    %3087 = vmatprep.subr.mxu0 0.0
    %3088 = vmatpush1.msra.mxu0 0.0
    %3089 = vmatprep.subr.mxu0 0.0
    %3090 = vmatpush1.msra.mxu0 0.0
    %3091 = vmatprep.subr.mxu0 0.0
    %3092 = vmatpush1.msra.mxu0 0.0
    %3093 = vmatprep.subr.mxu0 0.0
    %3094 = vmatpush1.msra.mxu0 0.0
    %3095 = vmatprep.subr.mxu0 0.0
    %3096 = vmatpush1.msra.mxu0 0.0
    %3097 = vmatprep.subr.mxu0 0.0
    %3098 = vmatpush1.msra.mxu0 0.0
    %3099 = vmatprep.subr.mxu0 0.0
    %3100 = vmatpush1.msra.mxu0 0.0
    %3101 = vmatprep.subr.mxu0 0.0
    %3102 = vmatpush1.msra.mxu0 0.0
    %3103 = vmatprep.subr.mxu0 0.0
    %3104 = vmatpush1.msra.mxu0 0.0
    %3105 = vmatprep.subr.mxu0 0.0
    %3106 = vmatpush1.msra.mxu0 0.0
    %3107 = vmatprep.subr.mxu0 0.0
    %3108 = vmatpush1.msra.mxu0 0.0
    %3109 = vmatprep.subr.mxu0 0.0
    %3110 = vmatpush1.msra.mxu0 0.0
    %3111 = vmatprep.subr.mxu0 0.0
    %3112 = vmatpush1.msra.mxu0 0.0
    %3113 = vmatprep.mubr.f32.mxu0 0.0
    %3114 = vmatmul.mubr.f32.gmra.mrb[0].mxu0 %v3047
    %v3115 = vpop.f32.mrb[0].mxu0
    %v3116 = vadd.f32 %v2317, %v3115
    %v3117 = vpop.f32.mrb[0].mxu0
    %3118 = vdwg.mxu0
    %3119 = vmatprep.subr.mxu0 0.0
    %3120 = vmatpush1.msra.mxu0 %v2303
    %3121 = vmatprep.subr.mxu0 0.0
    %3122 = vmatpush1.msra.mxu0 %v2304
    %3123 = vmatprep.subr.mxu0 0.0
    %3124 = vmatpush1.msra.mxu0 %v2305
    %3125 = vmatprep.subr.mxu0 0.0
    %3126 = vmatpush1.msra.mxu0 %v2306
    %3127 = vmatprep.subr.mxu0 0.0
    %3128 = vmatpush1.msra.mxu0 0.0
    %3129 = vmatprep.subr.mxu0 0.0
    %3130 = vmatpush1.msra.mxu0 0.0
    %3131 = vmatprep.subr.mxu0 0.0
    %3132 = vmatpush1.msra.mxu0 0.0
    %3133 = vmatprep.subr.mxu0 0.0
    %3134 = vmatpush1.msra.mxu0 0.0
    %3135 = vmatprep.subr.mxu0 0.0
    %3136 = vmatpush1.msra.mxu0 0.0
    %3137 = vmatprep.subr.mxu0 0.0
    %3138 = vmatpush1.msra.mxu0 0.0
    %3139 = vmatprep.subr.mxu0 0.0
    %3140 = vmatpush1.msra.mxu0 0.0
    %3141 = vmatprep.subr.mxu0 0.0
    %3142 = vmatpush1.msra.mxu0 0.0
    %3143 = vmatprep.subr.mxu0 0.0
    %3144 = vmatpush1.msra.mxu0 0.0
    %3145 = vmatprep.subr.mxu0 0.0
    %3146 = vmatpush1.msra.mxu0 0.0
    %3147 = vmatprep.subr.mxu0 0.0
    %3148 = vmatpush1.msra.mxu0 0.0
    %3149 = vmatprep.subr.mxu0 0.0
    %3150 = vmatpush1.msra.mxu0 0.0
    %3151 = vmatprep.subr.mxu0 0.0
    %3152 = vmatpush1.msra.mxu0 0.0
    %3153 = vmatprep.subr.mxu0 0.0
    %3154 = vmatpush1.msra.mxu0 0.0
    %3155 = vmatprep.subr.mxu0 0.0
    %3156 = vmatpush1.msra.mxu0 0.0
    %3157 = vmatprep.subr.mxu0 0.0
    %3158 = vmatpush1.msra.mxu0 0.0
    %3159 = vmatprep.subr.mxu0 0.0
    %3160 = vmatpush1.msra.mxu0 0.0
    %3161 = vmatprep.subr.mxu0 0.0
    %3162 = vmatpush1.msra.mxu0 0.0
    %3163 = vmatprep.subr.mxu0 0.0
    %3164 = vmatpush1.msra.mxu0 0.0
    %3165 = vmatprep.subr.mxu0 0.0
    %3166 = vmatpush1.msra.mxu0 0.0
    %3167 = vmatprep.subr.mxu0 0.0
    %3168 = vmatpush1.msra.mxu0 0.0
    %3169 = vmatprep.subr.mxu0 0.0
    %3170 = vmatpush1.msra.mxu0 0.0
    %3171 = vmatprep.subr.mxu0 0.0
    %3172 = vmatpush1.msra.mxu0 0.0
    %3173 = vmatprep.subr.mxu0 0.0
    %3174 = vmatpush1.msra.mxu0 0.0
    %3175 = vmatprep.subr.mxu0 0.0
    %3176 = vmatpush1.msra.mxu0 0.0
    %3177 = vmatprep.subr.mxu0 0.0
    %3178 = vmatpush1.msra.mxu0 0.0
    %3179 = vmatprep.subr.mxu0 0.0
    %3180 = vmatpush1.msra.mxu0 0.0
    %3181 = vmatprep.subr.mxu0 0.0
    %3182 = vmatpush1.msra.mxu0 0.0
    %3183 = vmatprep.mubr.f32.mxu0 0.0
    %3184 = vmatmul.mubr.f32.gmra.mrb[0].mxu0 %v3047
    %v3185 = vpop.f32.mrb[0].mxu0
    %v3186 = vadd.f32 %v2325, %v3185
    %v3187 = vpop.f32.mrb[0].mxu0
    %3188 = vdwg.mxu0
    %3189 = vmatprep.subr.mxu0 0.0
    %3190 = vmatpush1.msra.mxu0 %v2308
    %3191 = vmatprep.subr.mxu0 0.0
    %3192 = vmatpush1.msra.mxu0 %v2309
    %3193 = vmatprep.subr.mxu0 0.0
    %3194 = vmatpush1.msra.mxu0 %v2310
    %3195 = vmatprep.subr.mxu0 0.0
    %3196 = vmatpush1.msra.mxu0 %v2311
    %3197 = vmatprep.subr.mxu0 0.0
    %3198 = vmatpush1.msra.mxu0 0.0
    %3199 = vmatprep.subr.mxu0 0.0
    %3200 = vmatpush1.msra.mxu0 0.0
    %3201 = vmatprep.subr.mxu0 0.0
    %3202 = vmatpush1.msra.mxu0 0.0
    %3203 = vmatprep.subr.mxu0 0.0
    %3204 = vmatpush1.msra.mxu0 0.0
    %3205 = vmatprep.subr.mxu0 0.0
    %3206 = vmatpush1.msra.mxu0 0.0
    %3207 = vmatprep.subr.mxu0 0.0
    %3208 = vmatpush1.msra.mxu0 0.0
    %3209 = vmatprep.subr.mxu0 0.0
    %3210 = vmatpush1.msra.mxu0 0.0
    %3211 = vmatprep.subr.mxu0 0.0
    %3212 = vmatpush1.msra.mxu0 0.0
    %3213 = vmatprep.subr.mxu0 0.0
    %3214 = vmatpush1.msra.mxu0 0.0
    %3215 = vmatprep.subr.mxu0 0.0
    %3216 = vmatpush1.msra.mxu0 0.0
    %3217 = vmatprep.subr.mxu0 0.0
    %3218 = vmatpush1.msra.mxu0 0.0
    %3219 = vmatprep.subr.mxu0 0.0
    %3220 = vmatpush1.msra.mxu0 0.0
    %3221 = vmatprep.subr.mxu0 0.0
    %3222 = vmatpush1.msra.mxu0 0.0
    %3223 = vmatprep.subr.mxu0 0.0
    %3224 = vmatpush1.msra.mxu0 0.0
    %3225 = vmatprep.subr.mxu0 0.0
    %3226 = vmatpush1.msra.mxu0 0.0
    %3227 = vmatprep.subr.mxu0 0.0
    %3228 = vmatpush1.msra.mxu0 0.0
    %3229 = vmatprep.subr.mxu0 0.0
    %3230 = vmatpush1.msra.mxu0 0.0
    %3231 = vmatprep.subr.mxu0 0.0
    %3232 = vmatpush1.msra.mxu0 0.0
    %3233 = vmatprep.subr.mxu0 0.0
    %3234 = vmatpush1.msra.mxu0 0.0
    %3235 = vmatprep.subr.mxu0 0.0
    %3236 = vmatpush1.msra.mxu0 0.0
    %3237 = vmatprep.subr.mxu0 0.0
    %3238 = vmatpush1.msra.mxu0 0.0
    %3239 = vmatprep.subr.mxu0 0.0
    %3240 = vmatpush1.msra.mxu0 0.0
    %3241 = vmatprep.subr.mxu0 0.0
    %3242 = vmatpush1.msra.mxu0 0.0
    %3243 = vmatprep.subr.mxu0 0.0
    %3244 = vmatpush1.msra.mxu0 0.0
    %3245 = vmatprep.subr.mxu0 0.0
    %3246 = vmatpush1.msra.mxu0 0.0
    %3247 = vmatprep.subr.mxu0 0.0
    %3248 = vmatpush1.msra.mxu0 0.0
    %3249 = vmatprep.subr.mxu0 0.0
    %3250 = vmatpush1.msra.mxu0 0.0
    %3251 = vmatprep.subr.mxu0 0.0
    %3252 = vmatpush1.msra.mxu0 0.0
    %3253 = vmatprep.mubr.f32.mxu0 0.0
    %3254 = vmatmul.mubr.f32.gmra.mrb[0].mxu0 %v3047
    %v3255 = vpop.f32.mrb[0].mxu0
    %v3256 = vadd.f32 %v2333, %v3255
    %v3257 = vpop.f32.mrb[0].mxu0
    %3258 = vdwg.mxu0
    %v3259 = vadd.f32 %v3043, %v3116
    %v3260 = vxor.u32 %v3259, 2147483648
    %v3261 = vmul.f32 %v3260, 1.442695
    %v3262 = vpow.pop %v3261
    %v3263 = vadd.f32 %v3262, 1.0
    %v3264 = vrcp.pop %v3263
    %v3265 = vmul.f32 1.0, %v3264
    %v3266 = vadd.f32 %v3044, %v3186
    %v3267 = vxor.u32 %v3266, 2147483648
    %v3268 = vmul.f32 %v3267, 1.442695
    %v3269 = vpow.pop %v3268
    %v3270 = vadd.f32 %v3269, 1.0
    %v3271 = vrcp.pop %v3270
    %v3272 = vmul.f32 1.0, %v3271
    %v3273 = vmul.f32 %v3265, %v3256
    %v3274 = vadd.f32 %v3045, %v3273
    %v3275 = vtanh.pop %v3274
    %v3276 = vsub.f32 1.0, %v3272
    %v3277 = vmul.f32 %v3276, %v3275
    %v3278 = vmul.f32 %v3272, %v3042
    %v3279 = vadd.f32 %v3277, %v3278
    %v3280 = vld [vmem:[%s13] sm:$0x1]
    %v3282 = vlaneseq
    %v3283 = vshrl.u32 %v3282, 7
    %v3284 = vsub.s32 0, %v3283
    %v3285 = vrot.slane %v3280, %v3284
    %v3287 = vmul.f32 %v3279, %v3285
    %v3288 = vsel %vm771, %v3287, 0.0
    %3289 = vadd.xlane.f32.xlu0 %v3288
    %v3290 = vpop.xlane.xlu0 %3289
    %v3291 = vld [vmem:[%s15] sm:$0x3]
    %v3292 = vld [vmem:[#allocation9] sm:$0x1]
    %v3294 = vlaneseq
    %v3295 = vshrl.u32 %v3294, 7
    %v3296 = vsub.s32 0, %v3295
    %v3297 = vrot.slane %v3292, %v3296
    %v3299 = vmul.f32 %v3291, %v3297
    %v3300 = vadd.f32 %v3299, 0.0
    %v3301 = vadd.f32 %v3290, %v3300
    %s3302 = sld [smem:[#allocation10]]
    %v3303 = vstv %s3302
    %v3304 = vadd.f32 %v3301, %v3303
    %vm3305 = vcmask 1024
    %3306 = vst.msk [vmem:[%s17] sm:$0x3] %vm3305, %v3304
    // Predicated region
    $region94: #{forward.1} parent=1 // pred_check
      _
    $region95: #{forward.1} parent=1 // pred_check_branch
      %3308 = sbr.rel (0) target = $region97
    $region96: #{forward.1} parent=1 // pred_region
      _
    $region97: #{forward.1} parent=1 // pred_fallthru
      _
    // Predicated region
    $region98: #{forward.1} parent=1 // pred_check
      _
    $region99: #{forward.1} parent=1 // pred_check_branch
      %3310 = sbr.rel (0) target = $region101
    $region100: #{forward.1} parent=1 // pred_region
      _
    $region101: #{forward.1} parent=1 // pred_fallthru
      _
    %3311 = vsyncpa [#allocation12], 1
    %3312 = vsyncpa [#allocation14], 1
    %3313 = vsyncpa [#allocation17], 1
    %3314 = vsyncpa [#allocation20], 1

</llo_original>
